<compile_context>
chip_gen: v7x
topology: tpu7x:2x2x1
jax: 0.10.0
libtpu: 0.0.40
codegen_flags: <defaults>
</compile_context>

<pallas_src>
import functools
import math

import jax
import jax.numpy as jnp
from jax.experimental import pallas as pl
from jax.experimental.pallas import tpu as pltpu


def _layernorm(x, gamma, beta, eps):
    # torch.nn.LayerNorm over last dim (biased variance), f32.
    mean = jnp.mean(x, axis=-1, keepdims=True)
    var = jnp.mean(jnp.square(x - mean), axis=-1, keepdims=True)
    return (x - mean) * jax.lax.rsqrt(var + eps) * gamma + beta


def _tpu_target_info():
    """Returns (vmem_capacity_bytes, new_gen) where new_gen => 256-wide MXU + bf16 EUP."""
    kind = ""
    try:
        kind = jax.devices()[0].device_kind.lower()
    except Exception:
        pass
    old_gen = any(f"v{v}" in kind for v in (2, 3, 4, 5))
    try:
        vmem_cap = int(pltpu.get_tpu_info().vmem_capacity_bytes)
    except Exception:
        vmem_cap = (64 << 20) if ("v7" in kind or "7x" in kind) else (128 << 20)
    return vmem_cap, (not old_gen)


def _estimate_vmem_bytes(S, E, F, H, tq, single_buffer_weights):
    """Rough per-core VMEM footprint (weights + buffers + transients) for one grid step."""
    Dh = E // H
    lane = lambda n: -(-n // 128) * 128
    sub = lambda n: -(-n // 8) * 8
    wb = (3 * E * lane(E) + H * sub(Dh) * lane(E) + E * lane(F) + F * lane(E)) * 2
    if not single_buffer_weights:
        wb *= 2
    x_bf = 2 * sub(S) * lane(E) * 2                     # double-buffered bf16 full-seq x
    io32 = 2 * 2 * sub(tq) * lane(E) * 4                # f32 q tile + f32 out, double-buffered
    kv_scr = 2 * H * sub(S) * lane(Dh) * 2              # K/V scratch (bf16, lane-padded Dh)
    act = (2 * sub(S) * lane(E)                         # k2 / v2 f32 transients (qi == 0)
           + 2 * H * sub(tq) * lane(S)                  # scores + probs
           + H * sub(tq) * lane(E)                      # per-head out-proj partials
           + 2 * sub(tq) * lane(F)                      # h1 (f32 + bf16 copy)
           + 6 * sub(tq) * lane(E)) * 4                 # q2 / attn / y / ff / z / misc
    vecs = (16 * lane(E) + 8 * lane(F)) * 4
    return wb + x_bf + io32 + kv_scr + act + vecs


def _encoder_layer_kernel(
    x32_ref,     # (1, tq, E) f32  q-tile, residual / LayerNorm path
    xbf_ref,     # (1, S, E)  bf16 full sequence, matmul path (constant over q tiles)
    wq_ref,      # (E, E)     bf16 (= in_proj_weight[:E].T)
    wk_ref,      # (E, E)     bf16 (= in_proj_weight[E:2E].T)
    wv_ref,      # (E, E)     bf16 (= in_proj_weight[2E:].T)
    wo_ref,      # (H, Dh, E) bf16 (= out_proj.weight.T head-split)
    w1_ref,      # (E, F)     bf16 (= linear1.weight.T)
    w2_ref,      # (F, E)     bf16 (= linear2.weight.T)
    vece_ref,    # (9, E)     f32  rows: bq, bk, bv, bo, b2, ln1_g, ln1_b, ln2_g, ln2_b
    b1_ref,      # (1, F)     f32
    o_ref,       # (1, tq, E)
    kh_scr,      # (H, S, Dh) bf16 scratch, persists across q tiles
    vh_scr,      # (H, S, Dh) bf16 scratch
    *,
    nhead: int,
    eps: float,
    use_bf16_exp: bool,
    fused_head_split: bool,
):
    S, E = xbf_ref.shape[1], xbf_ref.shape[2]
    tq = x32_ref.shape[1]
    H = nhead
    Dh = E // H
    scale = 1.0 / math.sqrt(Dh)
    bf16 = jnp.bfloat16
    f32 = jnp.float32

    bq, bk, bv = vece_ref[0], vece_ref[1], vece_ref[2]
    bo, b2 = vece_ref[3], vece_ref[4]
    ln1_g, ln1_b = vece_ref[5], vece_ref[6]
    ln2_g, ln2_b = vece_ref[7], vece_ref[8]
    b1 = b1_ref[0]

    def split_heads(t2_bf):
        # (N, E) bf16 -> (H, N, Dh) bf16, PyTorch contiguous head order.
        if fused_head_split:
            return pltpu.einshape("n(hd)->hnd", t2_bf, h=H, d=Dh)
        return jnp.stack([t2_bf[:, h * Dh:(h + 1) * Dh] for h in range(H)], axis=0)

    # ---- K/V projections: once per batch element, reused for every q tile ----
    @pl.when(pl.program_id(1) == 0)
    def _():
        x_all = xbf_ref[0]                                                 # (S, E) bf16
        k2 = jnp.dot(x_all, wk_ref[...], preferred_element_type=f32) + bk  # (S, E) f32
        v2 = jnp.dot(x_all, wv_ref[...], preferred_element_type=f32) + bv
        kh_scr[...] = split_heads(k2.astype(bf16))
        vh_scr[...] = split_heads(v2.astype(bf16))

    # ---- Q projection for this tile ----
    xq = x32_ref[0]                                                        # (tq, E) f32
    q2 = jnp.dot(xq.astype(bf16), wq_ref[...], preferred_element_type=f32) + bq
    qh = split_heads((q2 * scale).astype(bf16))                            # (H, tq, Dh)

    # ---- head-batched attention ----
    s = jnp.einsum('hqd,hkd->hqk', qh, kh_scr[...],
                   preferred_element_type=f32)                             # (H, tq, S) f32
    m = jnp.max(s, axis=-1, keepdims=True)
    p = jnp.exp((s - m).astype(bf16 if use_bf16_exp else f32))
    l = jnp.sum(p.astype(f32), axis=-1, keepdims=True)                     # (H, tq, 1) f32
    ctx = jnp.einsum('hqk,hkd->hqd', p.astype(bf16), vh_scr[...],
                     preferred_element_type=f32)                           # (H, tq, Dh) f32
    ctx = ctx / l                                                          # exact softmax denom

    # ---- out-projection; head concat folded into a batched matmul + head-sum ----
    attn = jnp.einsum('hqd,hde->hqe', ctx.astype(bf16), wo_ref[...],
                      preferred_element_type=f32)                          # (H, tq, E) f32
    attn = jnp.sum(attn, axis=0) + bo                                      # (tq, E)

    # ---- post-norm residual 1 (f32) ----
    y = _layernorm(xq + attn, ln1_g, ln1_b, eps)

    # ---- feed-forward (ReLU) ----
    h1 = jnp.dot(y.astype(bf16), w1_ref[...], preferred_element_type=f32) + b1
    h1 = jnp.maximum(h1, 0.0)
    ff = jnp.dot(h1.astype(bf16), w2_ref[...], preferred_element_type=f32) + b2

    # ---- post-norm residual 2 (f32) ----
    z = _layernorm(y + ff, ln2_g, ln2_b, eps)
    o_ref[0] = z.astype(o_ref.dtype)


def prepare_params(params, *, nhead, weight_dtype=jnp.bfloat16):
    """Split / pre-transpose / pack the PyTorch-layout params (done once, host side)."""
    E = params["out_w"].shape[0]
    F = params["w1"].shape[0]
    assert E % nhead == 0, "d_model must be divisible by nhead"
    Dh = E // nhead
    in_w = params["in_w"]                       # (3E, E)
    in_b = params["in_b"].reshape(3 * E)
    f32 = jnp.float32
    vec_e = jnp.stack([
        in_b[:E], in_b[E:2 * E], in_b[2 * E:],
        params["out_b"].reshape(E),
        params["b2"].reshape(E),
        params["ln1_g"].reshape(E), params["ln1_b"].reshape(E),
        params["ln2_g"].reshape(E), params["ln2_b"].reshape(E),
    ], axis=0).astype(f32)                      # (9, E)
    return {
        "wq": in_w[:E].T.astype(weight_dtype),                       # (E, E)
        "wk": in_w[E:2 * E].T.astype(weight_dtype),                  # (E, E)
        "wv": in_w[2 * E:].T.astype(weight_dtype),                   # (E, E)
        # out_proj.weight.T head-split so the head concat folds into the matmul
        "wo": params["out_w"].T.reshape(nhead, Dh, E).astype(weight_dtype),
        "w1": params["w1"].T.astype(weight_dtype),                   # (E, F)
        "w2": params["w2"].T.astype(weight_dtype),                   # (F, E)
        "vec_e": vec_e,                                              # (9, E) f32
        "b1": params["b1"].reshape(1, F).astype(f32),                # (1, F) f32
    }


def transformer_encoder_layer(src, packed, *, nhead, eps=1e-5, q_block=None):
    """src: (S, B, E) float32 (batch_first=False). Returns (S, B, E)."""
    S, B, E = src.shape
    assert E % nhead == 0, "d_model must be divisible by nhead"
    Dh = E // nhead
    F = packed["w1"].shape[1]

    vmem_cap, new_gen = _tpu_target_info()

    if q_block is None:
        # 256 fills the 256-wide MXU on v6e/v7x; 128 matches v5e's 128-wide MXU.
        q_block = 256 if (new_gen and S % 256 == 0) else (128 if S % 128 == 0 else S)
        # Shrink the q tile if the working set would blow the per-core VMEM budget (v7x).
        while (q_block > 64 and q_block % 2 == 0 and S % (q_block // 2) == 0
               and _estimate_vmem_bytes(S, E, F, nhead, q_block, True) > int(0.85 * vmem_cap)):
            q_block //= 2
    assert S % q_block == 0, "q_block must divide the sequence length"
    n_q = S // q_block

    # Residual path stays f32; matmul path gets a bf16 copy (transpose+cast fuse in XLA).
    x32 = jnp.transpose(src, (1, 0, 2)).astype(jnp.float32)     # (B, S, E) f32
    xbf = x32.astype(jnp.bfloat16)                              # (B, S, E) bf16

    flops = 2 * B * S * E * (4 * E + 2 * F) + 4 * B * S * S * E
    cost = pl.CostEstimate(
        flops=int(flops),
        transcendentals=int(B * nhead * S * S),
        bytes_accessed=int((4 * E * E + 2 * E * F) * 2 + B * S * E * 10 + (9 * E + F) * 4),
    )

    def build_and_run(single_buffer_weights, fused_head_split):
        kern = functools.partial(
            _encoder_layer_kernel, nhead=nhead, eps=eps,
            use_bf16_exp=new_gen, fused_head_split=fused_head_split)

        est = _estimate_vmem_bytes(S, E, F, nhead, q_block, single_buffer_weights)
        vmem_limit = max(16 << 20, int(1.25 * est) + (4 << 20))
        vmem_limit = min(vmem_limit, max(16 << 20, vmem_cap - (2 << 20)))

        def const_spec(shape):
            zeros = (0,) * len(shape)
            kw = {"pipeline_mode": pl.Buffered(1)} if single_buffer_weights else {}
            return pl.BlockSpec(shape, lambda b, qi: zeros, **kw)

        in_specs = [
            pl.BlockSpec((1, q_block, E), lambda b, qi: (b, qi, 0)),  # x f32 q tile
            pl.BlockSpec((1, S, E), lambda b, qi: (b, 0, 0)),         # x bf16 full sequence
            const_spec((E, E)),          # wq
            const_spec((E, E)),          # wk
            const_spec((E, E)),          # wv
            const_spec((nhead, Dh, E)),  # wo (head-split)
            const_spec((E, F)),          # w1
            const_spec((F, E)),          # w2
            const_spec((9, E)),          # packed length-E vectors
            const_spec((1, F)),          # b1
        ]
        out_spec = pl.BlockSpec((1, q_block, E), lambda b, qi: (b, qi, 0))

        return pl.pallas_call(
            kern,
            out_shape=jax.ShapeDtypeStruct((B, S, E), src.dtype),
            grid_spec=pltpu.PrefetchScalarGridSpec(
                num_scalar_prefetch=0,
                grid=(B, n_q),
                in_specs=in_specs,
                out_specs=out_spec,
                scratch_shapes=[pltpu.VMEM((nhead, S, Dh), jnp.bfloat16),
                                pltpu.VMEM((nhead, S, Dh), jnp.bfloat16)]),
            compiler_params=pltpu.CompilerParams(
                dimension_semantics=("parallel", "arbitrary"),
                vmem_limit_bytes=vmem_limit),
            cost_estimate=cost,
        )(x32, xbf,
          packed["wq"], packed["wk"], packed["wv"], packed["wo"],
          packed["w1"], packed["w2"], packed["vec_e"], packed["b1"])

    # Preference order: single-buffered weights + fused head split, then degrade.
    # NOTE: this fallback only triggers when the wrapper runs eagerly (as here);
    # pin a known-good config before wrapping the whole thing in jit.
    attempts = (
        dict(single_buffer_weights=True, fused_head_split=True),
        dict(single_buffer_weights=True, fused_head_split=False),
        dict(single_buffer_weights=False, fused_head_split=True),
        dict(single_buffer_weights=False, fused_head_split=False),
    )
    out = None
    for i, cfg in enumerate(attempts):
        try:
            out = build_and_run(**cfg)
            break
        except Exception as err:  # pragma: no cover - build fallback path
            if i + 1 == len(attempts):
                raise
            print(f"WARNING: pallas config {cfg} failed ({type(err).__name__}); "
                  f"falling back to {attempts[i + 1]}")

    return jnp.transpose(out, (1, 0, 2))        # (B, S, E) -> (S, B, E)


def init_params(key, d_model, nhead, dim_feedforward, dtype=jnp.float32):
    ks = jax.random.split(key, 6)
    E, F = d_model, dim_feedforward

    def xavier(k, shape):
        fan_in, fan_out = shape[1], shape[0]
        bound = math.sqrt(6.0 / (fan_in + fan_out))
        return jax.random.uniform(k, shape, dtype, -bound, bound)

    return {
        # MultiheadAttention (PyTorch layout)
        "in_w": xavier(ks[0], (3 * E, E)),
        "in_b": jnp.zeros((3 * E,), dtype),
        "out_w": xavier(ks[1], (E, E)),
        "out_b": jnp.zeros((E,), dtype),
        # FFN
        "w1": xavier(ks[2], (F, E)),
        "b1": (0.01 * jax.random.normal(ks[3], (F,))).astype(dtype),
        "w2": xavier(ks[4], (E, F)),
        "b2": (0.01 * jax.random.normal(ks[5], (E,))).astype(dtype),
        # LayerNorms (norm3 exists in the module but is unused in forward)
        "ln1_g": jnp.ones((E,), dtype),
        "ln1_b": jnp.zeros((E,), dtype),
        "ln2_g": jnp.ones((E,), dtype),
        "ln2_b": jnp.zeros((E,), dtype),
    }


def _reference(src, params, *, nhead, eps):
    """Pure-JAX f32 reference matching the PyTorch module (eval mode, no masks)."""
    S, B, E = src.shape
    Dh = E // nhead
    x = src.astype(jnp.float32)
    qkv = jnp.einsum('sbe,fe->sbf', x, params["in_w"]) + params["in_b"]
    q, k, v = jnp.split(qkv, 3, axis=-1)

    def split(t):  # (S,B,E) -> (B,H,S,Dh)
        return t.reshape(S, B, nhead, Dh).transpose(1, 2, 0, 3)

    qh, kh, vh = split(q), split(k), split(v)
    s = jnp.einsum('bhqd,bhkd->bhqk', qh, kh) / math.sqrt(Dh)
    p = jax.nn.softmax(s, axis=-1)
    ctx = jnp.einsum('bhqk,bhkd->bhqd', p, vh)
    ctx = ctx.transpose(2, 0, 1, 3).reshape(S, B, E)
    attn = jnp.einsum('sbe,fe->sbf', ctx, params["out_w"]) + params["out_b"]

    def ln(t, g, b):
        m = t.mean(-1, keepdims=True)
        var = ((t - m) ** 2).mean(-1, keepdims=True)
        return (t - m) * jax.lax.rsqrt(var + eps) * g + b

    y = ln(x + attn, params["ln1_g"], params["ln1_b"])
    h1 = jax.nn.relu(jnp.einsum('sbe,fe->sbf', y, params["w1"]) + params["b1"])
    ff = jnp.einsum('sbf,ef->sbe', h1, params["w2"]) + params["b2"]
    return ln(y + ff, params["ln2_g"], params["ln2_b"])


if __name__ == "__main__":
    d_model, nhead, dim_feedforward = 32, 4, 64
    seq, batch = 8, 2

    key = jax.random.PRNGKey(0)
    k_x, k_p = jax.random.split(key)
    src = jax.random.normal(k_x, (seq, batch, d_model), jnp.float32)  # (S, B, E)
    params = init_params(k_p, d_model, nhead, dim_feedforward)
    packed = prepare_params(params, nhead=nhead)

    out = transformer_encoder_layer(src, packed, nhead=nhead, eps=1e-5)
    out = jax.block_until_ready(out)

    assert out.shape == (seq, batch, d_model), out.shape
    assert bool(jnp.all(jnp.isfinite(out)))

    # loose check vs. f32 reference (kernel uses bf16 matmul operands, f32 accumulation)
    ref = _reference(src, params, nhead=nhead, eps=1e-5)
    max_err = float(jnp.max(jnp.abs(out - ref)))
    assert max_err < 1e-1, f"max abs err vs reference = {max_err}"

    print("KERNEL_OK")
</pallas_src>

<mosaic_0001>
module attributes {stable_mosaic.version = 11 : i64} {
  func.func @_encoder_layer_kernel(%arg0: i32, %arg1: i32, %arg2: memref<1x8x32xf32, #tpu.memory_space<vmem>>, %arg3: memref<1x8x32xbf16, #tpu.memory_space<vmem>>, %arg4: memref<32x32xbf16, #tpu.memory_space<vmem>>, %arg5: memref<32x32xbf16, #tpu.memory_space<vmem>>, %arg6: memref<32x32xbf16, #tpu.memory_space<vmem>>, %arg7: memref<4x8x32xbf16, #tpu.memory_space<vmem>>, %arg8: memref<32x64xbf16, #tpu.memory_space<vmem>>, %arg9: memref<64x32xbf16, #tpu.memory_space<vmem>>, %arg10: memref<9x32xf32, #tpu.memory_space<vmem>>, %arg11: memref<1x64xf32, #tpu.memory_space<vmem>>, %arg12: memref<1x8x32xf32, #tpu.memory_space<vmem>>, %arg13: memref<4x8x8xbf16, #tpu.memory_space<vmem>>, %arg14: memref<4x8x8xbf16, #tpu.memory_space<vmem>>) attributes {dimension_semantics = [#tpu.dimension_semantics<parallel>, #tpu.dimension_semantics<arbitrary>], iteration_bounds = array<i64: 2, 1>, scalar_prefetch = 0 : i64, scratch_operands = 2 : i64, tpu.core_type = #tpu.core_type<tc>, window_params = [{transform_indices = @transform_0, window_bounds = array<i64: 1, 8, 32>}, {transform_indices = @transform_1, window_bounds = array<i64: 1, 8, 32>}, {pipeline_mode = #tpu.pipeline_mode<synchronous>, transform_indices = @transform_2, window_bounds = array<i64: 32, 32>}, {pipeline_mode = #tpu.pipeline_mode<synchronous>, transform_indices = @transform_3, window_bounds = array<i64: 32, 32>}, {pipeline_mode = #tpu.pipeline_mode<synchronous>, transform_indices = @transform_4, window_bounds = array<i64: 32, 32>}, {pipeline_mode = #tpu.pipeline_mode<synchronous>, transform_indices = @transform_5, window_bounds = array<i64: 4, 8, 32>}, {pipeline_mode = #tpu.pipeline_mode<synchronous>, transform_indices = @transform_6, window_bounds = array<i64: 32, 64>}, {pipeline_mode = #tpu.pipeline_mode<synchronous>, transform_indices = @transform_7, window_bounds = array<i64: 64, 32>}, {pipeline_mode = #tpu.pipeline_mode<synchronous>, transform_indices = @transform_8, window_bounds = array<i64: 9, 32>}, {pipeline_mode = #tpu.pipeline_mode<synchronous>, transform_indices = @transform_9, window_bounds = array<i64: 1, 64>}, {transform_indices = @transform_10, window_bounds = array<i64: 1, 8, 32>}]} {
    %c0 = arith.constant 0 : index
    %c0_0 = arith.constant 0 : index
    %0 = vector.load %arg10[%c0, %c0_0] : memref<9x32xf32, #tpu.memory_space<vmem>>, vector<1x32xf32>
    %1 = vector.shape_cast %0 : vector<1x32xf32> to vector<32xf32>
    %c1 = arith.constant 1 : index
    %c0_1 = arith.constant 0 : index
    %2 = vector.load %arg10[%c1, %c0_1] : memref<9x32xf32, #tpu.memory_space<vmem>>, vector<1x32xf32>
    %3 = vector.shape_cast %2 : vector<1x32xf32> to vector<32xf32>
    %c2 = arith.constant 2 : index
    %c0_2 = arith.constant 0 : index
    %4 = vector.load %arg10[%c2, %c0_2] : memref<9x32xf32, #tpu.memory_space<vmem>>, vector<1x32xf32>
    %5 = vector.shape_cast %4 : vector<1x32xf32> to vector<32xf32>
    %c3 = arith.constant 3 : index
    %c0_3 = arith.constant 0 : index
    %6 = vector.load %arg10[%c3, %c0_3] : memref<9x32xf32, #tpu.memory_space<vmem>>, vector<1x32xf32>
    %7 = vector.shape_cast %6 : vector<1x32xf32> to vector<32xf32>
    %c4 = arith.constant 4 : index
    %c0_4 = arith.constant 0 : index
    %8 = vector.load %arg10[%c4, %c0_4] : memref<9x32xf32, #tpu.memory_space<vmem>>, vector<1x32xf32>
    %9 = vector.shape_cast %8 : vector<1x32xf32> to vector<32xf32>
    %c5 = arith.constant 5 : index
    %c0_5 = arith.constant 0 : index
    %10 = vector.load %arg10[%c5, %c0_5] : memref<9x32xf32, #tpu.memory_space<vmem>>, vector<1x32xf32>
    %11 = vector.shape_cast %10 : vector<1x32xf32> to vector<32xf32>
    %c6 = arith.constant 6 : index
    %c0_6 = arith.constant 0 : index
    %12 = vector.load %arg10[%c6, %c0_6] : memref<9x32xf32, #tpu.memory_space<vmem>>, vector<1x32xf32>
    %13 = vector.shape_cast %12 : vector<1x32xf32> to vector<32xf32>
    %c7 = arith.constant 7 : index
    %c0_7 = arith.constant 0 : index
    %14 = vector.load %arg10[%c7, %c0_7] : memref<9x32xf32, #tpu.memory_space<vmem>>, vector<1x32xf32>
    %15 = vector.shape_cast %14 : vector<1x32xf32> to vector<32xf32>
    %c8 = arith.constant 8 : index
    %c0_8 = arith.constant 0 : index
    %16 = vector.load %arg10[%c8, %c0_8] : memref<9x32xf32, #tpu.memory_space<vmem>>, vector<1x32xf32>
    %17 = vector.shape_cast %16 : vector<1x32xf32> to vector<32xf32>
    %c0_9 = arith.constant 0 : index
    %c0_10 = arith.constant 0 : index
    %18 = vector.load %arg11[%c0_9, %c0_10] : memref<1x64xf32, #tpu.memory_space<vmem>>, vector<1x64xf32>
    %19 = vector.shape_cast %18 : vector<1x64xf32> to vector<64xf32>
    %c0_i32 = arith.constant 0 : i32
    %20 = arith.cmpi eq, %arg1, %c0_i32 : i32
    %21 = arith.extui %20 : i1 to i32
    %c0_i32_11 = arith.constant 0 : i32
    %22 = arith.cmpi ne, %21, %c0_i32_11 : i32
    scf.if %22 {
      %c0_53 = arith.constant 0 : index
      %c0_54 = arith.constant 0 : index
      %c0_55 = arith.constant 0 : index
      %132 = vector.load %arg3[%c0_53, %c0_54, %c0_55] : memref<1x8x32xbf16, #tpu.memory_space<vmem>>, vector<1x8x32xbf16>
      %133 = vector.shape_cast %132 : vector<1x8x32xbf16> to vector<8x32xbf16>
      %c0_56 = arith.constant 0 : index
      %c0_57 = arith.constant 0 : index
      %134 = vector.load %arg5[%c0_56, %c0_57] : memref<32x32xbf16, #tpu.memory_space<vmem>>, vector<32x32xbf16>
      %cst_58 = arith.constant dense<0.000000e+00> : vector<8x32xf32>
      %135 = tpu.matmul %133, %134, %cst_58 {dimension_numbers = #tpu.dot_dimension_numbers<[1], [0], [0], [1], [0, 0, 1, 1], [], []>} : vector<8x32xbf16>, vector<32x32xbf16>, vector<8x32xf32> -> vector<8x32xf32>
      %136 = vector.shape_cast %3 : vector<32xf32> to vector<1x32xf32>
      %137 = vector.broadcast %136 : vector<1x32xf32> to vector<8x32xf32>
      %138 = arith.addf %135, %137 : vector<8x32xf32>
      %c0_59 = arith.constant 0 : index
      %c0_60 = arith.constant 0 : index
      %139 = vector.load %arg6[%c0_59, %c0_60] : memref<32x32xbf16, #tpu.memory_space<vmem>>, vector<32x32xbf16>
      %cst_61 = arith.constant dense<0.000000e+00> : vector<8x32xf32>
      %140 = tpu.matmul %133, %139, %cst_61 {dimension_numbers = #tpu.dot_dimension_numbers<[1], [0], [0], [1], [0, 0, 1, 1], [], []>} : vector<8x32xbf16>, vector<32x32xbf16>, vector<8x32xf32> -> vector<8x32xf32>
      %141 = vector.shape_cast %5 : vector<32xf32> to vector<1x32xf32>
      %142 = vector.broadcast %141 : vector<1x32xf32> to vector<8x32xf32>
      %143 = arith.addf %140, %142 : vector<8x32xf32>
      %144 = arith.truncf %138 : vector<8x32xf32> to vector<8x32xbf16>
      %145 = vector.extract_strided_slice %144 {offsets = [0, 0], sizes = [8, 8], strides = [1, 1]} : vector<8x32xbf16> to vector<8x8xbf16>
      %146 = vector.extract_strided_slice %144 {offsets = [0, 8], sizes = [8, 8], strides = [1, 1]} : vector<8x32xbf16> to vector<8x8xbf16>
      %147 = vector.extract_strided_slice %144 {offsets = [0, 16], sizes = [8, 8], strides = [1, 1]} : vector<8x32xbf16> to vector<8x8xbf16>
      %148 = vector.extract_strided_slice %144 {offsets = [0, 24], sizes = [8, 8], strides = [1, 1]} : vector<8x32xbf16> to vector<8x8xbf16>
      %149 = vector.shape_cast %145 : vector<8x8xbf16> to vector<1x8x8xbf16>
      %150 = vector.shape_cast %146 : vector<8x8xbf16> to vector<1x8x8xbf16>
      %151 = vector.shape_cast %147 : vector<8x8xbf16> to vector<1x8x8xbf16>
      %152 = vector.shape_cast %148 : vector<8x8xbf16> to vector<1x8x8xbf16>
      %153 = tpu.concatenate %149, %150, %151, %152 in 0 : vector<1x8x8xbf16>, vector<1x8x8xbf16>, vector<1x8x8xbf16>, vector<1x8x8xbf16> -> vector<4x8x8xbf16>
      %c0_62 = arith.constant 0 : index
      %c0_63 = arith.constant 0 : index
      %c0_64 = arith.constant 0 : index
      %154 = vector.load %arg13[%c0_62, %c0_63, %c0_64] : memref<4x8x8xbf16, #tpu.memory_space<vmem>>, vector<4x8x8xbf16>
      tpu.vector_store %arg13[%c0_62, %c0_63, %c0_64], %153 {strides = array<i32>} : memref<4x8x8xbf16, #tpu.memory_space<vmem>>, vector<4x8x8xbf16>,
      %155 = arith.truncf %143 : vector<8x32xf32> to vector<8x32xbf16>
      %156 = vector.extract_strided_slice %155 {offsets = [0, 0], sizes = [8, 8], strides = [1, 1]} : vector<8x32xbf16> to vector<8x8xbf16>
      %157 = vector.extract_strided_slice %155 {offsets = [0, 8], sizes = [8, 8], strides = [1, 1]} : vector<8x32xbf16> to vector<8x8xbf16>
      %158 = vector.extract_strided_slice %155 {offsets = [0, 16], sizes = [8, 8], strides = [1, 1]} : vector<8x32xbf16> to vector<8x8xbf16>
      %159 = vector.extract_strided_slice %155 {offsets = [0, 24], sizes = [8, 8], strides = [1, 1]} : vector<8x32xbf16> to vector<8x8xbf16>
      %160 = vector.shape_cast %156 : vector<8x8xbf16> to vector<1x8x8xbf16>
      %161 = vector.shape_cast %157 : vector<8x8xbf16> to vector<1x8x8xbf16>
      %162 = vector.shape_cast %158 : vector<8x8xbf16> to vector<1x8x8xbf16>
      %163 = vector.shape_cast %159 : vector<8x8xbf16> to vector<1x8x8xbf16>
      %164 = tpu.concatenate %160, %161, %162, %163 in 0 : vector<1x8x8xbf16>, vector<1x8x8xbf16>, vector<1x8x8xbf16>, vector<1x8x8xbf16> -> vector<4x8x8xbf16>
      %c0_65 = arith.constant 0 : index
      %c0_66 = arith.constant 0 : index
      %c0_67 = arith.constant 0 : index
      %165 = vector.load %arg14[%c0_65, %c0_66, %c0_67] : memref<4x8x8xbf16, #tpu.memory_space<vmem>>, vector<4x8x8xbf16>
      tpu.vector_store %arg14[%c0_65, %c0_66, %c0_67], %164 {strides = array<i32>} : memref<4x8x8xbf16, #tpu.memory_space<vmem>>, vector<4x8x8xbf16>,
    } else {
    }
    %c0_12 = arith.constant 0 : index
    %c0_13 = arith.constant 0 : index
    %c0_14 = arith.constant 0 : index
    %23 = vector.load %arg2[%c0_12, %c0_13, %c0_14] : memref<1x8x32xf32, #tpu.memory_space<vmem>>, vector<1x8x32xf32>
    %24 = vector.shape_cast %23 : vector<1x8x32xf32> to vector<8x32xf32>
    %25 = arith.truncf %24 : vector<8x32xf32> to vector<8x32xbf16>
    %c0_15 = arith.constant 0 : index
    %c0_16 = arith.constant 0 : index
    %26 = vector.load %arg4[%c0_15, %c0_16] : memref<32x32xbf16, #tpu.memory_space<vmem>>, vector<32x32xbf16>
    %cst = arith.constant dense<0.000000e+00> : vector<8x32xf32>
    %27 = tpu.matmul %25, %26, %cst {dimension_numbers = #tpu.dot_dimension_numbers<[1], [0], [0], [1], [0, 0, 1, 1], [], []>} : vector<8x32xbf16>, vector<32x32xbf16>, vector<8x32xf32> -> vector<8x32xf32>
    %28 = vector.shape_cast %1 : vector<32xf32> to vector<1x32xf32>
    %29 = vector.broadcast %28 : vector<1x32xf32> to vector<8x32xf32>
    %30 = arith.addf %27, %29 : vector<8x32xf32>
    %cst_17 = arith.constant 0.353553385 : f32
    %31 = vector.broadcast %cst_17 : f32 to vector<8x32xf32>
    %32 = arith.mulf %30, %31 : vector<8x32xf32>
    %33 = arith.truncf %32 : vector<8x32xf32> to vector<8x32xbf16>
    %34 = vector.extract_strided_slice %33 {offsets = [0, 0], sizes = [8, 8], strides = [1, 1]} : vector<8x32xbf16> to vector<8x8xbf16>
    %35 = vector.extract_strided_slice %33 {offsets = [0, 8], sizes = [8, 8], strides = [1, 1]} : vector<8x32xbf16> to vector<8x8xbf16>
    %36 = vector.extract_strided_slice %33 {offsets = [0, 16], sizes = [8, 8], strides = [1, 1]} : vector<8x32xbf16> to vector<8x8xbf16>
    %37 = vector.extract_strided_slice %33 {offsets = [0, 24], sizes = [8, 8], strides = [1, 1]} : vector<8x32xbf16> to vector<8x8xbf16>
    %38 = vector.shape_cast %34 : vector<8x8xbf16> to vector<1x8x8xbf16>
    %39 = vector.shape_cast %35 : vector<8x8xbf16> to vector<1x8x8xbf16>
    %40 = vector.shape_cast %36 : vector<8x8xbf16> to vector<1x8x8xbf16>
    %41 = vector.shape_cast %37 : vector<8x8xbf16> to vector<1x8x8xbf16>
    %42 = tpu.concatenate %38, %39, %40, %41 in 0 : vector<1x8x8xbf16>, vector<1x8x8xbf16>, vector<1x8x8xbf16>, vector<1x8x8xbf16> -> vector<4x8x8xbf16>
    %c0_18 = arith.constant 0 : index
    %c0_19 = arith.constant 0 : index
    %c0_20 = arith.constant 0 : index
    %43 = vector.load %arg13[%c0_18, %c0_19, %c0_20] : memref<4x8x8xbf16, #tpu.memory_space<vmem>>, vector<4x8x8xbf16>
    "tpu.trace_start"() <{level = 10 : i32, message = "hqd,hkd->hqk"}> : () -> ()
    %cst_21 = arith.constant dense<0.000000e+00> : vector<4x8x8xf32>
    %44 = tpu.matmul %42, %43, %cst_21 {dimension_numbers = #tpu.dot_dimension_numbers<[2], [2], [1], [1], [0, 0, 0, 1, 1, 1], [0], [0]>} : vector<4x8x8xbf16>, vector<4x8x8xbf16>, vector<4x8x8xf32> -> vector<4x8x8xf32>
    "tpu.trace_stop"() : () -> ()
    %cst_22 = arith.constant dense<0xFF800000> : vector<4x8xf32>
    %45 = vector.multi_reduction <maximumf>, %44, %cst_22 [2] : vector<4x8x8xf32> to vector<4x8xf32>
    %46 = vector.shape_cast %45 : vector<4x8xf32> to vector<4x8x1xf32>
    %47 = vector.broadcast %46 : vector<4x8x1xf32> to vector<4x8x8xf32>
    %48 = arith.subf %44, %47 : vector<4x8x8xf32>
    %49 = arith.truncf %48 : vector<4x8x8xf32> to vector<4x8x8xbf16>
    %50 = math.exp %49 : vector<4x8x8xbf16>
    %51 = arith.extf %50 : vector<4x8x8xbf16> to vector<4x8x8xf32>
    %cst_23 = arith.constant dense<0.000000e+00> : vector<4x8xf32>
    %52 = vector.multi_reduction <add>, %51, %cst_23 [2] : vector<4x8x8xf32> to vector<4x8xf32>
    %53 = vector.shape_cast %52 : vector<4x8xf32> to vector<4x8x1xf32>
    %c0_24 = arith.constant 0 : index
    %c0_25 = arith.constant 0 : index
    %c0_26 = arith.constant 0 : index
    %54 = vector.load %arg14[%c0_24, %c0_25, %c0_26] : memref<4x8x8xbf16, #tpu.memory_space<vmem>>, vector<4x8x8xbf16>
    "tpu.trace_start"() <{level = 10 : i32, message = "hqk,hkd->hqd"}> : () -> ()
    %cst_27 = arith.constant dense<0.000000e+00> : vector<4x8x8xf32>
    %55 = tpu.matmul %50, %54, %cst_27 {dimension_numbers = #tpu.dot_dimension_numbers<[2], [1], [1], [2], [0, 0, 0, 1, 1, 2], [0], [0]>} : vector<4x8x8xbf16>, vector<4x8x8xbf16>, vector<4x8x8xf32> -> vector<4x8x8xf32>
    "tpu.trace_stop"() : () -> ()
    %56 = vector.broadcast %53 : vector<4x8x1xf32> to vector<4x8x8xf32>
    %57 = arith.divf %55, %56 : vector<4x8x8xf32>
    %58 = arith.truncf %57 : vector<4x8x8xf32> to vector<4x8x8xbf16>
    %c0_28 = arith.constant 0 : index
    %c0_29 = arith.constant 0 : index
    %c0_30 = arith.constant 0 : index
    %59 = vector.load %arg7[%c0_28, %c0_29, %c0_30] : memref<4x8x32xbf16, #tpu.memory_space<vmem>>, vector<4x8x32xbf16>
    "tpu.trace_start"() <{level = 10 : i32, message = "hqd,hde->hqe"}> : () -> ()
    %cst_31 = arith.constant dense<0.000000e+00> : vector<4x8x32xf32>
    %60 = tpu.matmul %58, %59, %cst_31 {dimension_numbers = #tpu.dot_dimension_numbers<[2], [1], [1], [2], [0, 0, 0, 1, 1, 2], [0], [0]>} : vector<4x8x8xbf16>, vector<4x8x32xbf16>, vector<4x8x32xf32> -> vector<4x8x32xf32>
    "tpu.trace_stop"() : () -> ()
    %cst_32 = arith.constant dense<0.000000e+00> : vector<8x32xf32>
    %61 = vector.multi_reduction <add>, %60, %cst_32 [0] : vector<4x8x32xf32> to vector<8x32xf32>
    %62 = vector.shape_cast %7 : vector<32xf32> to vector<1x32xf32>
    %63 = vector.broadcast %62 : vector<1x32xf32> to vector<8x32xf32>
    %64 = arith.addf %61, %63 : vector<8x32xf32>
    %65 = arith.addf %24, %64 : vector<8x32xf32>
    %cst_33 = arith.constant dense<0.000000e+00> : vector<8xf32>
    %66 = vector.multi_reduction <add>, %65, %cst_33 [1] : vector<8x32xf32> to vector<8xf32>
    %67 = vector.shape_cast %66 : vector<8xf32> to vector<8x1xf32>
    %cst_34 = arith.constant 3.200000e+01 : f32
    %68 = vector.broadcast %cst_34 : f32 to vector<8x1xf32>
    %69 = arith.divf %67, %68 : vector<8x1xf32>
    %70 = vector.broadcast %69 : vector<8x1xf32> to vector<8x32xf32>
    %71 = arith.subf %65, %70 : vector<8x32xf32>
    %72 = arith.mulf %71, %71 : vector<8x32xf32>
    %cst_35 = arith.constant dense<0.000000e+00> : vector<8xf32>
    %73 = vector.multi_reduction <add>, %72, %cst_35 [1] : vector<8x32xf32> to vector<8xf32>
    %74 = vector.shape_cast %73 : vector<8xf32> to vector<8x1xf32>
    %cst_36 = arith.constant 3.200000e+01 : f32
    %75 = vector.broadcast %cst_36 : f32 to vector<8x1xf32>
    %76 = arith.divf %74, %75 : vector<8x1xf32>
    %77 = vector.broadcast %69 : vector<8x1xf32> to vector<8x32xf32>
    %78 = arith.subf %65, %77 : vector<8x32xf32>
    %cst_37 = arith.constant 9.99999974E-6 : f32
    %79 = vector.broadcast %cst_37 : f32 to vector<8x1xf32>
    %80 = arith.addf %76, %79 : vector<8x1xf32>
    %81 = math.rsqrt %80 : vector<8x1xf32>
    %82 = vector.broadcast %81 : vector<8x1xf32> to vector<8x32xf32>
    %83 = arith.mulf %78, %82 : vector<8x32xf32>
    %84 = vector.shape_cast %11 : vector<32xf32> to vector<1x32xf32>
    %85 = vector.broadcast %84 : vector<1x32xf32> to vector<8x32xf32>
    %86 = arith.mulf %83, %85 : vector<8x32xf32>
    %87 = vector.shape_cast %13 : vector<32xf32> to vector<1x32xf32>
    %88 = vector.broadcast %87 : vector<1x32xf32> to vector<8x32xf32>
    %89 = arith.addf %86, %88 : vector<8x32xf32>
    %90 = arith.truncf %89 : vector<8x32xf32> to vector<8x32xbf16>
    %c0_38 = arith.constant 0 : index
    %c0_39 = arith.constant 0 : index
    %91 = vector.load %arg8[%c0_38, %c0_39] : memref<32x64xbf16, #tpu.memory_space<vmem>>, vector<32x64xbf16>
    %cst_40 = arith.constant dense<0.000000e+00> : vector<8x64xf32>
    %92 = tpu.matmul %90, %91, %cst_40 {dimension_numbers = #tpu.dot_dimension_numbers<[1], [0], [0], [1], [0, 0, 1, 1], [], []>} : vector<8x32xbf16>, vector<32x64xbf16>, vector<8x64xf32> -> vector<8x64xf32>
    %93 = vector.shape_cast %19 : vector<64xf32> to vector<1x64xf32>
    %94 = vector.broadcast %93 : vector<1x64xf32> to vector<8x64xf32>
    %95 = arith.addf %92, %94 : vector<8x64xf32>
    %cst_41 = arith.constant 0.000000e+00 : f32
    %96 = vector.broadcast %cst_41 : f32 to vector<8x64xf32>
    %97 = arith.maximumf %95, %96 : vector<8x64xf32>
    %98 = arith.truncf %97 : vector<8x64xf32> to vector<8x64xbf16>
    %c0_42 = arith.constant 0 : index
    %c0_43 = arith.constant 0 : index
    %99 = vector.load %arg9[%c0_42, %c0_43] : memref<64x32xbf16, #tpu.memory_space<vmem>>, vector<64x32xbf16>
    %cst_44 = arith.constant dense<0.000000e+00> : vector<8x32xf32>
    %100 = tpu.matmul %98, %99, %cst_44 {dimension_numbers = #tpu.dot_dimension_numbers<[1], [0], [0], [1], [0, 0, 1, 1], [], []>} : vector<8x64xbf16>, vector<64x32xbf16>, vector<8x32xf32> -> vector<8x32xf32>
    %101 = vector.shape_cast %9 : vector<32xf32> to vector<1x32xf32>
    %102 = vector.broadcast %101 : vector<1x32xf32> to vector<8x32xf32>
    %103 = arith.addf %100, %102 : vector<8x32xf32>
    %104 = arith.addf %89, %103 : vector<8x32xf32>
    %cst_45 = arith.constant dense<0.000000e+00> : vector<8xf32>
    %105 = vector.multi_reduction <add>, %104, %cst_45 [1] : vector<8x32xf32> to vector<8xf32>
    %106 = vector.shape_cast %105 : vector<8xf32> to vector<8x1xf32>
    %cst_46 = arith.constant 3.200000e+01 : f32
    %107 = vector.broadcast %cst_46 : f32 to vector<8x1xf32>
    %108 = arith.divf %106, %107 : vector<8x1xf32>
    %109 = vector.broadcast %108 : vector<8x1xf32> to vector<8x32xf32>
    %110 = arith.subf %104, %109 : vector<8x32xf32>
    %111 = arith.mulf %110, %110 : vector<8x32xf32>
    %cst_47 = arith.constant dense<0.000000e+00> : vector<8xf32>
    %112 = vector.multi_reduction <add>, %111, %cst_47 [1] : vector<8x32xf32> to vector<8xf32>
    %113 = vector.shape_cast %112 : vector<8xf32> to vector<8x1xf32>
    %cst_48 = arith.constant 3.200000e+01 : f32
    %114 = vector.broadcast %cst_48 : f32 to vector<8x1xf32>
    %115 = arith.divf %113, %114 : vector<8x1xf32>
    %116 = vector.broadcast %108 : vector<8x1xf32> to vector<8x32xf32>
    %117 = arith.subf %104, %116 : vector<8x32xf32>
    %cst_49 = arith.constant 9.99999974E-6 : f32
    %118 = vector.broadcast %cst_49 : f32 to vector<8x1xf32>
    %119 = arith.addf %115, %118 : vector<8x1xf32>
    %120 = math.rsqrt %119 : vector<8x1xf32>
    %121 = vector.broadcast %120 : vector<8x1xf32> to vector<8x32xf32>
    %122 = arith.mulf %117, %121 : vector<8x32xf32>
    %123 = vector.shape_cast %15 : vector<32xf32> to vector<1x32xf32>
    %124 = vector.broadcast %123 : vector<1x32xf32> to vector<8x32xf32>
    %125 = arith.mulf %122, %124 : vector<8x32xf32>
    %126 = vector.shape_cast %17 : vector<32xf32> to vector<1x32xf32>
    %127 = vector.broadcast %126 : vector<1x32xf32> to vector<8x32xf32>
    %128 = arith.addf %125, %127 : vector<8x32xf32>
    %c0_50 = arith.constant 0 : index
    %c0_51 = arith.constant 0 : index
    %c0_52 = arith.constant 0 : index
    %129 = vector.load %arg12[%c0_50, %c0_51, %c0_52] : memref<1x8x32xf32, #tpu.memory_space<vmem>>, vector<1x8x32xf32>
    %130 = vector.shape_cast %129 : vector<1x8x32xf32> to vector<8x32xf32>
    %131 = vector.shape_cast %128 : vector<8x32xf32> to vector<1x8x32xf32>
    tpu.vector_store %arg12[%c0_50, %c0_51, %c0_52], %131 {strides = array<i32>} : memref<1x8x32xf32, #tpu.memory_space<vmem>>, vector<1x8x32xf32>,
    return
  }
  func.func @transform_0(%arg0: i32, %arg1: i32) -> (i32, i32, i32) {
    %c0_i32 = arith.constant 0 : i32
    %c0_i32_0 = arith.constant 0 : i32
    return %arg0, %arg1, %c0_i32 : i32, i32, i32
  }
  func.func @transform_1(%arg0: i32, %arg1: i32) -> (i32, i32, i32) {
    %c0_i32 = arith.constant 0 : i32
    %c0_i32_0 = arith.constant 0 : i32
    %c0_i32_1 = arith.constant 0 : i32
    return %arg0, %c0_i32, %c0_i32_0 : i32, i32, i32
  }
  func.func @transform_2(%arg0: i32, %arg1: i32) -> (i32, i32) {
    %c0_i32 = arith.constant 0 : i32
    %c0_i32_0 = arith.constant 0 : i32
    %c0_i32_1 = arith.constant 0 : i32
    return %c0_i32, %c0_i32_0 : i32, i32
  }
  func.func @transform_3(%arg0: i32, %arg1: i32) -> (i32, i32) {
    %c0_i32 = arith.constant 0 : i32
    %c0_i32_0 = arith.constant 0 : i32
    %c0_i32_1 = arith.constant 0 : i32
    return %c0_i32, %c0_i32_0 : i32, i32
  }
  func.func @transform_4(%arg0: i32, %arg1: i32) -> (i32, i32) {
    %c0_i32 = arith.constant 0 : i32
    %c0_i32_0 = arith.constant 0 : i32
    %c0_i32_1 = arith.constant 0 : i32
    return %c0_i32, %c0_i32_0 : i32, i32
  }
  func.func @transform_5(%arg0: i32, %arg1: i32) -> (i32, i32, i32) {
    %c0_i32 = arith.constant 0 : i32
    %c0_i32_0 = arith.constant 0 : i32
    %c0_i32_1 = arith.constant 0 : i32
    %c0_i32_2 = arith.constant 0 : i32
    return %c0_i32, %c0_i32_0, %c0_i32_1 : i32, i32, i32
  }
  func.func @transform_6(%arg0: i32, %arg1: i32) -> (i32, i32) {
    %c0_i32 = arith.constant 0 : i32
    %c0_i32_0 = arith.constant 0 : i32
    %c0_i32_1 = arith.constant 0 : i32
    return %c0_i32, %c0_i32_0 : i32, i32
  }
  func.func @transform_7(%arg0: i32, %arg1: i32) -> (i32, i32) {
    %c0_i32 = arith.constant 0 : i32
    %c0_i32_0 = arith.constant 0 : i32
    %c0_i32_1 = arith.constant 0 : i32
    return %c0_i32, %c0_i32_0 : i32, i32
  }
  func.func @transform_8(%arg0: i32, %arg1: i32) -> (i32, i32) {
    %c0_i32 = arith.constant 0 : i32
    %c0_i32_0 = arith.constant 0 : i32
    %c0_i32_1 = arith.constant 0 : i32
    return %c0_i32, %c0_i32_0 : i32, i32
  }
  func.func @transform_9(%arg0: i32, %arg1: i32) -> (i32, i32) {
    %c0_i32 = arith.constant 0 : i32
    %c0_i32_0 = arith.constant 0 : i32
    %c0_i32_1 = arith.constant 0 : i32
    return %c0_i32, %c0_i32_0 : i32, i32
  }
  func.func @transform_10(%arg0: i32, %arg1: i32) -> (i32, i32, i32) {
    %c0_i32 = arith.constant 0 : i32
    %c0_i32_0 = arith.constant 0 : i32
    return %arg0, %arg1, %c0_i32 : i32, i32, i32
  }
}

module attributes {stable_mosaic.version = 11 : i64} {
  func.func @_encoder_layer_kernel(%arg0: i32, %arg1: i32, %arg2: memref<1x8x32xf32, #tpu.memory_space<vmem>>, %arg3: memref<1x8x32xbf16, #tpu.memory_space<vmem>>, %arg4: memref<32x32xbf16, #tpu.memory_space<vmem>>, %arg5: memref<32x32xbf16, #tpu.memory_space<vmem>>, %arg6: memref<32x32xbf16, #tpu.memory_space<vmem>>, %arg7: memref<4x8x32xbf16, #tpu.memory_space<vmem>>, %arg8: memref<32x64xbf16, #tpu.memory_space<vmem>>, %arg9: memref<64x32xbf16, #tpu.memory_space<vmem>>, %arg10: memref<9x32xf32, #tpu.memory_space<vmem>>, %arg11: memref<1x64xf32, #tpu.memory_space<vmem>>, %arg12: memref<1x8x32xf32, #tpu.memory_space<vmem>>, %arg13: memref<4x8x8xbf16, #tpu.memory_space<vmem>>, %arg14: memref<4x8x8xbf16, #tpu.memory_space<vmem>>) attributes {dimension_semantics = [#tpu.dimension_semantics<parallel>, #tpu.dimension_semantics<arbitrary>], iteration_bounds = array<i64: 2, 1>, scalar_prefetch = 0 : i64, scratch_operands = 2 : i64, tpu.core_type = #tpu.core_type<tc>, window_params = [{transform_indices = @transform_0, window_bounds = array<i64: 1, 8, 32>}, {transform_indices = @transform_1, window_bounds = array<i64: 1, 8, 32>}, {pipeline_mode = #tpu.pipeline_mode<synchronous>, transform_indices = @transform_2, window_bounds = array<i64: 32, 32>}, {pipeline_mode = #tpu.pipeline_mode<synchronous>, transform_indices = @transform_3, window_bounds = array<i64: 32, 32>}, {pipeline_mode = #tpu.pipeline_mode<synchronous>, transform_indices = @transform_4, window_bounds = array<i64: 32, 32>}, {pipeline_mode = #tpu.pipeline_mode<synchronous>, transform_indices = @transform_5, window_bounds = array<i64: 4, 8, 32>}, {pipeline_mode = #tpu.pipeline_mode<synchronous>, transform_indices = @transform_6, window_bounds = array<i64: 32, 64>}, {pipeline_mode = #tpu.pipeline_mode<synchronous>, transform_indices = @transform_7, window_bounds = array<i64: 64, 32>}, {pipeline_mode = #tpu.pipeline_mode<synchronous>, transform_indices = @transform_8, window_bounds = array<i64: 9, 32>}, {pipeline_mode = #tpu.pipeline_mode<synchronous>, transform_indices = @transform_9, window_bounds = array<i64: 1, 64>}, {transform_indices = @transform_10, window_bounds = array<i64: 1, 8, 32>}]} {
    %c0 = arith.constant 0 : index
    %c0_0 = arith.constant 0 : index
    %0 = vector.load %arg10[%c0, %c0_0] : memref<9x32xf32, #tpu.memory_space<vmem>>, vector<1x32xf32>
    %1 = vector.shape_cast %0 : vector<1x32xf32> to vector<32xf32>
    %c1 = arith.constant 1 : index
    %c0_1 = arith.constant 0 : index
    %2 = vector.load %arg10[%c1, %c0_1] : memref<9x32xf32, #tpu.memory_space<vmem>>, vector<1x32xf32>
    %3 = vector.shape_cast %2 : vector<1x32xf32> to vector<32xf32>
    %c2 = arith.constant 2 : index
    %c0_2 = arith.constant 0 : index
    %4 = vector.load %arg10[%c2, %c0_2] : memref<9x32xf32, #tpu.memory_space<vmem>>, vector<1x32xf32>
    %5 = vector.shape_cast %4 : vector<1x32xf32> to vector<32xf32>
    %c3 = arith.constant 3 : index
    %c0_3 = arith.constant 0 : index
    %6 = vector.load %arg10[%c3, %c0_3] : memref<9x32xf32, #tpu.memory_space<vmem>>, vector<1x32xf32>
    %7 = vector.shape_cast %6 : vector<1x32xf32> to vector<32xf32>
    %c4 = arith.constant 4 : index
    %c0_4 = arith.constant 0 : index
    %8 = vector.load %arg10[%c4, %c0_4] : memref<9x32xf32, #tpu.memory_space<vmem>>, vector<1x32xf32>
    %9 = vector.shape_cast %8 : vector<1x32xf32> to vector<32xf32>
    %c5 = arith.constant 5 : index
    %c0_5 = arith.constant 0 : index
    %10 = vector.load %arg10[%c5, %c0_5] : memref<9x32xf32, #tpu.memory_space<vmem>>, vector<1x32xf32>
    %11 = vector.shape_cast %10 : vector<1x32xf32> to vector<32xf32>
    %c6 = arith.constant 6 : index
    %c0_6 = arith.constant 0 : index
    %12 = vector.load %arg10[%c6, %c0_6] : memref<9x32xf32, #tpu.memory_space<vmem>>, vector<1x32xf32>
    %13 = vector.shape_cast %12 : vector<1x32xf32> to vector<32xf32>
    %c7 = arith.constant 7 : index
    %c0_7 = arith.constant 0 : index
    %14 = vector.load %arg10[%c7, %c0_7] : memref<9x32xf32, #tpu.memory_space<vmem>>, vector<1x32xf32>
    %15 = vector.shape_cast %14 : vector<1x32xf32> to vector<32xf32>
    %c8 = arith.constant 8 : index
    %c0_8 = arith.constant 0 : index
    %16 = vector.load %arg10[%c8, %c0_8] : memref<9x32xf32, #tpu.memory_space<vmem>>, vector<1x32xf32>
    %17 = vector.shape_cast %16 : vector<1x32xf32> to vector<32xf32>
    %c0_9 = arith.constant 0 : index
    %c0_10 = arith.constant 0 : index
    %18 = vector.load %arg11[%c0_9, %c0_10] : memref<1x64xf32, #tpu.memory_space<vmem>>, vector<1x64xf32>
    %19 = vector.shape_cast %18 : vector<1x64xf32> to vector<64xf32>
    %c0_i32 = arith.constant 0 : i32
    %20 = arith.cmpi eq, %arg1, %c0_i32 : i32
    %21 = arith.extui %20 : i1 to i32
    %c0_i32_11 = arith.constant 0 : i32
    %22 = arith.cmpi ne, %21, %c0_i32_11 : i32
    scf.if %22 {
      %c0_53 = arith.constant 0 : index
      %c0_54 = arith.constant 0 : index
      %c0_55 = arith.constant 0 : index
      %132 = vector.load %arg3[%c0_53, %c0_54, %c0_55] : memref<1x8x32xbf16, #tpu.memory_space<vmem>>, vector<1x8x32xbf16>
      %133 = vector.shape_cast %132 : vector<1x8x32xbf16> to vector<8x32xbf16>
      %c0_56 = arith.constant 0 : index
      %c0_57 = arith.constant 0 : index
      %134 = vector.load %arg5[%c0_56, %c0_57] : memref<32x32xbf16, #tpu.memory_space<vmem>>, vector<32x32xbf16>
      %cst_58 = arith.constant dense<0.000000e+00> : vector<8x32xf32>
      %135 = tpu.matmul %133, %134, %cst_58 {dimension_numbers = #tpu.dot_dimension_numbers<[1], [0], [0], [1], [0, 0, 1, 1], [], []>} : vector<8x32xbf16>, vector<32x32xbf16>, vector<8x32xf32> -> vector<8x32xf32>
      %136 = vector.shape_cast %3 : vector<32xf32> to vector<1x32xf32>
      %137 = vector.broadcast %136 : vector<1x32xf32> to vector<8x32xf32>
      %138 = arith.addf %135, %137 : vector<8x32xf32>
      %c0_59 = arith.constant 0 : index
      %c0_60 = arith.constant 0 : index
      %139 = vector.load %arg6[%c0_59, %c0_60] : memref<32x32xbf16, #tpu.memory_space<vmem>>, vector<32x32xbf16>
      %cst_61 = arith.constant dense<0.000000e+00> : vector<8x32xf32>
      %140 = tpu.matmul %133, %139, %cst_61 {dimension_numbers = #tpu.dot_dimension_numbers<[1], [0], [0], [1], [0, 0, 1, 1], [], []>} : vector<8x32xbf16>, vector<32x32xbf16>, vector<8x32xf32> -> vector<8x32xf32>
      %141 = vector.shape_cast %5 : vector<32xf32> to vector<1x32xf32>
      %142 = vector.broadcast %141 : vector<1x32xf32> to vector<8x32xf32>
      %143 = arith.addf %140, %142 : vector<8x32xf32>
      %144 = arith.truncf %138 : vector<8x32xf32> to vector<8x32xbf16>
      %145 = vector.extract_strided_slice %144 {offsets = [0, 0], sizes = [8, 8], strides = [1, 1]} : vector<8x32xbf16> to vector<8x8xbf16>
      %146 = vector.extract_strided_slice %144 {offsets = [0, 8], sizes = [8, 8], strides = [1, 1]} : vector<8x32xbf16> to vector<8x8xbf16>
      %147 = vector.extract_strided_slice %144 {offsets = [0, 16], sizes = [8, 8], strides = [1, 1]} : vector<8x32xbf16> to vector<8x8xbf16>
      %148 = vector.extract_strided_slice %144 {offsets = [0, 24], sizes = [8, 8], strides = [1, 1]} : vector<8x32xbf16> to vector<8x8xbf16>
      %149 = vector.shape_cast %145 : vector<8x8xbf16> to vector<1x8x8xbf16>
      %150 = vector.shape_cast %146 : vector<8x8xbf16> to vector<1x8x8xbf16>
      %151 = vector.shape_cast %147 : vector<8x8xbf16> to vector<1x8x8xbf16>
      %152 = vector.shape_cast %148 : vector<8x8xbf16> to vector<1x8x8xbf16>
      %153 = tpu.concatenate %149, %150, %151, %152 in 0 : vector<1x8x8xbf16>, vector<1x8x8xbf16>, vector<1x8x8xbf16>, vector<1x8x8xbf16> -> vector<4x8x8xbf16>
      %c0_62 = arith.constant 0 : index
      %c0_63 = arith.constant 0 : index
      %c0_64 = arith.constant 0 : index
      %154 = vector.load %arg13[%c0_62, %c0_63, %c0_64] : memref<4x8x8xbf16, #tpu.memory_space<vmem>>, vector<4x8x8xbf16>
      tpu.vector_store %arg13[%c0_62, %c0_63, %c0_64], %153 {strides = array<i32>} : memref<4x8x8xbf16, #tpu.memory_space<vmem>>, vector<4x8x8xbf16>,
      %155 = arith.truncf %143 : vector<8x32xf32> to vector<8x32xbf16>
      %156 = vector.extract_strided_slice %155 {offsets = [0, 0], sizes = [8, 8], strides = [1, 1]} : vector<8x32xbf16> to vector<8x8xbf16>
      %157 = vector.extract_strided_slice %155 {offsets = [0, 8], sizes = [8, 8], strides = [1, 1]} : vector<8x32xbf16> to vector<8x8xbf16>
      %158 = vector.extract_strided_slice %155 {offsets = [0, 16], sizes = [8, 8], strides = [1, 1]} : vector<8x32xbf16> to vector<8x8xbf16>
      %159 = vector.extract_strided_slice %155 {offsets = [0, 24], sizes = [8, 8], strides = [1, 1]} : vector<8x32xbf16> to vector<8x8xbf16>
      %160 = vector.shape_cast %156 : vector<8x8xbf16> to vector<1x8x8xbf16>
      %161 = vector.shape_cast %157 : vector<8x8xbf16> to vector<1x8x8xbf16>
      %162 = vector.shape_cast %158 : vector<8x8xbf16> to vector<1x8x8xbf16>
      %163 = vector.shape_cast %159 : vector<8x8xbf16> to vector<1x8x8xbf16>
      %164 = tpu.concatenate %160, %161, %162, %163 in 0 : vector<1x8x8xbf16>, vector<1x8x8xbf16>, vector<1x8x8xbf16>, vector<1x8x8xbf16> -> vector<4x8x8xbf16>
      %c0_65 = arith.constant 0 : index
      %c0_66 = arith.constant 0 : index
      %c0_67 = arith.constant 0 : index
      %165 = vector.load %arg14[%c0_65, %c0_66, %c0_67] : memref<4x8x8xbf16, #tpu.memory_space<vmem>>, vector<4x8x8xbf16>
      tpu.vector_store %arg14[%c0_65, %c0_66, %c0_67], %164 {strides = array<i32>} : memref<4x8x8xbf16, #tpu.memory_space<vmem>>, vector<4x8x8xbf16>,
    } else {
    }
    %c0_12 = arith.constant 0 : index
    %c0_13 = arith.constant 0 : index
    %c0_14 = arith.constant 0 : index
    %23 = vector.load %arg2[%c0_12, %c0_13, %c0_14] : memref<1x8x32xf32, #tpu.memory_space<vmem>>, vector<1x8x32xf32>
    %24 = vector.shape_cast %23 : vector<1x8x32xf32> to vector<8x32xf32>
    %25 = arith.truncf %24 : vector<8x32xf32> to vector<8x32xbf16>
    %c0_15 = arith.constant 0 : index
    %c0_16 = arith.constant 0 : index
    %26 = vector.load %arg4[%c0_15, %c0_16] : memref<32x32xbf16, #tpu.memory_space<vmem>>, vector<32x32xbf16>
    %cst = arith.constant dense<0.000000e+00> : vector<8x32xf32>
    %27 = tpu.matmul %25, %26, %cst {dimension_numbers = #tpu.dot_dimension_numbers<[1], [0], [0], [1], [0, 0, 1, 1], [], []>} : vector<8x32xbf16>, vector<32x32xbf16>, vector<8x32xf32> -> vector<8x32xf32>
    %28 = vector.shape_cast %1 : vector<32xf32> to vector<1x32xf32>
    %29 = vector.broadcast %28 : vector<1x32xf32> to vector<8x32xf32>
    %30 = arith.addf %27, %29 : vector<8x32xf32>
    %cst_17 = arith.constant 0.353553385 : f32
    %31 = vector.broadcast %cst_17 : f32 to vector<8x32xf32>
    %32 = arith.mulf %30, %31 : vector<8x32xf32>
    %33 = arith.truncf %32 : vector<8x32xf32> to vector<8x32xbf16>
    %34 = vector.extract_strided_slice %33 {offsets = [0, 0], sizes = [8, 8], strides = [1, 1]} : vector<8x32xbf16> to vector<8x8xbf16>
    %35 = vector.extract_strided_slice %33 {offsets = [0, 8], sizes = [8, 8], strides = [1, 1]} : vector<8x32xbf16> to vector<8x8xbf16>
    %36 = vector.extract_strided_slice %33 {offsets = [0, 16], sizes = [8, 8], strides = [1, 1]} : vector<8x32xbf16> to vector<8x8xbf16>
    %37 = vector.extract_strided_slice %33 {offsets = [0, 24], sizes = [8, 8], strides = [1, 1]} : vector<8x32xbf16> to vector<8x8xbf16>
    %38 = vector.shape_cast %34 : vector<8x8xbf16> to vector<1x8x8xbf16>
    %39 = vector.shape_cast %35 : vector<8x8xbf16> to vector<1x8x8xbf16>
    %40 = vector.shape_cast %36 : vector<8x8xbf16> to vector<1x8x8xbf16>
    %41 = vector.shape_cast %37 : vector<8x8xbf16> to vector<1x8x8xbf16>
    %42 = tpu.concatenate %38, %39, %40, %41 in 0 : vector<1x8x8xbf16>, vector<1x8x8xbf16>, vector<1x8x8xbf16>, vector<1x8x8xbf16> -> vector<4x8x8xbf16>
    %c0_18 = arith.constant 0 : index
    %c0_19 = arith.constant 0 : index
    %c0_20 = arith.constant 0 : index
    %43 = vector.load %arg13[%c0_18, %c0_19, %c0_20] : memref<4x8x8xbf16, #tpu.memory_space<vmem>>, vector<4x8x8xbf16>
    "tpu.trace_start"() <{level = 10 : i32, message = "hqd,hkd->hqk"}> : () -> ()
    %cst_21 = arith.constant dense<0.000000e+00> : vector<4x8x8xf32>
    %44 = tpu.matmul %42, %43, %cst_21 {dimension_numbers = #tpu.dot_dimension_numbers<[2], [2], [1], [1], [0, 0, 0, 1, 1, 1], [0], [0]>} : vector<4x8x8xbf16>, vector<4x8x8xbf16>, vector<4x8x8xf32> -> vector<4x8x8xf32>
    "tpu.trace_stop"() : () -> ()
    %cst_22 = arith.constant dense<0xFF800000> : vector<4x8xf32>
    %45 = vector.multi_reduction <maximumf>, %44, %cst_22 [2] : vector<4x8x8xf32> to vector<4x8xf32>
    %46 = vector.shape_cast %45 : vector<4x8xf32> to vector<4x8x1xf32>
    %47 = vector.broadcast %46 : vector<4x8x1xf32> to vector<4x8x8xf32>
    %48 = arith.subf %44, %47 : vector<4x8x8xf32>
    %49 = arith.truncf %48 : vector<4x8x8xf32> to vector<4x8x8xbf16>
    %50 = math.exp %49 : vector<4x8x8xbf16>
    %51 = arith.extf %50 : vector<4x8x8xbf16> to vector<4x8x8xf32>
    %cst_23 = arith.constant dense<0.000000e+00> : vector<4x8xf32>
    %52 = vector.multi_reduction <add>, %51, %cst_23 [2] : vector<4x8x8xf32> to vector<4x8xf32>
    %53 = vector.shape_cast %52 : vector<4x8xf32> to vector<4x8x1xf32>
    %c0_24 = arith.constant 0 : index
    %c0_25 = arith.constant 0 : index
    %c0_26 = arith.constant 0 : index
    %54 = vector.load %arg14[%c0_24, %c0_25, %c0_26] : memref<4x8x8xbf16, #tpu.memory_space<vmem>>, vector<4x8x8xbf16>
    "tpu.trace_start"() <{level = 10 : i32, message = "hqk,hkd->hqd"}> : () -> ()
    %cst_27 = arith.constant dense<0.000000e+00> : vector<4x8x8xf32>
    %55 = tpu.matmul %50, %54, %cst_27 {dimension_numbers = #tpu.dot_dimension_numbers<[2], [1], [1], [2], [0, 0, 0, 1, 1, 2], [0], [0]>} : vector<4x8x8xbf16>, vector<4x8x8xbf16>, vector<4x8x8xf32> -> vector<4x8x8xf32>
    "tpu.trace_stop"() : () -> ()
    %56 = vector.broadcast %53 : vector<4x8x1xf32> to vector<4x8x8xf32>
    %57 = arith.divf %55, %56 : vector<4x8x8xf32>
    %58 = arith.truncf %57 : vector<4x8x8xf32> to vector<4x8x8xbf16>
    %c0_28 = arith.constant 0 : index
    %c0_29 = arith.constant 0 : index
    %c0_30 = arith.constant 0 : index
    %59 = vector.load %arg7[%c0_28, %c0_29, %c0_30] : memref<4x8x32xbf16, #tpu.memory_space<vmem>>, vector<4x8x32xbf16>
    "tpu.trace_start"() <{level = 10 : i32, message = "hqd,hde->hqe"}> : () -> ()
    %cst_31 = arith.constant dense<0.000000e+00> : vector<4x8x32xf32>
    %60 = tpu.matmul %58, %59, %cst_31 {dimension_numbers = #tpu.dot_dimension_numbers<[2], [1], [1], [2], [0, 0, 0, 1, 1, 2], [0], [0]>} : vector<4x8x8xbf16>, vector<4x8x32xbf16>, vector<4x8x32xf32> -> vector<4x8x32xf32>
    "tpu.trace_stop"() : () -> ()
    %cst_32 = arith.constant dense<0.000000e+00> : vector<8x32xf32>
    %61 = vector.multi_reduction <add>, %60, %cst_32 [0] : vector<4x8x32xf32> to vector<8x32xf32>
    %62 = vector.shape_cast %7 : vector<32xf32> to vector<1x32xf32>
    %63 = vector.broadcast %62 : vector<1x32xf32> to vector<8x32xf32>
    %64 = arith.addf %61, %63 : vector<8x32xf32>
    %65 = arith.addf %24, %64 : vector<8x32xf32>
    %cst_33 = arith.constant dense<0.000000e+00> : vector<8xf32>
    %66 = vector.multi_reduction <add>, %65, %cst_33 [1] : vector<8x32xf32> to vector<8xf32>
    %67 = vector.shape_cast %66 : vector<8xf32> to vector<8x1xf32>
    %cst_34 = arith.constant 3.200000e+01 : f32
    %68 = vector.broadcast %cst_34 : f32 to vector<8x1xf32>
    %69 = arith.divf %67, %68 : vector<8x1xf32>
    %70 = vector.broadcast %69 : vector<8x1xf32> to vector<8x32xf32>
    %71 = arith.subf %65, %70 : vector<8x32xf32>
    %72 = arith.mulf %71, %71 : vector<8x32xf32>
    %cst_35 = arith.constant dense<0.000000e+00> : vector<8xf32>
    %73 = vector.multi_reduction <add>, %72, %cst_35 [1] : vector<8x32xf32> to vector<8xf32>
    %74 = vector.shape_cast %73 : vector<8xf32> to vector<8x1xf32>
    %cst_36 = arith.constant 3.200000e+01 : f32
    %75 = vector.broadcast %cst_36 : f32 to vector<8x1xf32>
    %76 = arith.divf %74, %75 : vector<8x1xf32>
    %77 = vector.broadcast %69 : vector<8x1xf32> to vector<8x32xf32>
    %78 = arith.subf %65, %77 : vector<8x32xf32>
    %cst_37 = arith.constant 9.99999974E-6 : f32
    %79 = vector.broadcast %cst_37 : f32 to vector<8x1xf32>
    %80 = arith.addf %76, %79 : vector<8x1xf32>
    %81 = math.rsqrt %80 : vector<8x1xf32>
    %82 = vector.broadcast %81 : vector<8x1xf32> to vector<8x32xf32>
    %83 = arith.mulf %78, %82 : vector<8x32xf32>
    %84 = vector.shape_cast %11 : vector<32xf32> to vector<1x32xf32>
    %85 = vector.broadcast %84 : vector<1x32xf32> to vector<8x32xf32>
    %86 = arith.mulf %83, %85 : vector<8x32xf32>
    %87 = vector.shape_cast %13 : vector<32xf32> to vector<1x32xf32>
    %88 = vector.broadcast %87 : vector<1x32xf32> to vector<8x32xf32>
    %89 = arith.addf %86, %88 : vector<8x32xf32>
    %90 = arith.truncf %89 : vector<8x32xf32> to vector<8x32xbf16>
    %c0_38 = arith.constant 0 : index
    %c0_39 = arith.constant 0 : index
    %91 = vector.load %arg8[%c0_38, %c0_39] : memref<32x64xbf16, #tpu.memory_space<vmem>>, vector<32x64xbf16>
    %cst_40 = arith.constant dense<0.000000e+00> : vector<8x64xf32>
    %92 = tpu.matmul %90, %91, %cst_40 {dimension_numbers = #tpu.dot_dimension_numbers<[1], [0], [0], [1], [0, 0, 1, 1], [], []>} : vector<8x32xbf16>, vector<32x64xbf16>, vector<8x64xf32> -> vector<8x64xf32>
    %93 = vector.shape_cast %19 : vector<64xf32> to vector<1x64xf32>
    %94 = vector.broadcast %93 : vector<1x64xf32> to vector<8x64xf32>
    %95 = arith.addf %92, %94 : vector<8x64xf32>
    %cst_41 = arith.constant 0.000000e+00 : f32
    %96 = vector.broadcast %cst_41 : f32 to vector<8x64xf32>
    %97 = arith.maximumf %95, %96 : vector<8x64xf32>
    %98 = arith.truncf %97 : vector<8x64xf32> to vector<8x64xbf16>
    %c0_42 = arith.constant 0 : index
    %c0_43 = arith.constant 0 : index
    %99 = vector.load %arg9[%c0_42, %c0_43] : memref<64x32xbf16, #tpu.memory_space<vmem>>, vector<64x32xbf16>
    %cst_44 = arith.constant dense<0.000000e+00> : vector<8x32xf32>
    %100 = tpu.matmul %98, %99, %cst_44 {dimension_numbers = #tpu.dot_dimension_numbers<[1], [0], [0], [1], [0, 0, 1, 1], [], []>} : vector<8x64xbf16>, vector<64x32xbf16>, vector<8x32xf32> -> vector<8x32xf32>
    %101 = vector.shape_cast %9 : vector<32xf32> to vector<1x32xf32>
    %102 = vector.broadcast %101 : vector<1x32xf32> to vector<8x32xf32>
    %103 = arith.addf %100, %102 : vector<8x32xf32>
    %104 = arith.addf %89, %103 : vector<8x32xf32>
    %cst_45 = arith.constant dense<0.000000e+00> : vector<8xf32>
    %105 = vector.multi_reduction <add>, %104, %cst_45 [1] : vector<8x32xf32> to vector<8xf32>
    %106 = vector.shape_cast %105 : vector<8xf32> to vector<8x1xf32>
    %cst_46 = arith.constant 3.200000e+01 : f32
    %107 = vector.broadcast %cst_46 : f32 to vector<8x1xf32>
    %108 = arith.divf %106, %107 : vector<8x1xf32>
    %109 = vector.broadcast %108 : vector<8x1xf32> to vector<8x32xf32>
    %110 = arith.subf %104, %109 : vector<8x32xf32>
    %111 = arith.mulf %110, %110 : vector<8x32xf32>
    %cst_47 = arith.constant dense<0.000000e+00> : vector<8xf32>
    %112 = vector.multi_reduction <add>, %111, %cst_47 [1] : vector<8x32xf32> to vector<8xf32>
    %113 = vector.shape_cast %112 : vector<8xf32> to vector<8x1xf32>
    %cst_48 = arith.constant 3.200000e+01 : f32
    %114 = vector.broadcast %cst_48 : f32 to vector<8x1xf32>
    %115 = arith.divf %113, %114 : vector<8x1xf32>
    %116 = vector.broadcast %108 : vector<8x1xf32> to vector<8x32xf32>
    %117 = arith.subf %104, %116 : vector<8x32xf32>
    %cst_49 = arith.constant 9.99999974E-6 : f32
    %118 = vector.broadcast %cst_49 : f32 to vector<8x1xf32>
    %119 = arith.addf %115, %118 : vector<8x1xf32>
    %120 = math.rsqrt %119 : vector<8x1xf32>
    %121 = vector.broadcast %120 : vector<8x1xf32> to vector<8x32xf32>
    %122 = arith.mulf %117, %121 : vector<8x32xf32>
    %123 = vector.shape_cast %15 : vector<32xf32> to vector<1x32xf32>
    %124 = vector.broadcast %123 : vector<1x32xf32> to vector<8x32xf32>
    %125 = arith.mulf %122, %124 : vector<8x32xf32>
    %126 = vector.shape_cast %17 : vector<32xf32> to vector<1x32xf32>
    %127 = vector.broadcast %126 : vector<1x32xf32> to vector<8x32xf32>
    %128 = arith.addf %125, %127 : vector<8x32xf32>
    %c0_50 = arith.constant 0 : index
    %c0_51 = arith.constant 0 : index
    %c0_52 = arith.constant 0 : index
    %129 = vector.load %arg12[%c0_50, %c0_51, %c0_52] : memref<1x8x32xf32, #tpu.memory_space<vmem>>, vector<1x8x32xf32>
    %130 = vector.shape_cast %129 : vector<1x8x32xf32> to vector<8x32xf32>
    %131 = vector.shape_cast %128 : vector<8x32xf32> to vector<1x8x32xf32>
    tpu.vector_store %arg12[%c0_50, %c0_51, %c0_52], %131 {strides = array<i32>} : memref<1x8x32xf32, #tpu.memory_space<vmem>>, vector<1x8x32xf32>,
    return
  }
  func.func @transform_0(%arg0: i32, %arg1: i32) -> (i32, i32, i32) {
    %c0_i32 = arith.constant 0 : i32
    %c0_i32_0 = arith.constant 0 : i32
    return %arg0, %arg1, %c0_i32 : i32, i32, i32
  }
  func.func @transform_1(%arg0: i32, %arg1: i32) -> (i32, i32, i32) {
    %c0_i32 = arith.constant 0 : i32
    %c0_i32_0 = arith.constant 0 : i32
    %c0_i32_1 = arith.constant 0 : i32
    return %arg0, %c0_i32, %c0_i32_0 : i32, i32, i32
  }
  func.func @transform_2(%arg0: i32, %arg1: i32) -> (i32, i32) {
    %c0_i32 = arith.constant 0 : i32
    %c0_i32_0 = arith.constant 0 : i32
    %c0_i32_1 = arith.constant 0 : i32
    return %c0_i32, %c0_i32_0 : i32, i32
  }
  func.func @transform_3(%arg0: i32, %arg1: i32) -> (i32, i32) {
    %c0_i32 = arith.constant 0 : i32
    %c0_i32_0 = arith.constant 0 : i32
    %c0_i32_1 = arith.constant 0 : i32
    return %c0_i32, %c0_i32_0 : i32, i32
  }
  func.func @transform_4(%arg0: i32, %arg1: i32) -> (i32, i32) {
    %c0_i32 = arith.constant 0 : i32
    %c0_i32_0 = arith.constant 0 : i32
    %c0_i32_1 = arith.constant 0 : i32
    return %c0_i32, %c0_i32_0 : i32, i32
  }
  func.func @transform_5(%arg0: i32, %arg1: i32) -> (i32, i32, i32) {
    %c0_i32 = arith.constant 0 : i32
    %c0_i32_0 = arith.constant 0 : i32
    %c0_i32_1 = arith.constant 0 : i32
    %c0_i32_2 = arith.constant 0 : i32
    return %c0_i32, %c0_i32_0, %c0_i32_1 : i32, i32, i32
  }
  func.func @transform_6(%arg0: i32, %arg1: i32) -> (i32, i32) {
    %c0_i32 = arith.constant 0 : i32
    %c0_i32_0 = arith.constant 0 : i32
    %c0_i32_1 = arith.constant 0 : i32
    return %c0_i32, %c0_i32_0 : i32, i32
  }
  func.func @transform_7(%arg0: i32, %arg1: i32) -> (i32, i32) {
    %c0_i32 = arith.constant 0 : i32
    %c0_i32_0 = arith.constant 0 : i32
    %c0_i32_1 = arith.constant 0 : i32
    return %c0_i32, %c0_i32_0 : i32, i32
  }
  func.func @transform_8(%arg0: i32, %arg1: i32) -> (i32, i32) {
    %c0_i32 = arith.constant 0 : i32
    %c0_i32_0 = arith.constant 0 : i32
    %c0_i32_1 = arith.constant 0 : i32
    return %c0_i32, %c0_i32_0 : i32, i32
  }
  func.func @transform_9(%arg0: i32, %arg1: i32) -> (i32, i32) {
    %c0_i32 = arith.constant 0 : i32
    %c0_i32_0 = arith.constant 0 : i32
    %c0_i32_1 = arith.constant 0 : i32
    return %c0_i32, %c0_i32_0 : i32, i32
  }
  func.func @transform_10(%arg0: i32, %arg1: i32) -> (i32, i32, i32) {
    %c0_i32 = arith.constant 0 : i32
    %c0_i32_0 = arith.constant 0 : i32
    return %arg0, %arg1, %c0_i32 : i32, i32, i32
  }
}

</mosaic_0001>

<llo_original>
// kernel: tpu_custom_call.1
$region0: #{tpu_custom_call.1}
  #allocation0 [shape = 'u32[]', space=smem, size = 0x4, offset = 0x4, fixed_abs, tag = 'smem constant byte address 0x4 - core index']
  #allocation1 [shape = 'u32[144,128]{1,0:T(1,128)}', space=vmem, size = 0x12000, scoped, tag = 'internal scratch']
  #allocation2 [shape = 'bf16[4,8,8]{2,1,0:T(8,128)(2,1)}', space=vmem, size = 0x2000, scoped, tag = 'scratch operand']
  #allocation3 [shape = 'bf16[4,8,8]{2,1,0:T(8,128)(2,1)}', space=vmem, size = 0x2000, scoped, tag = 'scratch operand']
  %s0 = inlined_call_operand.vmem [shape: f32[2,8,32], index: 0, kind: input, shape index: {}]
  %s1 = inlined_call_operand.hbm [shape: bf16[2,8,32], index: 1, kind: input, shape index: {}]
  %s2 = inlined_call_operand.vmem [shape: bf16[32,32], index: 2, kind: input, shape index: {}]
  %s3 = inlined_call_operand.vmem [shape: bf16[32,32], index: 3, kind: input, shape index: {}]
  %s4 = inlined_call_operand.hbm [shape: bf16[32,32], index: 4, kind: input, shape index: {}]
  %s5 = inlined_call_operand.hbm [shape: bf16[4,8,32], index: 5, kind: input, shape index: {}]
  %s6 = inlined_call_operand.hbm [shape: bf16[32,64], index: 6, kind: input, shape index: {}]
  %s7 = inlined_call_operand.vmem [shape: bf16[64,32], index: 7, kind: input, shape index: {}]
  %s8 = inlined_call_operand.hbm [shape: f32[9,32], index: 8, kind: input, shape index: {}]
  %s9 = inlined_call_operand.vmem [shape: f32[1,64], index: 9, kind: input, shape index: {}]
  %s10 = inlined_call_operand.hbm [shape: f32[2,8,32], index: 10, kind: output, shape index: {}]
  %s11 = sld [smem:[#allocation0]]
  $region97: #{tpu_custom_call.1} parent=0
    _
  %s13 = ssub.s32 1, %s11
  %s14 = scalar_select 0, %s13, %s11
  $region1: #{tpu_custom_call.1} parent=0
    #allocation4 [shape = 'u8[4096]{0}', space=vmem, size = 0x1000, scoped, tag = 'input window, operand 1']
    #allocation5 [shape = 's32[2]{0}', space=sflag, size = 0x8, scoped, tag = 'scoped memory for tpu_custom_call.1']
    #allocation6 [shape = 's32[2]{0}', space=sflag, size = 0x8, scoped, tag = 'scoped memory for tpu_custom_call.1']
    #allocation7 [shape = 'u8[8192]{0}', space=vmem, size = 0x2000, scoped, tag = 'input window, operand 4, single buffered']
    #allocation8 [shape = 's32[1]{0}', space=sflag, size = 0x4, scoped, tag = 'scoped memory for tpu_custom_call.1']
    #allocation9 [shape = 'u8[8192]{0}', space=vmem, size = 0x2000, scoped, tag = 'input window, operand 5, single buffered']
    #allocation10 [shape = 'u8[8192]{0}', space=vmem, size = 0x2000, scoped, tag = 'input window, operand 6, single buffered']
    #allocation11 [shape = 's32[1]{0}', space=sflag, size = 0x4, scoped, tag = 'scoped memory for tpu_custom_call.1']
    #allocation12 [shape = 'u8[8192]{0}', space=vmem, size = 0x2000, scoped, tag = 'input window, operand 8, single buffered']
    #allocation13 [shape = 'u8[8192]{0}', space=vmem, size = 0x2000, scoped, tag = 'output window, operand 0']
    %15 = vsyncpa [#allocation5], 0
    %s16 = scalar_lea.sflag [#allocation5], 1
    %17 = vsyncpa %s16, 0
    %18 = vsyncpa [#allocation8], 0
    %19 = vsyncpa [#allocation11], 0
    %20 = vsyncpa [#allocation6], 0
    %s21 = scalar_lea.sflag [#allocation6], 1
    %22 = vsyncpa %s21, 0
    loop: start=0, step=1, limit=4
    $region2: #{tpu_custom_call.1} parent=1 // loop_pre_header
      _
    $region3: #{tpu_custom_call.1} parent=1 // loop_header
      %s24 = sphi 0, %s28
      %p25 = scmp.ge.s32.totalorder %s24, 4
      %s31 = sphi 0, %s43
      %s32 = sphi 0, %s39
      %s33 = sphi 0, %s31
      %s34 = sphi 0, %s32
      %s35 = sphi 0, %s33
      %s36 = sphi 0, %s34
      %s48 = sphi 0, %s50
      %s51 = sphi 0, %s48
      %s52 = sphi 0, %s51
      %s68 = sphi 0, %s52
      %s74 = sphi 0, %s76
      %s77 = sphi 0, %s74
      %s78 = sphi 0, %s77
      %s94 = sphi 0, %s78
      %s98 = sphi 0, %s98
      %s100 = sphi 0, %s98
      %s101 = sphi 0, %s100
      %s115 = sphi 0, %s101
      %s119 = sphi 0, %s119
      %s121 = sphi 0, %s119
      %s122 = sphi 0, %s121
      %s136 = sphi 0, %s122
      %s140 = sphi 0, %s140
      %s142 = sphi 0, %s140
      %s143 = sphi 0, %s142
      %s157 = sphi 0, %s143
      %s161 = sphi 0, %s161
      %s163 = sphi 0, %s161
      %s164 = sphi 0, %s163
      %s178 = sphi 0, %s164
      %s182 = sphi 0, %s182
      %s184 = sphi 0, %s182
      %s185 = sphi 0, %s184
      %s199 = sphi 0, %s185
      %s203 = sphi 0, %s203
      %s205 = sphi 0, %s203
      %s206 = sphi 0, %s205
      %s220 = sphi 0, %s206
      %s224 = sphi 0, %s224
      %s226 = sphi 0, %s224
      %s227 = sphi 0, %s226
      %s241 = sphi 0, %s227
      %s245 = sphi 0, %s245
      %s247 = sphi 0, %s245
      %s248 = sphi 0, %s247
      %s262 = sphi 0, %s248
      %s270 = sphi 0, %s272
      %s273 = sphi 0, %s270
      %s274 = sphi 0, %s273
      %s290 = sphi 0, %s274
    $region4: #{tpu_custom_call.1} parent=1 // loop_header_branch
      %27 = sbr.rel (%p25) target = $region8
    $region5: #{tpu_custom_call.1} parent=1 // loop_body
      %s29 = ssub.s32 %s24, 1
      %s30 = ssub.s32 %s24, 2
      %s37 = sadd.s32 1, %s32
      %p38 = scmp.ge.s32.totalorder %s37, 1
      %s39 = scalar_select %p38, 0, %s37
      %s40 = sadd.s32 1, %s31
      %s41 = scalar_select %p38, %s40, %s31
      %p42 = scmp.ge.s32.totalorder %s41, 2
      %s43 = scalar_select %p42, 0, %s41
      %s44 = ssub.s32 %s31, %s43
      %s45 = ssub.s32 %s32, %s39
      %s46 = sor.u32 %s44, %s45
      %p47 = scmp.eq.s32.totalorder %s46, 0
      %s49 = sadd.s32 %s48, 1
      %s50 = scalar_select %p47, %s48, %s49
      %p53 = pneg %p47
      %p54 = scmp.eq.s32.totalorder %s24, 1
      %p55 = por %p53, %p54
      %p56 = scmp.ne.s32.totalorder %s48, %s51
      %p57 = scmp.eq.s32.totalorder %s24, 0
      %p58 = por %p56, %p57
      %p59 = scmp.ne.s32.totalorder %s48, %s51
      %p60 = scmp.eq.s32.totalorder %s29, 1
      %p61 = por %p59, %p60
      %p62 = scmp.ne.s32.totalorder %s51, %s52
      %p63 = scmp.eq.s32.totalorder %s29, 0
      %p64 = por %p62, %p63
      %p65 = scmp.ne.s32.totalorder %s51, %s52
      %p66 = scmp.eq.s32.totalorder %s30, 1
      %p67 = por %p65, %p66
      %p69 = scmp.ne.s32.totalorder %s52, %s68
      %p70 = scmp.eq.s32.totalorder %s30, 0
      %p71 = por %p69, %p70
      %s72 = ssub.s32 %s31, %s43
      %p73 = scmp.eq.s32.totalorder %s72, 0
      %s75 = sadd.s32 %s74, 1
      %s76 = scalar_select %p73, %s74, %s75
      %p79 = pneg %p73
      %p80 = scmp.eq.s32.totalorder %s24, 1
      %p81 = por %p79, %p80
      %p82 = scmp.ne.s32.totalorder %s74, %s77
      %p83 = scmp.eq.s32.totalorder %s24, 0
      %p84 = por %p82, %p83
      %p85 = scmp.ne.s32.totalorder %s74, %s77
      %p86 = scmp.eq.s32.totalorder %s29, 1
      %p87 = por %p85, %p86
      %p88 = scmp.ne.s32.totalorder %s77, %s78
      %p89 = scmp.eq.s32.totalorder %s29, 0
      %p90 = por %p88, %p89
      %p91 = scmp.ne.s32.totalorder %s77, %s78
      %p92 = scmp.eq.s32.totalorder %s30, 1
      %p93 = por %p91, %p92
      %p95 = scmp.ne.s32.totalorder %s78, %s94
      %p96 = scmp.eq.s32.totalorder %s30, 0
      %p97 = por %p95, %p96
      %s99 = sadd.s32 %s98, 1
      %p102 = scmp.eq.s32.totalorder %s24, 1
      %p103 = scmp.ne.s32.totalorder %s98, %s100
      %p104 = scmp.eq.s32.totalorder %s24, 0
      %p105 = por %p103, %p104
      %p106 = scmp.ne.s32.totalorder %s98, %s100
      %p107 = scmp.eq.s32.totalorder %s29, 1
      %p108 = por %p106, %p107
      %p109 = scmp.ne.s32.totalorder %s100, %s101
      %p110 = scmp.eq.s32.totalorder %s29, 0
      %p111 = por %p109, %p110
      %p112 = scmp.ne.s32.totalorder %s100, %s101
      %p113 = scmp.eq.s32.totalorder %s30, 1
      %p114 = por %p112, %p113
      %p116 = scmp.ne.s32.totalorder %s101, %s115
      %p117 = scmp.eq.s32.totalorder %s30, 0
      %p118 = por %p116, %p117
      %s120 = sadd.s32 %s119, 1
      %p123 = scmp.eq.s32.totalorder %s24, 1
      %p124 = scmp.ne.s32.totalorder %s119, %s121
      %p125 = scmp.eq.s32.totalorder %s24, 0
      %p126 = por %p124, %p125
      %p127 = scmp.ne.s32.totalorder %s119, %s121
      %p128 = scmp.eq.s32.totalorder %s29, 1
      %p129 = por %p127, %p128
      %p130 = scmp.ne.s32.totalorder %s121, %s122
      %p131 = scmp.eq.s32.totalorder %s29, 0
      %p132 = por %p130, %p131
      %p133 = scmp.ne.s32.totalorder %s121, %s122
      %p134 = scmp.eq.s32.totalorder %s30, 1
      %p135 = por %p133, %p134
      %p137 = scmp.ne.s32.totalorder %s122, %s136
      %p138 = scmp.eq.s32.totalorder %s30, 0
      %p139 = por %p137, %p138
      %s141 = sadd.s32 %s140, 1
      %p144 = scmp.eq.s32.totalorder %s24, 1
      %p145 = scmp.ne.s32.totalorder %s140, %s142
      %p146 = scmp.eq.s32.totalorder %s24, 0
      %p147 = por %p145, %p146
      %p148 = scmp.ne.s32.totalorder %s140, %s142
      %p149 = scmp.eq.s32.totalorder %s29, 1
      %p150 = por %p148, %p149
      %p151 = scmp.ne.s32.totalorder %s142, %s143
      %p152 = scmp.eq.s32.totalorder %s29, 0
      %p153 = por %p151, %p152
      %p154 = scmp.ne.s32.totalorder %s142, %s143
      %p155 = scmp.eq.s32.totalorder %s30, 1
      %p156 = por %p154, %p155
      %p158 = scmp.ne.s32.totalorder %s143, %s157
      %p159 = scmp.eq.s32.totalorder %s30, 0
      %p160 = por %p158, %p159
      %s162 = sadd.s32 %s161, 1
      %p165 = scmp.eq.s32.totalorder %s24, 1
      %p166 = scmp.ne.s32.totalorder %s161, %s163
      %p167 = scmp.eq.s32.totalorder %s24, 0
      %p168 = por %p166, %p167
      %p169 = scmp.ne.s32.totalorder %s161, %s163
      %p170 = scmp.eq.s32.totalorder %s29, 1
      %p171 = por %p169, %p170
      %p172 = scmp.ne.s32.totalorder %s163, %s164
      %p173 = scmp.eq.s32.totalorder %s29, 0
      %p174 = por %p172, %p173
      %p175 = scmp.ne.s32.totalorder %s163, %s164
      %p176 = scmp.eq.s32.totalorder %s30, 1
      %p177 = por %p175, %p176
      %p179 = scmp.ne.s32.totalorder %s164, %s178
      %p180 = scmp.eq.s32.totalorder %s30, 0
      %p181 = por %p179, %p180
      %s183 = sadd.s32 %s182, 1
      %p186 = scmp.eq.s32.totalorder %s24, 1
      %p187 = scmp.ne.s32.totalorder %s182, %s184
      %p188 = scmp.eq.s32.totalorder %s24, 0
      %p189 = por %p187, %p188
      %p190 = scmp.ne.s32.totalorder %s182, %s184
      %p191 = scmp.eq.s32.totalorder %s29, 1
      %p192 = por %p190, %p191
      %p193 = scmp.ne.s32.totalorder %s184, %s185
      %p194 = scmp.eq.s32.totalorder %s29, 0
      %p195 = por %p193, %p194
      %p196 = scmp.ne.s32.totalorder %s184, %s185
      %p197 = scmp.eq.s32.totalorder %s30, 1
      %p198 = por %p196, %p197
      %p200 = scmp.ne.s32.totalorder %s185, %s199
      %p201 = scmp.eq.s32.totalorder %s30, 0
      %p202 = por %p200, %p201
      %s204 = sadd.s32 %s203, 1
      %p207 = scmp.eq.s32.totalorder %s24, 1
      %p208 = scmp.ne.s32.totalorder %s203, %s205
      %p209 = scmp.eq.s32.totalorder %s24, 0
      %p210 = por %p208, %p209
      %p211 = scmp.ne.s32.totalorder %s203, %s205
      %p212 = scmp.eq.s32.totalorder %s29, 1
      %p213 = por %p211, %p212
      %p214 = scmp.ne.s32.totalorder %s205, %s206
      %p215 = scmp.eq.s32.totalorder %s29, 0
      %p216 = por %p214, %p215
      %p217 = scmp.ne.s32.totalorder %s205, %s206
      %p218 = scmp.eq.s32.totalorder %s30, 1
      %p219 = por %p217, %p218
      %p221 = scmp.ne.s32.totalorder %s206, %s220
      %p222 = scmp.eq.s32.totalorder %s30, 0
      %p223 = por %p221, %p222
      %s225 = sadd.s32 %s224, 1
      %p228 = scmp.eq.s32.totalorder %s24, 1
      %p229 = scmp.ne.s32.totalorder %s224, %s226
      %p230 = scmp.eq.s32.totalorder %s24, 0
      %p231 = por %p229, %p230
      %p232 = scmp.ne.s32.totalorder %s224, %s226
      %p233 = scmp.eq.s32.totalorder %s29, 1
      %p234 = por %p232, %p233
      %p235 = scmp.ne.s32.totalorder %s226, %s227
      %p236 = scmp.eq.s32.totalorder %s29, 0
      %p237 = por %p235, %p236
      %p238 = scmp.ne.s32.totalorder %s226, %s227
      %p239 = scmp.eq.s32.totalorder %s30, 1
      %p240 = por %p238, %p239
      %p242 = scmp.ne.s32.totalorder %s227, %s241
      %p243 = scmp.eq.s32.totalorder %s30, 0
      %p244 = por %p242, %p243
      %s246 = sadd.s32 %s245, 1
      %p249 = scmp.eq.s32.totalorder %s24, 1
      %p250 = scmp.ne.s32.totalorder %s245, %s247
      %p251 = scmp.eq.s32.totalorder %s24, 0
      %p252 = por %p250, %p251
      %p253 = scmp.ne.s32.totalorder %s245, %s247
      %p254 = scmp.eq.s32.totalorder %s29, 1
      %p255 = por %p253, %p254
      %p256 = scmp.ne.s32.totalorder %s247, %s248
      %p257 = scmp.eq.s32.totalorder %s29, 0
      %p258 = por %p256, %p257
      %p259 = scmp.ne.s32.totalorder %s247, %s248
      %p260 = scmp.eq.s32.totalorder %s30, 1
      %p261 = por %p259, %p260
      %p263 = scmp.ne.s32.totalorder %s248, %s262
      %p264 = scmp.eq.s32.totalorder %s30, 0
      %p265 = por %p263, %p264
      %s266 = ssub.s32 %s31, %s43
      %s267 = ssub.s32 %s32, %s39
      %s268 = sor.u32 %s266, %s267
      %p269 = scmp.eq.s32.totalorder %s268, 0
      %s271 = sadd.s32 %s270, 1
      %s272 = scalar_select %p269, %s270, %s271
      %p275 = pneg %p269
      %p276 = scmp.eq.s32.totalorder %s24, 1
      %p277 = por %p275, %p276
      %p278 = scmp.ne.s32.totalorder %s270, %s273
      %p279 = scmp.eq.s32.totalorder %s24, 0
      %p280 = por %p278, %p279
      %p281 = scmp.ne.s32.totalorder %s270, %s273
      %p282 = scmp.eq.s32.totalorder %s29, 1
      %p283 = por %p281, %p282
      %p284 = scmp.ne.s32.totalorder %s273, %s274
      %p285 = scmp.eq.s32.totalorder %s29, 0
      %p286 = por %p284, %p285
      %p287 = scmp.ne.s32.totalorder %s273, %s274
      %p288 = scmp.eq.s32.totalorder %s30, 1
      %p289 = por %p287, %p288
      %p291 = scmp.ne.s32.totalorder %s274, %s290
      %p292 = scmp.eq.s32.totalorder %s30, 0
      %p293 = por %p291, %p292
      %p294 = scmp.le.s32.totalorder 1, %s24
      %p295 = scmp.lt.s32.totalorder %s24, 3
      %p296 = pnand %p294, %p295
      %p297 = pneg %p296
      // Predicated region
      $region9: #{tpu_custom_call.1} parent=5 // pred_check
        _
      $region10: #{tpu_custom_call.1} parent=5 // pred_check_branch
        %299 = sbr.rel (%p296) target = $region12
      $region11: #{tpu_custom_call.1} parent=5 // pred_region
        %s300 = ssub.s32 %s24, 1
        // Predicated region
        $region13: #{tpu_custom_call.1} parent=11 // pred_check
          %p301 = pneg %p111
        $region14: #{tpu_custom_call.1} parent=11 // pred_check_branch
          %303 = sbr.rel (%p301) target = $region16
        $region15: #{tpu_custom_call.1} parent=11 // pred_region
          _
        $region16: #{tpu_custom_call.1} parent=11 // pred_fallthru
          _
        // Predicated region
        $region17: #{tpu_custom_call.1} parent=11 // pred_check
          %p304 = pneg %p132
        $region18: #{tpu_custom_call.1} parent=11 // pred_check_branch
          %306 = sbr.rel (%p304) target = $region20
        $region19: #{tpu_custom_call.1} parent=11 // pred_region
          _
        $region20: #{tpu_custom_call.1} parent=11 // pred_fallthru
          _
        // Predicated region
        $region21: #{tpu_custom_call.1} parent=11 // pred_check
          %p307 = pneg %p153
        $region22: #{tpu_custom_call.1} parent=11 // pred_check_branch
          %309 = sbr.rel (%p307) target = $region24
        $region23: #{tpu_custom_call.1} parent=11 // pred_region
          %s311 = ssub.s32 256, 256
          %312 = vsyncadd [#allocation8], %s311
          %s313 = sshll.u32 [#allocation7], 4
          %s314 = int_to_ptr.vmem [resolvable:$true] %s313
          %319 = dma.hbm_to_vmem [thread:$0]  %s4, 256, %s314, [#allocation8], 64, 64, 4
        $region24: #{tpu_custom_call.1} parent=11 // pred_fallthru
          _
        // Predicated region
        $region25: #{tpu_custom_call.1} parent=11 // pred_check
          %p320 = pneg %p174
        $region26: #{tpu_custom_call.1} parent=11 // pred_check_branch
          %322 = sbr.rel (%p320) target = $region28
        $region27: #{tpu_custom_call.1} parent=11 // pred_region
          %s324 = ssub.s32 256, 256
          %325 = vsyncadd [#allocation8], %s324
          %s326 = sshll.u32 [#allocation9], 4
          %s327 = int_to_ptr.vmem [resolvable:$true] %s326
          %332 = dma.hbm_to_vmem [thread:$0]  %s5, 256, %s327, [#allocation8], 64, 64, 4
        $region28: #{tpu_custom_call.1} parent=11 // pred_fallthru
          _
        // Predicated region
        $region29: #{tpu_custom_call.1} parent=11 // pred_check
          %p333 = pneg %p195
        $region30: #{tpu_custom_call.1} parent=11 // pred_check_branch
          %335 = sbr.rel (%p333) target = $region32
        $region31: #{tpu_custom_call.1} parent=11 // pred_region
          %s337 = ssub.s32 256, 256
          %338 = vsyncadd [#allocation11], %s337
          %s339 = sshll.u32 [#allocation10], 4
          %s340 = int_to_ptr.vmem [resolvable:$true] %s339
          %345 = dma.hbm_to_vmem [thread:$0]  %s6, 256, %s340, [#allocation11], 64, 64, 4
        $region32: #{tpu_custom_call.1} parent=11 // pred_fallthru
          _
        // Predicated region
        $region33: #{tpu_custom_call.1} parent=11 // pred_check
          %p346 = pneg %p216
        $region34: #{tpu_custom_call.1} parent=11 // pred_check_branch
          %348 = sbr.rel (%p346) target = $region36
        $region35: #{tpu_custom_call.1} parent=11 // pred_region
          _
        $region36: #{tpu_custom_call.1} parent=11 // pred_fallthru
          _
        // Predicated region
        $region37: #{tpu_custom_call.1} parent=11 // pred_check
          %p349 = pneg %p237
        $region38: #{tpu_custom_call.1} parent=11 // pred_check_branch
          %351 = sbr.rel (%p349) target = $region40
        $region39: #{tpu_custom_call.1} parent=11 // pred_region
          %s353 = ssub.s32 256, 256
          %354 = vsyncadd [#allocation11], %s353
          %s355 = sshll.u32 [#allocation12], 4
          %s356 = int_to_ptr.vmem [resolvable:$true] %s355
          %361 = dma.hbm_to_vmem [thread:$0]  %s8, 256, %s356, [#allocation11], 128, 128, 8
        $region40: #{tpu_custom_call.1} parent=11 // pred_fallthru
          _
        // Predicated region
        $region41: #{tpu_custom_call.1} parent=11 // pred_check
          %p362 = pneg %p258
        $region42: #{tpu_custom_call.1} parent=11 // pred_check_branch
          %364 = sbr.rel (%p362) target = $region44
        $region43: #{tpu_custom_call.1} parent=11 // pred_region
          _
        $region44: #{tpu_custom_call.1} parent=11 // pred_fallthru
          _
      $region12: #{tpu_custom_call.1} parent=5 // pred_fallthru
        _
      %p365 = scmp.lt.s32.totalorder %s24, 2
      // Predicated region
      $region45: #{tpu_custom_call.1} parent=5 // pred_check
        %p366 = pneg %p365
      $region46: #{tpu_custom_call.1} parent=5 // pred_check_branch
        %368 = sbr.rel (%p366) target = $region48
      $region47: #{tpu_custom_call.1} parent=5 // pred_region
        // Predicated region
        $region49: #{tpu_custom_call.1} parent=47 // pred_check
          %p369 = pneg %p58
        $region50: #{tpu_custom_call.1} parent=47 // pred_check_branch
          %371 = sbr.rel (%p369) target = $region52
        $region51: #{tpu_custom_call.1} parent=47 // pred_region
          %p372 = scmp.lt.s32.totalorder %s31, 1
          %s373 = scalar_select %p372, %s31, 1
          %p374 = scmp.lt.s32.totalorder %s32, 0
          %s375 = scalar_select %p374, %s32, 0
          %s376 = sadd.s32 %s375, %s373
          %s377 = smul.addr %s376, 8
          %s378 = scalar_lea.vmem %s0, %s377
        $region52: #{tpu_custom_call.1} parent=47 // pred_fallthru
          _
        // Predicated region
        $region53: #{tpu_custom_call.1} parent=47 // pred_check
          %p379 = pneg %p84
        $region54: #{tpu_custom_call.1} parent=47 // pred_check_branch
          %381 = sbr.rel (%p379) target = $region56
        $region55: #{tpu_custom_call.1} parent=47 // pred_region
          %s382 = sand.u32 %s74, 1
          %s383 = scalar_lea.sflag [#allocation5], %s382
          %s384 = sand.u32 %s74, 1
          %s385 = smul.addr %s384, 4
          %s386 = scalar_lea.vmem [#allocation4], %s385
          %s388 = ssub.s32 64, 64
          %389 = vsyncadd %s383, %s388
          %s390 = smul.addr %s31, 64
          %s391 = scalar_lea.hbm %s1, %s390
          %s393 = sshll.u32 %s386, 4
          %s394 = int_to_ptr.vmem [resolvable:$true] %s393
          %396 = dma.hbm_to_vmem [thread:$0]  %s391, 64, %s394, %s383
        $region56: #{tpu_custom_call.1} parent=47 // pred_fallthru
          _
      $region48: #{tpu_custom_call.1} parent=5 // pred_fallthru
        _
      %p397 = scmp.le.s32.totalorder 1, %s24
      %p398 = scmp.lt.s32.totalorder %s24, 3
      %p399 = pnand %p397, %p398
      %p400 = pneg %p399
      // Predicated region
      $region57: #{tpu_custom_call.1} parent=5 // pred_check
        _
      $region58: #{tpu_custom_call.1} parent=5 // pred_check_branch
        %402 = sbr.rel (%p399) target = $region60
      $region59: #{tpu_custom_call.1} parent=5 // pred_region
        %s403 = ssub.s32 %s24, 1
        %s404 = sand.u32 %s77, 1
        %s405 = scalar_lea.sflag [#allocation5], %s404
        %s406 = sand.u32 %s77, 1
        %s407 = smul.addr %s406, 4
        %s408 = scalar_lea.vmem [#allocation4], %s407
        // Predicated region
        $region61: #{tpu_custom_call.1} parent=59 // pred_check
          %p409 = pneg %p90
        $region62: #{tpu_custom_call.1} parent=59 // pred_check_branch
          %411 = sbr.rel (%p409) target = $region64
        $region63: #{tpu_custom_call.1} parent=59 // pred_region
          %412 = dma.done %s405, 64
        $region64: #{tpu_custom_call.1} parent=59 // pred_fallthru
          _
        // Predicated region
        $region65: #{tpu_custom_call.1} parent=59 // pred_check
          %p413 = pneg %p153
        $region66: #{tpu_custom_call.1} parent=59 // pred_check_branch
          %415 = sbr.rel (%p413) target = $region68
        $region67: #{tpu_custom_call.1} parent=59 // pred_region
          %416 = dma.done [#allocation8], 256
        $region68: #{tpu_custom_call.1} parent=59 // pred_fallthru
          _
        // Predicated region
        $region69: #{tpu_custom_call.1} parent=59 // pred_check
          %p417 = pneg %p174
        $region70: #{tpu_custom_call.1} parent=59 // pred_check_branch
          %419 = sbr.rel (%p417) target = $region72
        $region71: #{tpu_custom_call.1} parent=59 // pred_region
          %420 = dma.done [#allocation8], 256
        $region72: #{tpu_custom_call.1} parent=59 // pred_fallthru
          _
        // Predicated region
        $region73: #{tpu_custom_call.1} parent=59 // pred_check
          %p421 = pneg %p195
        $region74: #{tpu_custom_call.1} parent=59 // pred_check_branch
          %423 = sbr.rel (%p421) target = $region76
        $region75: #{tpu_custom_call.1} parent=59 // pred_region
          %424 = dma.done [#allocation11], 256
        $region76: #{tpu_custom_call.1} parent=59 // pred_fallthru
          _
        // Predicated region
        $region77: #{tpu_custom_call.1} parent=59 // pred_check
          %p425 = pneg %p237
        $region78: #{tpu_custom_call.1} parent=59 // pred_check_branch
          %427 = sbr.rel (%p425) target = $region80
        $region79: #{tpu_custom_call.1} parent=59 // pred_region
          %428 = dma.done [#allocation11], 256
        $region80: #{tpu_custom_call.1} parent=59 // pred_fallthru
          _
        %p429 = scmp.lt.s32.totalorder %s33, 1
        %s430 = scalar_select %p429, %s33, 1
        %p431 = scmp.lt.s32.totalorder %s34, 0
        %s432 = scalar_select %p431, %s34, 0
        %s433 = sadd.s32 %s432, %s430
        %s434 = smul.addr %s433, 8
        %s435 = scalar_lea.vmem %s0, %s434
        %p436 = pneg %p64
        %p437 = pneg %p61
        %s438 = sand.u32 %s77, 1
        %s439 = scalar_lea.sflag [#allocation5], %s438
        %s440 = sand.u32 %s77, 1
        %s441 = smul.addr %s440, 4
        %s442 = scalar_lea.vmem [#allocation4], %s441
        %p443 = pneg %p90
        %p444 = pneg %p87
        %p445 = pneg %p111
        %p446 = pneg %p108
        %p447 = pneg %p132
        %p448 = pneg %p129
        %p449 = pneg %p153
        %p450 = pneg %p150
        %p451 = pneg %p174
        %p452 = pneg %p171
        %p453 = pneg %p195
        %p454 = pneg %p192
        %p455 = pneg %p216
        %p456 = pneg %p213
        %p457 = pneg %p237
        %p458 = pneg %p234
        %p459 = pneg %p258
        %p460 = pneg %p255
        %p461 = pneg %p286
        %p462 = pneg %p283
        %s463 = sand.u32 %s273, 1
        %s464 = scalar_lea.sflag [#allocation6], %s463
        %s465 = sand.u32 %s273, 1
        %s466 = smul.addr %s465, 8
        %s467 = scalar_lea.vmem [#allocation13], %s466
        %p468 = scmp.lt.s32.totalorder %s33, 1
        %s469 = scalar_select %p468, %s33, 1
        %p470 = scmp.lt.s32.totalorder %s34, 0
        %s471 = scalar_select %p470, %s34, 0
        %s472 = sadd.s32 %s471, %s469
        %s473 = smul.addr %s472, 8
        %s474 = scalar_lea.vmem %s0, %s473
        %v476 = vld [vmem:[#allocation12] sm:$0x1]
        %v477 = vld [vmem:[#allocation12 + $0x1] sm:$0x1]
        %v478 = vld [vmem:[#allocation12 + $0x2] sm:$0x1]
        %v479 = vld [vmem:[#allocation12 + $0x3] sm:$0x1]
        %v480 = vld [vmem:[#allocation12 + $0x4] sm:$0x1]
        %v481 = vld [vmem:[#allocation12 + $0x5] sm:$0x1]
        %v482 = vld [vmem:[#allocation12 + $0x6] sm:$0x1]
        %v483 = vld [vmem:[#allocation12 + $0x7] sm:$0x1]
        %v484 = vld [vmem:[#allocation12 + $0x8] sm:$0x1]
        %v485 = vld [vmem:[%s9] sm:$0x1]
        %p486 = scmp.eq.s32.totalorder %s34, 0
        // Predicated region
        $region81: #{tpu_custom_call.1} parent=59 // pred_check
          %p487 = pneg %p486
        $region82: #{tpu_custom_call.1} parent=59 // pred_check_branch
          %489 = sbr.rel (%p487) target = $region84
        $region83: #{tpu_custom_call.1} parent=59 // pred_region
          %v490 = vld [vmem:[%s408] sm:$0xf]
          %v491 = vld [vmem:[%s3] sm:$0xf]
          %v492 = vld [vmem:[%s3 + $0x4] sm:$0xf]
          %v493 = vld [vmem:[%s3 + $0x8] sm:$0xf]
          %v494 = vld [vmem:[%s3 + $0xc] sm:$0xf]
          %v495 = vlaneseq
          %v496 = vshrl.u32 %v495, 7
          %v497 = vsub.s32 0, %v496
          %v498 = vrot.slane %v477, %v497
          %v503 = vunpack.c.l.b16 %v491
          %v504 = vunpack.c.l.b16 %v492
          %v505 = vunpack.c.l.b16 %v493
          %v506 = vunpack.c.l.b16 %v494
          %v507 = vpack.c.b16 %v504, %v503
          %v508 = vpack.c.b16 %v506, %v505
          %vm511 = vcmask 261120
          %v513 = vsel %vm511, %v490, 0
          %515 = vmatprep.subr.bf16.mxu0 0
          %516 = vmatpush1.bf16.msra.mxu0 %v507
          %517 = vmatprep.subr.bf16.mxu0 0
          %518 = vmatpush1.bf16.msra.mxu0 %v508
          %519 = vmatprep.subr.bf16.mxu0 0
          %520 = vmatpush1.bf16.msra.mxu0 0
          %521 = vmatprep.subr.bf16.mxu0 0
          %522 = vmatpush1.bf16.msra.mxu0 0
          %523 = vmatprep.subr.bf16.mxu0 0
          %524 = vmatpush1.bf16.msra.mxu0 0
          %525 = vmatprep.subr.bf16.mxu0 0
          %526 = vmatpush1.bf16.msra.mxu0 0
          %527 = vmatprep.subr.bf16.mxu0 0
          %528 = vmatpush1.bf16.msra.mxu0 0
          %529 = vmatprep.subr.bf16.mxu0 0
          %530 = vmatpush1.bf16.msra.mxu0 0
          %531 = vmatprep.subr.bf16.mxu0 0
          %532 = vmatpush1.bf16.msra.mxu0 0
          %533 = vmatprep.subr.bf16.mxu0 0
          %534 = vmatpush1.bf16.msra.mxu0 0
          %535 = vmatprep.subr.bf16.mxu0 0
          %536 = vmatpush1.bf16.msra.mxu0 0
          %537 = vmatprep.subr.bf16.mxu0 0
          %538 = vmatpush1.bf16.msra.mxu0 0
          %539 = vmatprep.subr.bf16.mxu0 0
          %540 = vmatpush1.bf16.msra.mxu0 0
          %541 = vmatprep.subr.bf16.mxu0 0
          %542 = vmatpush1.bf16.msra.mxu0 0
          %543 = vmatprep.subr.bf16.mxu0 0
          %544 = vmatpush1.bf16.msra.mxu0 0
          %545 = vmatprep.subr.bf16.mxu0 0
          %546 = vmatpush1.bf16.msra.mxu0 0
          %547 = vmatprep.mubr.bf16.mxu0 0
          %548 = vmatmul.mubr.bf16.gmra.mrb[0].mxu0 %v513
          %v549 = vpop.f32.mrb[0].mxu0
          %v550 = vadd.f32 %v498, %v549
          %v551 = vpop.f32.mrb[0].mxu0
          %v552 = vpop.f32.mrb[0].mxu0
          %v553 = vpop.f32.mrb[0].mxu0
          %554 = vdwg.mxu0
          %v555 = vld [vmem:[#allocation7] sm:$0xf]
          %v556 = vld [vmem:[#allocation7 + $0x4] sm:$0xf]
          %v557 = vld [vmem:[#allocation7 + $0x8] sm:$0xf]
          %v558 = vld [vmem:[#allocation7 + $0xc] sm:$0xf]
          %v559 = vlaneseq
          %v560 = vshrl.u32 %v559, 7
          %v561 = vsub.s32 0, %v560
          %v562 = vrot.slane %v478, %v561
          %v567 = vunpack.c.l.b16 %v555
          %v568 = vunpack.c.l.b16 %v556
          %v569 = vunpack.c.l.b16 %v557
          %v570 = vunpack.c.l.b16 %v558
          %v571 = vpack.c.b16 %v568, %v567
          %v572 = vpack.c.b16 %v570, %v569
          %575 = vmatprep.subr.bf16.mxu0 0
          %576 = vmatpush1.bf16.msra.mxu0 %v571
          %577 = vmatprep.subr.bf16.mxu0 0
          %578 = vmatpush1.bf16.msra.mxu0 %v572
          %579 = vmatprep.subr.bf16.mxu0 0
          %580 = vmatpush1.bf16.msra.mxu0 0
          %581 = vmatprep.subr.bf16.mxu0 0
          %582 = vmatpush1.bf16.msra.mxu0 0
          %583 = vmatprep.subr.bf16.mxu0 0
          %584 = vmatpush1.bf16.msra.mxu0 0
          %585 = vmatprep.subr.bf16.mxu0 0
          %586 = vmatpush1.bf16.msra.mxu0 0
          %587 = vmatprep.subr.bf16.mxu0 0
          %588 = vmatpush1.bf16.msra.mxu0 0
          %589 = vmatprep.subr.bf16.mxu0 0
          %590 = vmatpush1.bf16.msra.mxu0 0
          %591 = vmatprep.subr.bf16.mxu0 0
          %592 = vmatpush1.bf16.msra.mxu0 0
          %593 = vmatprep.subr.bf16.mxu0 0
          %594 = vmatpush1.bf16.msra.mxu0 0
          %595 = vmatprep.subr.bf16.mxu0 0
          %596 = vmatpush1.bf16.msra.mxu0 0
          %597 = vmatprep.subr.bf16.mxu0 0
          %598 = vmatpush1.bf16.msra.mxu0 0
          %599 = vmatprep.subr.bf16.mxu0 0
          %600 = vmatpush1.bf16.msra.mxu0 0
          %601 = vmatprep.subr.bf16.mxu0 0
          %602 = vmatpush1.bf16.msra.mxu0 0
          %603 = vmatprep.subr.bf16.mxu0 0
          %604 = vmatpush1.bf16.msra.mxu0 0
          %605 = vmatprep.subr.bf16.mxu0 0
          %606 = vmatpush1.bf16.msra.mxu0 0
          %607 = vmatprep.mubr.bf16.mxu0 0
          %608 = vmatmul.mubr.bf16.gmra.mrb[0].mxu0 %v513
          %v609 = vpop.f32.mrb[0].mxu0
          %v610 = vadd.f32 %v562, %v609
          %v611 = vpop.f32.mrb[0].mxu0
          %v612 = vpop.f32.mrb[0].mxu0
          %v613 = vpop.f32.mrb[0].mxu0
          %614 = vdwg.mxu0
          %v615 = vpack.c.bf16 %v550, %v550
          %617 = vrot.lane.b32.xlu0 %v615, 120
          %v618 = vpop.permute.xlu0 %617
          %620 = vrot.lane.b32.xlu0 %v615, 112
          %v621 = vpop.permute.xlu0 %620
          %623 = vrot.lane.b32.xlu0 %v615, 104
          %v624 = vpop.permute.xlu0 %623
          %vm626 = vcmask 60416
          %627 = vst.msk [vmem:[#allocation2] sm:$0xf] %vm626, %v615
          %628 = vst.msk [vmem:[#allocation2 + $0x4] sm:$0xf] %vm626, %v618
          %629 = vst.msk [vmem:[#allocation2 + $0x8] sm:$0xf] %vm626, %v621
          %630 = vst.msk [vmem:[#allocation2 + $0xc] sm:$0xf] %vm626, %v624
          %v631 = vpack.c.bf16 %v610, %v610
          %633 = vrot.lane.b32.xlu0 %v631, 120
          %v634 = vpop.permute.xlu0 %633
          %636 = vrot.lane.b32.xlu0 %v631, 112
          %v637 = vpop.permute.xlu0 %636
          %639 = vrot.lane.b32.xlu0 %v631, 104
          %v640 = vpop.permute.xlu0 %639
          %642 = vst.msk [vmem:[#allocation3] sm:$0xf] %vm626, %v631
          %643 = vst.msk [vmem:[#allocation3 + $0x4] sm:$0xf] %vm626, %v634
          %644 = vst.msk [vmem:[#allocation3 + $0x8] sm:$0xf] %vm626, %v637
          %645 = vst.msk [vmem:[#allocation3 + $0xc] sm:$0xf] %vm626, %v640
        $region84: #{tpu_custom_call.1} parent=59 // pred_fallthru
          _
        %v646 = vld [vmem:[%s474] sm:$0xff]
        %v647 = vpack.c.bf16 %v646, %v646
        %v648 = vld [vmem:[%s2] sm:$0xf]
        %v649 = vld [vmem:[%s2 + $0x4] sm:$0xf]
        %v650 = vld [vmem:[%s2 + $0x8] sm:$0xf]
        %v651 = vld [vmem:[%s2 + $0xc] sm:$0xf]
        %v652 = vlaneseq
        %v653 = vshrl.u32 %v652, 7
        %v654 = vsub.s32 0, %v653
        %v655 = vrot.slane %v476, %v654
        %v660 = vunpack.c.l.b16 %v648
        %v661 = vunpack.c.l.b16 %v649
        %v662 = vunpack.c.l.b16 %v650
        %v663 = vunpack.c.l.b16 %v651
        %v664 = vpack.c.b16 %v661, %v660
        %v665 = vpack.c.b16 %v663, %v662
        %vm668 = vcmask 261120
        %v670 = vsel %vm668, %v647, 0
        %672 = vmatprep.subr.bf16.mxu0 0
        %673 = vmatpush1.bf16.msra.mxu0 %v664
        %674 = vmatprep.subr.bf16.mxu0 0
        %675 = vmatpush1.bf16.msra.mxu0 %v665
        %676 = vmatprep.subr.bf16.mxu0 0
        %677 = vmatpush1.bf16.msra.mxu0 0
        %678 = vmatprep.subr.bf16.mxu0 0
        %679 = vmatpush1.bf16.msra.mxu0 0
        %680 = vmatprep.subr.bf16.mxu0 0
        %681 = vmatpush1.bf16.msra.mxu0 0
        %682 = vmatprep.subr.bf16.mxu0 0
        %683 = vmatpush1.bf16.msra.mxu0 0
        %684 = vmatprep.subr.bf16.mxu0 0
        %685 = vmatpush1.bf16.msra.mxu0 0
        %686 = vmatprep.subr.bf16.mxu0 0
        %687 = vmatpush1.bf16.msra.mxu0 0
        %688 = vmatprep.subr.bf16.mxu0 0
        %689 = vmatpush1.bf16.msra.mxu0 0
        %690 = vmatprep.subr.bf16.mxu0 0
        %691 = vmatpush1.bf16.msra.mxu0 0
        %692 = vmatprep.subr.bf16.mxu0 0
        %693 = vmatpush1.bf16.msra.mxu0 0
        %694 = vmatprep.subr.bf16.mxu0 0
        %695 = vmatpush1.bf16.msra.mxu0 0
        %696 = vmatprep.subr.bf16.mxu0 0
        %697 = vmatpush1.bf16.msra.mxu0 0
        %698 = vmatprep.subr.bf16.mxu0 0
        %699 = vmatpush1.bf16.msra.mxu0 0
        %700 = vmatprep.subr.bf16.mxu0 0
        %701 = vmatpush1.bf16.msra.mxu0 0
        %702 = vmatprep.subr.bf16.mxu0 0
        %703 = vmatpush1.bf16.msra.mxu0 0
        %704 = vmatprep.mubr.bf16.mxu0 0
        %705 = vmatmul.mubr.bf16.gmra.mrb[0].mxu0 %v670
        %v706 = vpop.f32.mrb[0].mxu0
        %v707 = vadd.f32 %v655, %v706
        %v708 = vpop.f32.mrb[0].mxu0
        %v709 = vpop.f32.mrb[0].mxu0
        %v710 = vpop.f32.mrb[0].mxu0
        %711 = vdwg.mxu0
        %v712 = vmul.f32 %v707, 0.35355338
        %v713 = vpack.c.bf16 %v712, %v712
        %715 = vrot.lane.b32.xlu0 %v713, 120
        %v716 = vpop.permute.xlu0 %715
        %717 = vrot.lane.b32.xlu0 %v713, 112
        %v718 = vpop.permute.xlu0 %717
        %719 = vrot.lane.b32.xlu0 %v713, 104
        %v720 = vpop.permute.xlu0 %719
        %v721 = vld [vmem:[#allocation2] sm:$0xf]
        %v722 = vld [vmem:[#allocation2 + $0x4] sm:$0xf]
        %v723 = vld [vmem:[#allocation2 + $0x8] sm:$0xf]
        %v724 = vld [vmem:[#allocation2 + $0xc] sm:$0xf]
        %vm725 = vcmask 64512
        %v727 = vsel %vm725, %v713, 0
        %v730 = vsel %vm725, %v721, 0
        %732 = vmatprep.subr.bf16.mxu0 0
        %733 = vmatpush1.bf16.xpose.msra.mxu0 %v730
        %734 = vmatprep.subr.bf16.mxu0 0
        %735 = vmatpush1.bf16.xpose.msra.mxu0 0
        %736 = vmatprep.subr.bf16.mxu0 0
        %737 = vmatpush1.bf16.xpose.msra.mxu0 0
        %738 = vmatprep.subr.bf16.mxu0 0
        %739 = vmatpush1.bf16.xpose.msra.mxu0 0
        %740 = vmatprep.subr.bf16.mxu0 0
        %741 = vmatpush1.bf16.xpose.msra.mxu0 0
        %742 = vmatprep.subr.bf16.mxu0 0
        %743 = vmatpush1.bf16.xpose.msra.mxu0 0
        %744 = vmatprep.subr.bf16.mxu0 0
        %745 = vmatpush1.bf16.xpose.msra.mxu0 0
        %746 = vmatprep.subr.bf16.mxu0 0
        %747 = vmatpush1.bf16.xpose.msra.mxu0 0
        %748 = vmatprep.subr.bf16.mxu0 0
        %749 = vmatpush1.bf16.xpose.msra.mxu0 0
        %750 = vmatprep.subr.bf16.mxu0 0
        %751 = vmatpush1.bf16.xpose.msra.mxu0 0
        %752 = vmatprep.subr.bf16.mxu0 0
        %753 = vmatpush1.bf16.xpose.msra.mxu0 0
        %754 = vmatprep.subr.bf16.mxu0 0
        %755 = vmatpush1.bf16.xpose.msra.mxu0 0
        %756 = vmatprep.subr.bf16.mxu0 0
        %757 = vmatpush1.bf16.xpose.msra.mxu0 0
        %758 = vmatprep.subr.bf16.mxu0 0
        %759 = vmatpush1.bf16.xpose.msra.mxu0 0
        %760 = vmatprep.subr.bf16.mxu0 0
        %761 = vmatpush1.bf16.xpose.msra.mxu0 0
        %762 = vmatprep.subr.bf16.mxu0 0
        %763 = vmatpush1.bf16.xpose.msra.mxu0 0
        %764 = vmatprep.mubr.bf16.mxu0 0
        %765 = vmatmul.mubr.bf16.gmra.mrb[0].mxu0 %v727
        %v766 = vpop.f32.mrb[0].mxu0
        %v767 = vadd.f32 0.0, %v766
        %v768 = vpop.f32.mrb[0].mxu0
        %v769 = vpop.f32.mrb[0].mxu0
        %v770 = vpop.f32.mrb[0].mxu0
        %771 = vdwg.mxu0
        %v773 = vsel %vm725, %v716, 0
        %v776 = vsel %vm725, %v722, 0
        %778 = vmatprep.subr.bf16.mxu0 0
        %779 = vmatpush1.bf16.xpose.msra.mxu0 %v776
        %780 = vmatprep.subr.bf16.mxu0 0
        %781 = vmatpush1.bf16.xpose.msra.mxu0 0
        %782 = vmatprep.subr.bf16.mxu0 0
        %783 = vmatpush1.bf16.xpose.msra.mxu0 0
        %784 = vmatprep.subr.bf16.mxu0 0
        %785 = vmatpush1.bf16.xpose.msra.mxu0 0
        %786 = vmatprep.subr.bf16.mxu0 0
        %787 = vmatpush1.bf16.xpose.msra.mxu0 0
        %788 = vmatprep.subr.bf16.mxu0 0
        %789 = vmatpush1.bf16.xpose.msra.mxu0 0
        %790 = vmatprep.subr.bf16.mxu0 0
        %791 = vmatpush1.bf16.xpose.msra.mxu0 0
        %792 = vmatprep.subr.bf16.mxu0 0
        %793 = vmatpush1.bf16.xpose.msra.mxu0 0
        %794 = vmatprep.subr.bf16.mxu0 0
        %795 = vmatpush1.bf16.xpose.msra.mxu0 0
        %796 = vmatprep.subr.bf16.mxu0 0
        %797 = vmatpush1.bf16.xpose.msra.mxu0 0
        %798 = vmatprep.subr.bf16.mxu0 0
        %799 = vmatpush1.bf16.xpose.msra.mxu0 0
        %800 = vmatprep.subr.bf16.mxu0 0
        %801 = vmatpush1.bf16.xpose.msra.mxu0 0
        %802 = vmatprep.subr.bf16.mxu0 0
        %803 = vmatpush1.bf16.xpose.msra.mxu0 0
        %804 = vmatprep.subr.bf16.mxu0 0
        %805 = vmatpush1.bf16.xpose.msra.mxu0 0
        %806 = vmatprep.subr.bf16.mxu0 0
        %807 = vmatpush1.bf16.xpose.msra.mxu0 0
        %808 = vmatprep.subr.bf16.mxu0 0
        %809 = vmatpush1.bf16.xpose.msra.mxu0 0
        %810 = vmatprep.mubr.bf16.mxu0 0
        %811 = vmatmul.mubr.bf16.gmra.mrb[0].mxu0 %v773
        %v812 = vpop.f32.mrb[0].mxu0
        %v813 = vadd.f32 0.0, %v812
        %v814 = vpop.f32.mrb[0].mxu0
        %v815 = vpop.f32.mrb[0].mxu0
        %v816 = vpop.f32.mrb[0].mxu0
        %817 = vdwg.mxu0
        %v819 = vsel %vm725, %v718, 0
        %v822 = vsel %vm725, %v723, 0
        %824 = vmatprep.subr.bf16.mxu0 0
        %825 = vmatpush1.bf16.xpose.msra.mxu0 %v822
        %826 = vmatprep.subr.bf16.mxu0 0
        %827 = vmatpush1.bf16.xpose.msra.mxu0 0
        %828 = vmatprep.subr.bf16.mxu0 0
        %829 = vmatpush1.bf16.xpose.msra.mxu0 0
        %830 = vmatprep.subr.bf16.mxu0 0
        %831 = vmatpush1.bf16.xpose.msra.mxu0 0
        %832 = vmatprep.subr.bf16.mxu0 0
        %833 = vmatpush1.bf16.xpose.msra.mxu0 0
        %834 = vmatprep.subr.bf16.mxu0 0
        %835 = vmatpush1.bf16.xpose.msra.mxu0 0
        %836 = vmatprep.subr.bf16.mxu0 0
        %837 = vmatpush1.bf16.xpose.msra.mxu0 0
        %838 = vmatprep.subr.bf16.mxu0 0
        %839 = vmatpush1.bf16.xpose.msra.mxu0 0
        %840 = vmatprep.subr.bf16.mxu0 0
        %841 = vmatpush1.bf16.xpose.msra.mxu0 0
        %842 = vmatprep.subr.bf16.mxu0 0
        %843 = vmatpush1.bf16.xpose.msra.mxu0 0
        %844 = vmatprep.subr.bf16.mxu0 0
        %845 = vmatpush1.bf16.xpose.msra.mxu0 0
        %846 = vmatprep.subr.bf16.mxu0 0
        %847 = vmatpush1.bf16.xpose.msra.mxu0 0
        %848 = vmatprep.subr.bf16.mxu0 0
        %849 = vmatpush1.bf16.xpose.msra.mxu0 0
        %850 = vmatprep.subr.bf16.mxu0 0
        %851 = vmatpush1.bf16.xpose.msra.mxu0 0
        %852 = vmatprep.subr.bf16.mxu0 0
        %853 = vmatpush1.bf16.xpose.msra.mxu0 0
        %854 = vmatprep.subr.bf16.mxu0 0
        %855 = vmatpush1.bf16.xpose.msra.mxu0 0
        %856 = vmatprep.mubr.bf16.mxu0 0
        %857 = vmatmul.mubr.bf16.gmra.mrb[0].mxu0 %v819
        %v858 = vpop.f32.mrb[0].mxu0
        %v859 = vadd.f32 0.0, %v858
        %v860 = vpop.f32.mrb[0].mxu0
        %v861 = vpop.f32.mrb[0].mxu0
        %v862 = vpop.f32.mrb[0].mxu0
        %863 = vdwg.mxu0
        %v865 = vsel %vm725, %v720, 0
        %v868 = vsel %vm725, %v724, 0
        %870 = vmatprep.subr.bf16.mxu0 0
        %871 = vmatpush1.bf16.xpose.msra.mxu0 %v868
        %872 = vmatprep.subr.bf16.mxu0 0
        %873 = vmatpush1.bf16.xpose.msra.mxu0 0
        %874 = vmatprep.subr.bf16.mxu0 0
        %875 = vmatpush1.bf16.xpose.msra.mxu0 0
        %876 = vmatprep.subr.bf16.mxu0 0
        %877 = vmatpush1.bf16.xpose.msra.mxu0 0
        %878 = vmatprep.subr.bf16.mxu0 0
        %879 = vmatpush1.bf16.xpose.msra.mxu0 0
        %880 = vmatprep.subr.bf16.mxu0 0
        %881 = vmatpush1.bf16.xpose.msra.mxu0 0
        %882 = vmatprep.subr.bf16.mxu0 0
        %883 = vmatpush1.bf16.xpose.msra.mxu0 0
        %884 = vmatprep.subr.bf16.mxu0 0
        %885 = vmatpush1.bf16.xpose.msra.mxu0 0
        %886 = vmatprep.subr.bf16.mxu0 0
        %887 = vmatpush1.bf16.xpose.msra.mxu0 0
        %888 = vmatprep.subr.bf16.mxu0 0
        %889 = vmatpush1.bf16.xpose.msra.mxu0 0
        %890 = vmatprep.subr.bf16.mxu0 0
        %891 = vmatpush1.bf16.xpose.msra.mxu0 0
        %892 = vmatprep.subr.bf16.mxu0 0
        %893 = vmatpush1.bf16.xpose.msra.mxu0 0
        %894 = vmatprep.subr.bf16.mxu0 0
        %895 = vmatpush1.bf16.xpose.msra.mxu0 0
        %896 = vmatprep.subr.bf16.mxu0 0
        %897 = vmatpush1.bf16.xpose.msra.mxu0 0
        %898 = vmatprep.subr.bf16.mxu0 0
        %899 = vmatpush1.bf16.xpose.msra.mxu0 0
        %900 = vmatprep.subr.bf16.mxu0 0
        %901 = vmatpush1.bf16.xpose.msra.mxu0 0
        %902 = vmatprep.mubr.bf16.mxu0 0
        %903 = vmatmul.mubr.bf16.gmra.mrb[0].mxu0 %v865
        %v904 = vpop.f32.mrb[0].mxu0
        %v905 = vadd.f32 0.0, %v904
        %v906 = vpop.f32.mrb[0].mxu0
        %v907 = vpop.f32.mrb[0].mxu0
        %v908 = vpop.f32.mrb[0].mxu0
        %909 = vdwg.mxu0
        %v910 = vsel %vm725, %v767, -inf
        %911 = vmax.xlane.f32.xlu0 %v910
        %v912 = vpop.xlane.xlu0 %911
        %v913 = vsel %vm725, %v813, -inf
        %914 = vmax.xlane.f32.xlu0 %v913
        %v915 = vpop.xlane.xlu0 %914
        %v916 = vsel %vm725, %v859, -inf
        %917 = vmax.xlane.f32.xlu0 %v916
        %v918 = vpop.xlane.xlu0 %917
        %v919 = vsel %vm725, %v905, -inf
        %920 = vmax.xlane.f32.xlu0 %v919
        %v921 = vpop.xlane.xlu0 %920
        %v922 = vsub.f32 %v767, %v912
        %v923 = vsub.f32 %v813, %v915
        %v924 = vsub.f32 %v859, %v918
        %v925 = vsub.f32 %v905, %v921
        %v926 = vpack.c.bf16 %v922, %v922
        %v927 = vpack.c.bf16 %v923, %v923
        %v928 = vpack.c.bf16 %v924, %v924
        %v929 = vpack.c.bf16 %v925, %v925
        %v931 = vmul.bf16 %v926, 1069105081
        %v932 = vpow.bf16.pop %v931
        %v934 = vmul.bf16 %v927, 1069105081
        %v935 = vpow.bf16.pop %v934
        %v937 = vmul.bf16 %v928, 1069105081
        %v938 = vpow.bf16.pop %v937
        %v940 = vmul.bf16 %v929, 1069105081
        %v941 = vpow.bf16.pop %v940
        %v942 = vunpack.c.l.bf16 %v932
        %v943 = vunpack.c.l.bf16 %v935
        %v944 = vunpack.c.l.bf16 %v938
        %v945 = vunpack.c.l.bf16 %v941
        %v946 = vsel %vm725, %v942, 0.0
        %947 = vadd.xlane.f32.xlu0 %v946
        %v948 = vpop.xlane.xlu0 %947
        %v949 = vsel %vm725, %v943, 0.0
        %950 = vadd.xlane.f32.xlu0 %v949
        %v951 = vpop.xlane.xlu0 %950
        %v952 = vsel %vm725, %v944, 0.0
        %953 = vadd.xlane.f32.xlu0 %v952
        %v954 = vpop.xlane.xlu0 %953
        %v955 = vsel %vm725, %v945, 0.0
        %956 = vadd.xlane.f32.xlu0 %v955
        %v957 = vpop.xlane.xlu0 %956
        %v958 = vld [vmem:[#allocation3] sm:$0xf]
        %v959 = vld [vmem:[#allocation3 + $0x4] sm:$0xf]
        %v960 = vld [vmem:[#allocation3 + $0x8] sm:$0xf]
        %v961 = vld [vmem:[#allocation3 + $0xc] sm:$0xf]
        %v963 = vsel %vm725, %v932, 0
        %vm965 = vcmask 1043456
        %v967 = vsel %vm965, %v958, 0
        %969 = vmatprep.subr.bf16.mxu0 0
        %970 = vmatpush1.bf16.msra.mxu0 %v967
        %971 = vmatprep.subr.bf16.mxu0 0
        %972 = vmatpush1.bf16.msra.mxu0 0
        %973 = vmatprep.subr.bf16.mxu0 0
        %974 = vmatpush1.bf16.msra.mxu0 0
        %975 = vmatprep.subr.bf16.mxu0 0
        %976 = vmatpush1.bf16.msra.mxu0 0
        %977 = vmatprep.subr.bf16.mxu0 0
        %978 = vmatpush1.bf16.msra.mxu0 0
        %979 = vmatprep.subr.bf16.mxu0 0
        %980 = vmatpush1.bf16.msra.mxu0 0
        %981 = vmatprep.subr.bf16.mxu0 0
        %982 = vmatpush1.bf16.msra.mxu0 0
        %983 = vmatprep.subr.bf16.mxu0 0
        %984 = vmatpush1.bf16.msra.mxu0 0
        %985 = vmatprep.subr.bf16.mxu0 0
        %986 = vmatpush1.bf16.msra.mxu0 0
        %987 = vmatprep.subr.bf16.mxu0 0
        %988 = vmatpush1.bf16.msra.mxu0 0
        %989 = vmatprep.subr.bf16.mxu0 0
        %990 = vmatpush1.bf16.msra.mxu0 0
        %991 = vmatprep.subr.bf16.mxu0 0
        %992 = vmatpush1.bf16.msra.mxu0 0
        %993 = vmatprep.subr.bf16.mxu0 0
        %994 = vmatpush1.bf16.msra.mxu0 0
        %995 = vmatprep.subr.bf16.mxu0 0
        %996 = vmatpush1.bf16.msra.mxu0 0
        %997 = vmatprep.subr.bf16.mxu0 0
        %998 = vmatpush1.bf16.msra.mxu0 0
        %999 = vmatprep.subr.bf16.mxu0 0
        %1000 = vmatpush1.bf16.msra.mxu0 0
        %1001 = vmatprep.mubr.bf16.mxu0 0
        %1002 = vmatmul.mubr.bf16.gmra.mrb[0].mxu0 %v963
        %v1003 = vpop.f32.mrb[0].mxu0
        %v1004 = vadd.f32 0.0, %v1003
        %v1005 = vpop.f32.mrb[0].mxu0
        %v1006 = vpop.f32.mrb[0].mxu0
        %v1007 = vpop.f32.mrb[0].mxu0
        %1008 = vdwg.mxu0
        %v1010 = vsel %vm725, %v935, 0
        %v1013 = vsel %vm965, %v959, 0
        %1015 = vmatprep.subr.bf16.mxu0 0
        %1016 = vmatpush1.bf16.msra.mxu0 %v1013
        %1017 = vmatprep.subr.bf16.mxu0 0
        %1018 = vmatpush1.bf16.msra.mxu0 0
        %1019 = vmatprep.subr.bf16.mxu0 0
        %1020 = vmatpush1.bf16.msra.mxu0 0
        %1021 = vmatprep.subr.bf16.mxu0 0
        %1022 = vmatpush1.bf16.msra.mxu0 0
        %1023 = vmatprep.subr.bf16.mxu0 0
        %1024 = vmatpush1.bf16.msra.mxu0 0
        %1025 = vmatprep.subr.bf16.mxu0 0
        %1026 = vmatpush1.bf16.msra.mxu0 0
        %1027 = vmatprep.subr.bf16.mxu0 0
        %1028 = vmatpush1.bf16.msra.mxu0 0
        %1029 = vmatprep.subr.bf16.mxu0 0
        %1030 = vmatpush1.bf16.msra.mxu0 0
        %1031 = vmatprep.subr.bf16.mxu0 0
        %1032 = vmatpush1.bf16.msra.mxu0 0
        %1033 = vmatprep.subr.bf16.mxu0 0
        %1034 = vmatpush1.bf16.msra.mxu0 0
        %1035 = vmatprep.subr.bf16.mxu0 0
        %1036 = vmatpush1.bf16.msra.mxu0 0
        %1037 = vmatprep.subr.bf16.mxu0 0
        %1038 = vmatpush1.bf16.msra.mxu0 0
        %1039 = vmatprep.subr.bf16.mxu0 0
        %1040 = vmatpush1.bf16.msra.mxu0 0
        %1041 = vmatprep.subr.bf16.mxu0 0
        %1042 = vmatpush1.bf16.msra.mxu0 0
        %1043 = vmatprep.subr.bf16.mxu0 0
        %1044 = vmatpush1.bf16.msra.mxu0 0
        %1045 = vmatprep.subr.bf16.mxu0 0
        %1046 = vmatpush1.bf16.msra.mxu0 0
        %1047 = vmatprep.mubr.bf16.mxu0 0
        %1048 = vmatmul.mubr.bf16.gmra.mrb[0].mxu0 %v1010
        %v1049 = vpop.f32.mrb[0].mxu0
        %v1050 = vadd.f32 0.0, %v1049
        %v1051 = vpop.f32.mrb[0].mxu0
        %v1052 = vpop.f32.mrb[0].mxu0
        %v1053 = vpop.f32.mrb[0].mxu0
        %1054 = vdwg.mxu0
        %v1056 = vsel %vm725, %v938, 0
        %v1059 = vsel %vm965, %v960, 0
        %1061 = vmatprep.subr.bf16.mxu0 0
        %1062 = vmatpush1.bf16.msra.mxu0 %v1059
        %1063 = vmatprep.subr.bf16.mxu0 0
        %1064 = vmatpush1.bf16.msra.mxu0 0
        %1065 = vmatprep.subr.bf16.mxu0 0
        %1066 = vmatpush1.bf16.msra.mxu0 0
        %1067 = vmatprep.subr.bf16.mxu0 0
        %1068 = vmatpush1.bf16.msra.mxu0 0
        %1069 = vmatprep.subr.bf16.mxu0 0
        %1070 = vmatpush1.bf16.msra.mxu0 0
        %1071 = vmatprep.subr.bf16.mxu0 0
        %1072 = vmatpush1.bf16.msra.mxu0 0
        %1073 = vmatprep.subr.bf16.mxu0 0
        %1074 = vmatpush1.bf16.msra.mxu0 0
        %1075 = vmatprep.subr.bf16.mxu0 0
        %1076 = vmatpush1.bf16.msra.mxu0 0
        %1077 = vmatprep.subr.bf16.mxu0 0
        %1078 = vmatpush1.bf16.msra.mxu0 0
        %1079 = vmatprep.subr.bf16.mxu0 0
        %1080 = vmatpush1.bf16.msra.mxu0 0
        %1081 = vmatprep.subr.bf16.mxu0 0
        %1082 = vmatpush1.bf16.msra.mxu0 0
        %1083 = vmatprep.subr.bf16.mxu0 0
        %1084 = vmatpush1.bf16.msra.mxu0 0
        %1085 = vmatprep.subr.bf16.mxu0 0
        %1086 = vmatpush1.bf16.msra.mxu0 0
        %1087 = vmatprep.subr.bf16.mxu0 0
        %1088 = vmatpush1.bf16.msra.mxu0 0
        %1089 = vmatprep.subr.bf16.mxu0 0
        %1090 = vmatpush1.bf16.msra.mxu0 0
        %1091 = vmatprep.subr.bf16.mxu0 0
        %1092 = vmatpush1.bf16.msra.mxu0 0
        %1093 = vmatprep.mubr.bf16.mxu0 0
        %1094 = vmatmul.mubr.bf16.gmra.mrb[0].mxu0 %v1056
        %v1095 = vpop.f32.mrb[0].mxu0
        %v1096 = vadd.f32 0.0, %v1095
        %v1097 = vpop.f32.mrb[0].mxu0
        %v1098 = vpop.f32.mrb[0].mxu0
        %v1099 = vpop.f32.mrb[0].mxu0
        %1100 = vdwg.mxu0
        %v1102 = vsel %vm725, %v941, 0
        %v1105 = vsel %vm965, %v961, 0
        %1107 = vmatprep.subr.bf16.mxu0 0
        %1108 = vmatpush1.bf16.msra.mxu0 %v1105
        %1109 = vmatprep.subr.bf16.mxu0 0
        %1110 = vmatpush1.bf16.msra.mxu0 0
        %1111 = vmatprep.subr.bf16.mxu0 0
        %1112 = vmatpush1.bf16.msra.mxu0 0
        %1113 = vmatprep.subr.bf16.mxu0 0
        %1114 = vmatpush1.bf16.msra.mxu0 0
        %1115 = vmatprep.subr.bf16.mxu0 0
        %1116 = vmatpush1.bf16.msra.mxu0 0
        %1117 = vmatprep.subr.bf16.mxu0 0
        %1118 = vmatpush1.bf16.msra.mxu0 0
        %1119 = vmatprep.subr.bf16.mxu0 0
        %1120 = vmatpush1.bf16.msra.mxu0 0
        %1121 = vmatprep.subr.bf16.mxu0 0
        %1122 = vmatpush1.bf16.msra.mxu0 0
        %1123 = vmatprep.subr.bf16.mxu0 0
        %1124 = vmatpush1.bf16.msra.mxu0 0
        %1125 = vmatprep.subr.bf16.mxu0 0
        %1126 = vmatpush1.bf16.msra.mxu0 0
        %1127 = vmatprep.subr.bf16.mxu0 0
        %1128 = vmatpush1.bf16.msra.mxu0 0
        %1129 = vmatprep.subr.bf16.mxu0 0
        %1130 = vmatpush1.bf16.msra.mxu0 0
        %1131 = vmatprep.subr.bf16.mxu0 0
        %1132 = vmatpush1.bf16.msra.mxu0 0
        %1133 = vmatprep.subr.bf16.mxu0 0
        %1134 = vmatpush1.bf16.msra.mxu0 0
        %1135 = vmatprep.subr.bf16.mxu0 0
        %1136 = vmatpush1.bf16.msra.mxu0 0
        %1137 = vmatprep.subr.bf16.mxu0 0
        %1138 = vmatpush1.bf16.msra.mxu0 0
        %1139 = vmatprep.mubr.bf16.mxu0 0
        %1140 = vmatmul.mubr.bf16.gmra.mrb[0].mxu0 %v1102
        %v1141 = vpop.f32.mrb[0].mxu0
        %v1142 = vadd.f32 0.0, %v1141
        %v1143 = vpop.f32.mrb[0].mxu0
        %v1144 = vpop.f32.mrb[0].mxu0
        %v1145 = vpop.f32.mrb[0].mxu0
        %1146 = vdwg.mxu0
        %v1147 = vrcp.pop %v948
        %v1148 = vmul.f32 %v1004, %v1147
        %v1149 = vrcp.pop %v951
        %v1150 = vmul.f32 %v1050, %v1149
        %v1151 = vrcp.pop %v954
        %v1152 = vmul.f32 %v1096, %v1151
        %v1153 = vrcp.pop %v957
        %v1154 = vmul.f32 %v1142, %v1153
        %v1155 = vpack.c.bf16 %v1148, %v1148
        %v1156 = vpack.c.bf16 %v1150, %v1150
        %v1157 = vpack.c.bf16 %v1152, %v1152
        %v1158 = vpack.c.bf16 %v1154, %v1154
        %v1159 = vld [vmem:[#allocation9] sm:$0xf]
        %v1160 = vld [vmem:[#allocation9 + $0x4] sm:$0xf]
        %v1161 = vld [vmem:[#allocation9 + $0x8] sm:$0xf]
        %v1162 = vld [vmem:[#allocation9 + $0xc] sm:$0xf]
        %v1164 = vsel %vm725, %v1155, 0
        %v1167 = vsel %vm965, %v1159, 0
        %1169 = vmatprep.subr.bf16.mxu0 0
        %1170 = vmatpush1.bf16.msra.mxu0 %v1167
        %1171 = vmatprep.subr.bf16.mxu0 0
        %1172 = vmatpush1.bf16.msra.mxu0 0
        %1173 = vmatprep.subr.bf16.mxu0 0
        %1174 = vmatpush1.bf16.msra.mxu0 0
        %1175 = vmatprep.subr.bf16.mxu0 0
        %1176 = vmatpush1.bf16.msra.mxu0 0
        %1177 = vmatprep.subr.bf16.mxu0 0
        %1178 = vmatpush1.bf16.msra.mxu0 0
        %1179 = vmatprep.subr.bf16.mxu0 0
        %1180 = vmatpush1.bf16.msra.mxu0 0
        %1181 = vmatprep.subr.bf16.mxu0 0
        %1182 = vmatpush1.bf16.msra.mxu0 0
        %1183 = vmatprep.subr.bf16.mxu0 0
        %1184 = vmatpush1.bf16.msra.mxu0 0
        %1185 = vmatprep.subr.bf16.mxu0 0
        %1186 = vmatpush1.bf16.msra.mxu0 0
        %1187 = vmatprep.subr.bf16.mxu0 0
        %1188 = vmatpush1.bf16.msra.mxu0 0
        %1189 = vmatprep.subr.bf16.mxu0 0
        %1190 = vmatpush1.bf16.msra.mxu0 0
        %1191 = vmatprep.subr.bf16.mxu0 0
        %1192 = vmatpush1.bf16.msra.mxu0 0
        %1193 = vmatprep.subr.bf16.mxu0 0
        %1194 = vmatpush1.bf16.msra.mxu0 0
        %1195 = vmatprep.subr.bf16.mxu0 0
        %1196 = vmatpush1.bf16.msra.mxu0 0
        %1197 = vmatprep.subr.bf16.mxu0 0
        %1198 = vmatpush1.bf16.msra.mxu0 0
        %1199 = vmatprep.subr.bf16.mxu0 0
        %1200 = vmatpush1.bf16.msra.mxu0 0
        %1201 = vmatprep.mubr.bf16.mxu0 0
        %1202 = vmatmul.mubr.bf16.gmra.mrb[0].mxu0 %v1164
        %v1203 = vpop.f32.mrb[0].mxu0
        %v1204 = vadd.f32 0.0, %v1203
        %v1205 = vpop.f32.mrb[0].mxu0
        %v1206 = vpop.f32.mrb[0].mxu0
        %v1207 = vpop.f32.mrb[0].mxu0
        %1208 = vdwg.mxu0
        %v1210 = vsel %vm725, %v1156, 0
        %v1213 = vsel %vm965, %v1160, 0
        %1215 = vmatprep.subr.bf16.mxu0 0
        %1216 = vmatpush1.bf16.msra.mxu0 %v1213
        %1217 = vmatprep.subr.bf16.mxu0 0
        %1218 = vmatpush1.bf16.msra.mxu0 0
        %1219 = vmatprep.subr.bf16.mxu0 0
        %1220 = vmatpush1.bf16.msra.mxu0 0
        %1221 = vmatprep.subr.bf16.mxu0 0
        %1222 = vmatpush1.bf16.msra.mxu0 0
        %1223 = vmatprep.subr.bf16.mxu0 0
        %1224 = vmatpush1.bf16.msra.mxu0 0
        %1225 = vmatprep.subr.bf16.mxu0 0
        %1226 = vmatpush1.bf16.msra.mxu0 0
        %1227 = vmatprep.subr.bf16.mxu0 0
        %1228 = vmatpush1.bf16.msra.mxu0 0
        %1229 = vmatprep.subr.bf16.mxu0 0
        %1230 = vmatpush1.bf16.msra.mxu0 0
        %1231 = vmatprep.subr.bf16.mxu0 0
        %1232 = vmatpush1.bf16.msra.mxu0 0
        %1233 = vmatprep.subr.bf16.mxu0 0
        %1234 = vmatpush1.bf16.msra.mxu0 0
        %1235 = vmatprep.subr.bf16.mxu0 0
        %1236 = vmatpush1.bf16.msra.mxu0 0
        %1237 = vmatprep.subr.bf16.mxu0 0
        %1238 = vmatpush1.bf16.msra.mxu0 0
        %1239 = vmatprep.subr.bf16.mxu0 0
        %1240 = vmatpush1.bf16.msra.mxu0 0
        %1241 = vmatprep.subr.bf16.mxu0 0
        %1242 = vmatpush1.bf16.msra.mxu0 0
        %1243 = vmatprep.subr.bf16.mxu0 0
        %1244 = vmatpush1.bf16.msra.mxu0 0
        %1245 = vmatprep.subr.bf16.mxu0 0
        %1246 = vmatpush1.bf16.msra.mxu0 0
        %1247 = vmatprep.mubr.bf16.mxu0 0
        %1248 = vmatmul.mubr.bf16.gmra.mrb[0].mxu0 %v1210
        %v1249 = vpop.f32.mrb[0].mxu0
        %v1250 = vadd.f32 0.0, %v1249
        %v1251 = vpop.f32.mrb[0].mxu0
        %v1252 = vpop.f32.mrb[0].mxu0
        %v1253 = vpop.f32.mrb[0].mxu0
        %1254 = vdwg.mxu0
        %v1256 = vsel %vm725, %v1157, 0
        %v1259 = vsel %vm965, %v1161, 0
        %1261 = vmatprep.subr.bf16.mxu0 0
        %1262 = vmatpush1.bf16.msra.mxu0 %v1259
        %1263 = vmatprep.subr.bf16.mxu0 0
        %1264 = vmatpush1.bf16.msra.mxu0 0
        %1265 = vmatprep.subr.bf16.mxu0 0
        %1266 = vmatpush1.bf16.msra.mxu0 0
        %1267 = vmatprep.subr.bf16.mxu0 0
        %1268 = vmatpush1.bf16.msra.mxu0 0
        %1269 = vmatprep.subr.bf16.mxu0 0
        %1270 = vmatpush1.bf16.msra.mxu0 0
        %1271 = vmatprep.subr.bf16.mxu0 0
        %1272 = vmatpush1.bf16.msra.mxu0 0
        %1273 = vmatprep.subr.bf16.mxu0 0
        %1274 = vmatpush1.bf16.msra.mxu0 0
        %1275 = vmatprep.subr.bf16.mxu0 0
        %1276 = vmatpush1.bf16.msra.mxu0 0
        %1277 = vmatprep.subr.bf16.mxu0 0
        %1278 = vmatpush1.bf16.msra.mxu0 0
        %1279 = vmatprep.subr.bf16.mxu0 0
        %1280 = vmatpush1.bf16.msra.mxu0 0
        %1281 = vmatprep.subr.bf16.mxu0 0
        %1282 = vmatpush1.bf16.msra.mxu0 0
        %1283 = vmatprep.subr.bf16.mxu0 0
        %1284 = vmatpush1.bf16.msra.mxu0 0
        %1285 = vmatprep.subr.bf16.mxu0 0
        %1286 = vmatpush1.bf16.msra.mxu0 0
        %1287 = vmatprep.subr.bf16.mxu0 0
        %1288 = vmatpush1.bf16.msra.mxu0 0
        %1289 = vmatprep.subr.bf16.mxu0 0
        %1290 = vmatpush1.bf16.msra.mxu0 0
        %1291 = vmatprep.subr.bf16.mxu0 0
        %1292 = vmatpush1.bf16.msra.mxu0 0
        %1293 = vmatprep.mubr.bf16.mxu0 0
        %1294 = vmatmul.mubr.bf16.gmra.mrb[0].mxu0 %v1256
        %v1295 = vpop.f32.mrb[0].mxu0
        %v1296 = vadd.f32 0.0, %v1295
        %v1297 = vpop.f32.mrb[0].mxu0
        %v1298 = vpop.f32.mrb[0].mxu0
        %v1299 = vpop.f32.mrb[0].mxu0
        %1300 = vdwg.mxu0
        %v1302 = vsel %vm725, %v1158, 0
        %v1305 = vsel %vm965, %v1162, 0
        %1307 = vmatprep.subr.bf16.mxu0 0
        %1308 = vmatpush1.bf16.msra.mxu0 %v1305
        %1309 = vmatprep.subr.bf16.mxu0 0
        %1310 = vmatpush1.bf16.msra.mxu0 0
        %1311 = vmatprep.subr.bf16.mxu0 0
        %1312 = vmatpush1.bf16.msra.mxu0 0
        %1313 = vmatprep.subr.bf16.mxu0 0
        %1314 = vmatpush1.bf16.msra.mxu0 0
        %1315 = vmatprep.subr.bf16.mxu0 0
        %1316 = vmatpush1.bf16.msra.mxu0 0
        %1317 = vmatprep.subr.bf16.mxu0 0
        %1318 = vmatpush1.bf16.msra.mxu0 0
        %1319 = vmatprep.subr.bf16.mxu0 0
        %1320 = vmatpush1.bf16.msra.mxu0 0
        %1321 = vmatprep.subr.bf16.mxu0 0
        %1322 = vmatpush1.bf16.msra.mxu0 0
        %1323 = vmatprep.subr.bf16.mxu0 0
        %1324 = vmatpush1.bf16.msra.mxu0 0
        %1325 = vmatprep.subr.bf16.mxu0 0
        %1326 = vmatpush1.bf16.msra.mxu0 0
        %1327 = vmatprep.subr.bf16.mxu0 0
        %1328 = vmatpush1.bf16.msra.mxu0 0
        %1329 = vmatprep.subr.bf16.mxu0 0
        %1330 = vmatpush1.bf16.msra.mxu0 0
        %1331 = vmatprep.subr.bf16.mxu0 0
        %1332 = vmatpush1.bf16.msra.mxu0 0
        %1333 = vmatprep.subr.bf16.mxu0 0
        %1334 = vmatpush1.bf16.msra.mxu0 0
        %1335 = vmatprep.subr.bf16.mxu0 0
        %1336 = vmatpush1.bf16.msra.mxu0 0
        %1337 = vmatprep.subr.bf16.mxu0 0
        %1338 = vmatpush1.bf16.msra.mxu0 0
        %1339 = vmatprep.mubr.bf16.mxu0 0
        %1340 = vmatmul.mubr.bf16.gmra.mrb[0].mxu0 %v1302
        %v1341 = vpop.f32.mrb[0].mxu0
        %v1342 = vadd.f32 0.0, %v1341
        %v1343 = vpop.f32.mrb[0].mxu0
        %v1344 = vpop.f32.mrb[0].mxu0
        %v1345 = vpop.f32.mrb[0].mxu0
        %1346 = vdwg.mxu0
        %v1347 = vsel %vm668, %v1204, 0.0
        %v1348 = vsel %vm668, %v1250, 0.0
        %v1349 = vadd.f32 %v1347, %v1348
        %v1350 = vsel %vm668, %v1296, 0.0
        %v1351 = vadd.f32 %v1349, %v1350
        %v1352 = vsel %vm668, %v1342, 0.0
        %v1353 = vadd.f32 %v1351, %v1352
        %v1354 = vlaneseq
        %v1355 = vshrl.u32 %v1354, 7
        %v1356 = vsub.s32 0, %v1355
        %v1357 = vrot.slane %v479, %v1356
        %v1358 = vadd.f32 %v1353, %v1357
        %v1359 = vadd.f32 %v646, %v1358
        %v1360 = vsel %vm668, %v1359, 0.0
        %1361 = vadd.xlane.f32.xlu0 %v1360
        %v1362 = vpop.xlane.xlu0 %1361
        %v1363 = vrcp.pop 32.0
        %v1364 = vmul.f32 %v1362, %v1363
        %v1365 = vsub.f32 %v1359, %v1364
        %v1366 = vmul.f32 %v1365, %v1365
        %v1367 = vsel %vm668, %v1366, 0.0
        %1368 = vadd.xlane.f32.xlu0 %v1367
        %v1369 = vpop.xlane.xlu0 %1368
        %v1370 = vmul.f32 %v1369, %v1363
        %v1371 = vadd.f32 %v1370, 1e-05
        %v1372 = vrsqrt.pop %v1371
        %v1373 = vmul.f32 %v1365, %v1372
        %v1374 = vlaneseq
        %v1375 = vshrl.u32 %v1374, 7
        %v1376 = vsub.s32 0, %v1375
        %v1377 = vrot.slane %v481, %v1376
        %v1378 = vmul.f32 %v1373, %v1377
        %v1379 = vlaneseq
        %v1380 = vshrl.u32 %v1379, 7
        %v1381 = vsub.s32 0, %v1380
        %v1382 = vrot.slane %v482, %v1381
        %v1383 = vadd.f32 %v1378, %v1382
        %v1384 = vpack.c.bf16 %v1383, %v1383
        %v1385 = vld [vmem:[#allocation10] sm:$0xf]
        %v1386 = vld [vmem:[#allocation10 + $0x4] sm:$0xf]
        %v1387 = vld [vmem:[#allocation10 + $0x8] sm:$0xf]
        %v1388 = vld [vmem:[#allocation10 + $0xc] sm:$0xf]
        %v1390 = vlaneseq
        %v1391 = vshrl.u32 %v1390, 7
        %v1392 = vsub.s32 0, %v1391
        %v1393 = vrot.slane %v485, %v1392
        %v1399 = vunpack.c.l.b16 %v1385
        %v1400 = vunpack.c.l.b16 %v1386
        %v1401 = vunpack.c.l.b16 %v1387
        %v1402 = vunpack.c.l.b16 %v1388
        %v1403 = vpack.c.b16 %v1400, %v1399
        %v1404 = vpack.c.b16 %v1402, %v1401
        %v1408 = vsel %vm668, %v1384, 0
        %1410 = vmatprep.subr.bf16.mxu0 0
        %1411 = vmatpush1.bf16.msra.mxu0 %v1403
        %1412 = vmatprep.subr.bf16.mxu0 0
        %1413 = vmatpush1.bf16.msra.mxu0 %v1404
        %1414 = vmatprep.subr.bf16.mxu0 0
        %1415 = vmatpush1.bf16.msra.mxu0 0
        %1416 = vmatprep.subr.bf16.mxu0 0
        %1417 = vmatpush1.bf16.msra.mxu0 0
        %1418 = vmatprep.subr.bf16.mxu0 0
        %1419 = vmatpush1.bf16.msra.mxu0 0
        %1420 = vmatprep.subr.bf16.mxu0 0
        %1421 = vmatpush1.bf16.msra.mxu0 0
        %1422 = vmatprep.subr.bf16.mxu0 0
        %1423 = vmatpush1.bf16.msra.mxu0 0
        %1424 = vmatprep.subr.bf16.mxu0 0
        %1425 = vmatpush1.bf16.msra.mxu0 0
        %1426 = vmatprep.subr.bf16.mxu0 0
        %1427 = vmatpush1.bf16.msra.mxu0 0
        %1428 = vmatprep.subr.bf16.mxu0 0
        %1429 = vmatpush1.bf16.msra.mxu0 0
        %1430 = vmatprep.subr.bf16.mxu0 0
        %1431 = vmatpush1.bf16.msra.mxu0 0
        %1432 = vmatprep.subr.bf16.mxu0 0
        %1433 = vmatpush1.bf16.msra.mxu0 0
        %1434 = vmatprep.subr.bf16.mxu0 0
        %1435 = vmatpush1.bf16.msra.mxu0 0
        %1436 = vmatprep.subr.bf16.mxu0 0
        %1437 = vmatpush1.bf16.msra.mxu0 0
        %1438 = vmatprep.subr.bf16.mxu0 0
        %1439 = vmatpush1.bf16.msra.mxu0 0
        %1440 = vmatprep.subr.bf16.mxu0 0
        %1441 = vmatpush1.bf16.msra.mxu0 0
        %1442 = vmatprep.mubr.bf16.mxu0 0
        %1443 = vmatmul.mubr.bf16.gmra.mrb[0].mxu0 %v1408
        %v1444 = vpop.f32.mrb[0].mxu0
        %v1445 = vadd.f32 %v1393, %v1444
        %v1446 = vpop.f32.mrb[0].mxu0
        %v1447 = vpop.f32.mrb[0].mxu0
        %v1448 = vpop.f32.mrb[0].mxu0
        %1449 = vdwg.mxu0
        %v1450 = vmax.f32 %v1445, 0.0
        %v1451 = vpack.c.bf16 %v1450, %v1450
        %v1452 = vld [vmem:[%s7] sm:$0xf]
        %v1453 = vld [vmem:[%s7 + $0x4] sm:$0xf]
        %v1454 = vld [vmem:[%s7 + $0x8] sm:$0xf]
        %v1455 = vld [vmem:[%s7 + $0xc] sm:$0xf]
        %v1456 = vld [vmem:[%s7 + $0x10] sm:$0xf]
        %v1457 = vld [vmem:[%s7 + $0x14] sm:$0xf]
        %v1458 = vld [vmem:[%s7 + $0x18] sm:$0xf]
        %v1459 = vld [vmem:[%s7 + $0x1c] sm:$0xf]
        %v1460 = vlaneseq
        %v1461 = vshrl.u32 %v1460, 7
        %v1462 = vsub.s32 0, %v1461
        %v1463 = vrot.slane %v480, %v1462
        %v1472 = vunpack.c.l.b16 %v1452
        %v1473 = vunpack.c.l.b16 %v1453
        %v1474 = vunpack.c.l.b16 %v1454
        %v1475 = vunpack.c.l.b16 %v1455
        %v1476 = vunpack.c.l.b16 %v1456
        %v1477 = vunpack.c.l.b16 %v1457
        %v1478 = vunpack.c.l.b16 %v1458
        %v1479 = vunpack.c.l.b16 %v1459
        %v1480 = vpack.c.b16 %v1473, %v1472
        %v1481 = vpack.c.b16 %v1475, %v1474
        %v1482 = vpack.c.b16 %v1477, %v1476
        %v1483 = vpack.c.b16 %v1479, %v1478
        %vm1488 = vcmask 523264
        %v1490 = vsel %vm1488, %v1451, 0
        %1492 = vmatprep.subr.bf16.mxu0 0
        %1493 = vmatpush1.bf16.msra.mxu0 %v1480
        %1494 = vmatprep.subr.bf16.mxu0 0
        %1495 = vmatpush1.bf16.msra.mxu0 %v1481
        %1496 = vmatprep.subr.bf16.mxu0 0
        %1497 = vmatpush1.bf16.msra.mxu0 %v1482
        %1498 = vmatprep.subr.bf16.mxu0 0
        %1499 = vmatpush1.bf16.msra.mxu0 %v1483
        %1500 = vmatprep.subr.bf16.mxu0 0
        %1501 = vmatpush1.bf16.msra.mxu0 0
        %1502 = vmatprep.subr.bf16.mxu0 0
        %1503 = vmatpush1.bf16.msra.mxu0 0
        %1504 = vmatprep.subr.bf16.mxu0 0
        %1505 = vmatpush1.bf16.msra.mxu0 0
        %1506 = vmatprep.subr.bf16.mxu0 0
        %1507 = vmatpush1.bf16.msra.mxu0 0
        %1508 = vmatprep.subr.bf16.mxu0 0
        %1509 = vmatpush1.bf16.msra.mxu0 0
        %1510 = vmatprep.subr.bf16.mxu0 0
        %1511 = vmatpush1.bf16.msra.mxu0 0
        %1512 = vmatprep.subr.bf16.mxu0 0
        %1513 = vmatpush1.bf16.msra.mxu0 0
        %1514 = vmatprep.subr.bf16.mxu0 0
        %1515 = vmatpush1.bf16.msra.mxu0 0
        %1516 = vmatprep.subr.bf16.mxu0 0
        %1517 = vmatpush1.bf16.msra.mxu0 0
        %1518 = vmatprep.subr.bf16.mxu0 0
        %1519 = vmatpush1.bf16.msra.mxu0 0
        %1520 = vmatprep.subr.bf16.mxu0 0
        %1521 = vmatpush1.bf16.msra.mxu0 0
        %1522 = vmatprep.subr.bf16.mxu0 0
        %1523 = vmatpush1.bf16.msra.mxu0 0
        %1524 = vmatprep.mubr.bf16.mxu0 0
        %1525 = vmatmul.mubr.bf16.gmra.mrb[0].mxu0 %v1490
        %v1526 = vpop.f32.mrb[0].mxu0
        %v1527 = vadd.f32 %v1463, %v1526
        %v1528 = vpop.f32.mrb[0].mxu0
        %v1529 = vpop.f32.mrb[0].mxu0
        %v1530 = vpop.f32.mrb[0].mxu0
        %1531 = vdwg.mxu0
        %v1532 = vadd.f32 %v1383, %v1527
        %v1533 = vsel %vm668, %v1532, 0.0
        %1534 = vadd.xlane.f32.xlu0 %v1533
        %v1535 = vpop.xlane.xlu0 %1534
        %v1536 = vmul.f32 %v1535, %v1363
        %v1537 = vsub.f32 %v1532, %v1536
        %v1538 = vmul.f32 %v1537, %v1537
        %v1539 = vsel %vm668, %v1538, 0.0
        %1540 = vadd.xlane.f32.xlu0 %v1539
        %v1541 = vpop.xlane.xlu0 %1540
        %v1542 = vmul.f32 %v1541, %v1363
        %v1543 = vadd.f32 %v1542, 1e-05
        %v1544 = vrsqrt.pop %v1543
        %v1545 = vmul.f32 %v1537, %v1544
        %v1546 = vlaneseq
        %v1547 = vshrl.u32 %v1546, 7
        %v1548 = vsub.s32 0, %v1547
        %v1549 = vrot.slane %v483, %v1548
        %v1550 = vmul.f32 %v1545, %v1549
        %v1551 = vlaneseq
        %v1552 = vshrl.u32 %v1551, 7
        %v1553 = vsub.s32 0, %v1552
        %v1554 = vrot.slane %v484, %v1553
        %v1555 = vadd.f32 %v1550, %v1554
        %1556 = vst.msk [vmem:[%s467] sm:$0xff] %vm668, %v1555
        %s1557 = sand.u32 %s273, 1
        %s1558 = scalar_lea.sflag [#allocation6], %s1557
        %s1559 = sand.u32 %s273, 1
        %s1560 = smul.addr %s1559, 8
        %s1561 = scalar_lea.vmem [#allocation13], %s1560
        // Predicated region
        $region85: #{tpu_custom_call.1} parent=59 // pred_check
          %p1562 = pneg %p283
        $region86: #{tpu_custom_call.1} parent=59 // pred_check_branch
          %1564 = sbr.rel (%p1562) target = $region88
        $region87: #{tpu_custom_call.1} parent=59 // pred_region
          %s1566 = ssub.s32 128, 128
          %1567 = vsyncadd %s1558, %s1566
          %s1568 = sadd.s32 %s34, %s33
          %s1569 = smul.addr %s1568, 128
          %s1570 = scalar_lea.hbm %s10, %s1569
          %s1572 = sshll.u32 %s1561, 4
          %s1573 = int_to_ptr.vmem [resolvable:$true] %s1572
          %1575 = dma.vmem_to_hbm [thread:$0]  %s1573, 128, %s1570, %s1558
        $region88: #{tpu_custom_call.1} parent=59 // pred_fallthru
          _
      $region60: #{tpu_custom_call.1} parent=5 // pred_fallthru
        _
      %p1576 = scmp.le.s32.totalorder 2, %s24
      // Predicated region
      $region89: #{tpu_custom_call.1} parent=5 // pred_check
        %p1577 = pneg %p1576
      $region90: #{tpu_custom_call.1} parent=5 // pred_check_branch
        %1579 = sbr.rel (%p1577) target = $region92
      $region91: #{tpu_custom_call.1} parent=5 // pred_region
        %s1580 = ssub.s32 %s24, 2
        // Predicated region
        $region93: #{tpu_custom_call.1} parent=91 // pred_check
          %p1581 = pneg %p289
        $region94: #{tpu_custom_call.1} parent=91 // pred_check_branch
          %1583 = sbr.rel (%p1581) target = $region96
        $region95: #{tpu_custom_call.1} parent=91 // pred_region
          %s1584 = sand.u32 %s274, 1
          %s1585 = scalar_lea.sflag [#allocation6], %s1584
          %s1586 = sand.u32 %s274, 1
          %s1587 = smul.addr %s1586, 8
          %s1588 = scalar_lea.vmem [#allocation13], %s1587
          %1589 = dma.done %s1585, 128
        $region96: #{tpu_custom_call.1} parent=91 // pred_fallthru
          _
      $region92: #{tpu_custom_call.1} parent=5 // pred_fallthru
        _
    $region6: #{tpu_custom_call.1} parent=1 // loop_footer
      %s28 = sadd.s32 1, %s24
    $region7: #{tpu_custom_call.1} parent=1 // loop_footer_branch
      %23 = sbr.rel target = $region3
    $region8: #{tpu_custom_call.1} parent=1 // loop_exit
      _
    %1590 = vsyncpa [#allocation5], 1
    %s1591 = scalar_lea.sflag [#allocation5], 1
    %1592 = vsyncpa %s1591, 1
    %1593 = vsyncpa [#allocation8], 1
    %1594 = vsyncpa [#allocation11], 1
    %1595 = vsyncpa [#allocation6], 1
    %s1596 = scalar_lea.sflag [#allocation6], 1
    %1597 = vsyncpa %s1596, 1

// kernel: tpu_custom_call.1
$region0: #{tpu_custom_call.1}
  #allocation0 [shape = 'u32[]', space=smem, size = 0x4, offset = 0x4, fixed_abs, tag = 'smem constant byte address 0x4 - core index']
  #allocation1 [shape = 'u32[144,128]{1,0:T(1,128)}', space=vmem, size = 0x12000, scoped, tag = 'internal scratch']
  #allocation2 [shape = 'bf16[4,8,8]{2,1,0:T(8,128)(2,1)}', space=vmem, size = 0x2000, scoped, tag = 'scratch operand']
  #allocation3 [shape = 'bf16[4,8,8]{2,1,0:T(8,128)(2,1)}', space=vmem, size = 0x2000, scoped, tag = 'scratch operand']
  %s0 = inlined_call_operand.vmem [shape: f32[2,8,32], index: 0, kind: input, shape index: {}]
  %s1 = inlined_call_operand.hbm [shape: bf16[2,8,32], index: 1, kind: input, shape index: {}]
  %s2 = inlined_call_operand.vmem [shape: bf16[32,32], index: 2, kind: input, shape index: {}]
  %s3 = inlined_call_operand.vmem [shape: bf16[32,32], index: 3, kind: input, shape index: {}]
  %s4 = inlined_call_operand.hbm [shape: bf16[32,32], index: 4, kind: input, shape index: {}]
  %s5 = inlined_call_operand.hbm [shape: bf16[4,8,32], index: 5, kind: input, shape index: {}]
  %s6 = inlined_call_operand.hbm [shape: bf16[32,64], index: 6, kind: input, shape index: {}]
  %s7 = inlined_call_operand.vmem [shape: bf16[64,32], index: 7, kind: input, shape index: {}]
  %s8 = inlined_call_operand.hbm [shape: f32[9,32], index: 8, kind: input, shape index: {}]
  %s9 = inlined_call_operand.vmem [shape: f32[1,64], index: 9, kind: input, shape index: {}]
  %s10 = inlined_call_operand.hbm [shape: f32[2,8,32], index: 10, kind: output, shape index: {}]
  %s11 = sld [smem:[#allocation0]]
  $region97: #{tpu_custom_call.1} parent=0
    _
  %s13 = ssub.s32 1, %s11
  %s14 = scalar_select 0, %s13, %s11
  $region1: #{tpu_custom_call.1} parent=0
    #allocation4 [shape = 'u8[4096]{0}', space=vmem, size = 0x1000, scoped, tag = 'input window, operand 1']
    #allocation5 [shape = 's32[2]{0}', space=sflag, size = 0x8, scoped, tag = 'scoped memory for tpu_custom_call.1']
    #allocation6 [shape = 's32[2]{0}', space=sflag, size = 0x8, scoped, tag = 'scoped memory for tpu_custom_call.1']
    #allocation7 [shape = 'u8[8192]{0}', space=vmem, size = 0x2000, scoped, tag = 'input window, operand 4, single buffered']
    #allocation8 [shape = 's32[1]{0}', space=sflag, size = 0x4, scoped, tag = 'scoped memory for tpu_custom_call.1']
    #allocation9 [shape = 'u8[8192]{0}', space=vmem, size = 0x2000, scoped, tag = 'input window, operand 5, single buffered']
    #allocation10 [shape = 'u8[8192]{0}', space=vmem, size = 0x2000, scoped, tag = 'input window, operand 6, single buffered']
    #allocation11 [shape = 's32[1]{0}', space=sflag, size = 0x4, scoped, tag = 'scoped memory for tpu_custom_call.1']
    #allocation12 [shape = 'u8[8192]{0}', space=vmem, size = 0x2000, scoped, tag = 'input window, operand 8, single buffered']
    #allocation13 [shape = 'u8[8192]{0}', space=vmem, size = 0x2000, scoped, tag = 'output window, operand 0']
    %15 = vsyncpa [#allocation5], 0
    %s16 = scalar_lea.sflag [#allocation5], 1
    %17 = vsyncpa %s16, 0
    %18 = vsyncpa [#allocation8], 0
    %19 = vsyncpa [#allocation11], 0
    %20 = vsyncpa [#allocation6], 0
    %s21 = scalar_lea.sflag [#allocation6], 1
    %22 = vsyncpa %s21, 0
    loop: start=0, step=1, limit=4
    $region2: #{tpu_custom_call.1} parent=1 // loop_pre_header
      _
    $region3: #{tpu_custom_call.1} parent=1 // loop_header
      %s24 = sphi 0, %s28
      %p25 = scmp.ge.s32.totalorder %s24, 4
      %s31 = sphi 0, %s43
      %s32 = sphi 0, %s39
      %s33 = sphi 0, %s31
      %s34 = sphi 0, %s32
      %s35 = sphi 0, %s33
      %s36 = sphi 0, %s34
      %s48 = sphi 0, %s50
      %s51 = sphi 0, %s48
      %s52 = sphi 0, %s51
      %s68 = sphi 0, %s52
      %s74 = sphi 0, %s76
      %s77 = sphi 0, %s74
      %s78 = sphi 0, %s77
      %s94 = sphi 0, %s78
      %s98 = sphi 0, %s98
      %s100 = sphi 0, %s98
      %s101 = sphi 0, %s100
      %s115 = sphi 0, %s101
      %s119 = sphi 0, %s119
      %s121 = sphi 0, %s119
      %s122 = sphi 0, %s121
      %s136 = sphi 0, %s122
      %s140 = sphi 0, %s140
      %s142 = sphi 0, %s140
      %s143 = sphi 0, %s142
      %s157 = sphi 0, %s143
      %s161 = sphi 0, %s161
      %s163 = sphi 0, %s161
      %s164 = sphi 0, %s163
      %s178 = sphi 0, %s164
      %s182 = sphi 0, %s182
      %s184 = sphi 0, %s182
      %s185 = sphi 0, %s184
      %s199 = sphi 0, %s185
      %s203 = sphi 0, %s203
      %s205 = sphi 0, %s203
      %s206 = sphi 0, %s205
      %s220 = sphi 0, %s206
      %s224 = sphi 0, %s224
      %s226 = sphi 0, %s224
      %s227 = sphi 0, %s226
      %s241 = sphi 0, %s227
      %s245 = sphi 0, %s245
      %s247 = sphi 0, %s245
      %s248 = sphi 0, %s247
      %s262 = sphi 0, %s248
      %s270 = sphi 0, %s272
      %s273 = sphi 0, %s270
      %s274 = sphi 0, %s273
      %s290 = sphi 0, %s274
    $region4: #{tpu_custom_call.1} parent=1 // loop_header_branch
      %27 = sbr.rel (%p25) target = $region8
    $region5: #{tpu_custom_call.1} parent=1 // loop_body
      %s29 = ssub.s32 %s24, 1
      %s30 = ssub.s32 %s24, 2
      %s37 = sadd.s32 1, %s32
      %p38 = scmp.ge.s32.totalorder %s37, 1
      %s39 = scalar_select %p38, 0, %s37
      %s40 = sadd.s32 1, %s31
      %s41 = scalar_select %p38, %s40, %s31
      %p42 = scmp.ge.s32.totalorder %s41, 2
      %s43 = scalar_select %p42, 0, %s41
      %s44 = ssub.s32 %s31, %s43
      %s45 = ssub.s32 %s32, %s39
      %s46 = sor.u32 %s44, %s45
      %p47 = scmp.eq.s32.totalorder %s46, 0
      %s49 = sadd.s32 %s48, 1
      %s50 = scalar_select %p47, %s48, %s49
      %p53 = pneg %p47
      %p54 = scmp.eq.s32.totalorder %s24, 1
      %p55 = por %p53, %p54
      %p56 = scmp.ne.s32.totalorder %s48, %s51
      %p57 = scmp.eq.s32.totalorder %s24, 0
      %p58 = por %p56, %p57
      %p59 = scmp.ne.s32.totalorder %s48, %s51
      %p60 = scmp.eq.s32.totalorder %s29, 1
      %p61 = por %p59, %p60
      %p62 = scmp.ne.s32.totalorder %s51, %s52
      %p63 = scmp.eq.s32.totalorder %s29, 0
      %p64 = por %p62, %p63
      %p65 = scmp.ne.s32.totalorder %s51, %s52
      %p66 = scmp.eq.s32.totalorder %s30, 1
      %p67 = por %p65, %p66
      %p69 = scmp.ne.s32.totalorder %s52, %s68
      %p70 = scmp.eq.s32.totalorder %s30, 0
      %p71 = por %p69, %p70
      %s72 = ssub.s32 %s31, %s43
      %p73 = scmp.eq.s32.totalorder %s72, 0
      %s75 = sadd.s32 %s74, 1
      %s76 = scalar_select %p73, %s74, %s75
      %p79 = pneg %p73
      %p80 = scmp.eq.s32.totalorder %s24, 1
      %p81 = por %p79, %p80
      %p82 = scmp.ne.s32.totalorder %s74, %s77
      %p83 = scmp.eq.s32.totalorder %s24, 0
      %p84 = por %p82, %p83
      %p85 = scmp.ne.s32.totalorder %s74, %s77
      %p86 = scmp.eq.s32.totalorder %s29, 1
      %p87 = por %p85, %p86
      %p88 = scmp.ne.s32.totalorder %s77, %s78
      %p89 = scmp.eq.s32.totalorder %s29, 0
      %p90 = por %p88, %p89
      %p91 = scmp.ne.s32.totalorder %s77, %s78
      %p92 = scmp.eq.s32.totalorder %s30, 1
      %p93 = por %p91, %p92
      %p95 = scmp.ne.s32.totalorder %s78, %s94
      %p96 = scmp.eq.s32.totalorder %s30, 0
      %p97 = por %p95, %p96
      %s99 = sadd.s32 %s98, 1
      %p102 = scmp.eq.s32.totalorder %s24, 1
      %p103 = scmp.ne.s32.totalorder %s98, %s100
      %p104 = scmp.eq.s32.totalorder %s24, 0
      %p105 = por %p103, %p104
      %p106 = scmp.ne.s32.totalorder %s98, %s100
      %p107 = scmp.eq.s32.totalorder %s29, 1
      %p108 = por %p106, %p107
      %p109 = scmp.ne.s32.totalorder %s100, %s101
      %p110 = scmp.eq.s32.totalorder %s29, 0
      %p111 = por %p109, %p110
      %p112 = scmp.ne.s32.totalorder %s100, %s101
      %p113 = scmp.eq.s32.totalorder %s30, 1
      %p114 = por %p112, %p113
      %p116 = scmp.ne.s32.totalorder %s101, %s115
      %p117 = scmp.eq.s32.totalorder %s30, 0
      %p118 = por %p116, %p117
      %s120 = sadd.s32 %s119, 1
      %p123 = scmp.eq.s32.totalorder %s24, 1
      %p124 = scmp.ne.s32.totalorder %s119, %s121
      %p125 = scmp.eq.s32.totalorder %s24, 0
      %p126 = por %p124, %p125
      %p127 = scmp.ne.s32.totalorder %s119, %s121
      %p128 = scmp.eq.s32.totalorder %s29, 1
      %p129 = por %p127, %p128
      %p130 = scmp.ne.s32.totalorder %s121, %s122
      %p131 = scmp.eq.s32.totalorder %s29, 0
      %p132 = por %p130, %p131
      %p133 = scmp.ne.s32.totalorder %s121, %s122
      %p134 = scmp.eq.s32.totalorder %s30, 1
      %p135 = por %p133, %p134
      %p137 = scmp.ne.s32.totalorder %s122, %s136
      %p138 = scmp.eq.s32.totalorder %s30, 0
      %p139 = por %p137, %p138
      %s141 = sadd.s32 %s140, 1
      %p144 = scmp.eq.s32.totalorder %s24, 1
      %p145 = scmp.ne.s32.totalorder %s140, %s142
      %p146 = scmp.eq.s32.totalorder %s24, 0
      %p147 = por %p145, %p146
      %p148 = scmp.ne.s32.totalorder %s140, %s142
      %p149 = scmp.eq.s32.totalorder %s29, 1
      %p150 = por %p148, %p149
      %p151 = scmp.ne.s32.totalorder %s142, %s143
      %p152 = scmp.eq.s32.totalorder %s29, 0
      %p153 = por %p151, %p152
      %p154 = scmp.ne.s32.totalorder %s142, %s143
      %p155 = scmp.eq.s32.totalorder %s30, 1
      %p156 = por %p154, %p155
      %p158 = scmp.ne.s32.totalorder %s143, %s157
      %p159 = scmp.eq.s32.totalorder %s30, 0
      %p160 = por %p158, %p159
      %s162 = sadd.s32 %s161, 1
      %p165 = scmp.eq.s32.totalorder %s24, 1
      %p166 = scmp.ne.s32.totalorder %s161, %s163
      %p167 = scmp.eq.s32.totalorder %s24, 0
      %p168 = por %p166, %p167
      %p169 = scmp.ne.s32.totalorder %s161, %s163
      %p170 = scmp.eq.s32.totalorder %s29, 1
      %p171 = por %p169, %p170
      %p172 = scmp.ne.s32.totalorder %s163, %s164
      %p173 = scmp.eq.s32.totalorder %s29, 0
      %p174 = por %p172, %p173
      %p175 = scmp.ne.s32.totalorder %s163, %s164
      %p176 = scmp.eq.s32.totalorder %s30, 1
      %p177 = por %p175, %p176
      %p179 = scmp.ne.s32.totalorder %s164, %s178
      %p180 = scmp.eq.s32.totalorder %s30, 0
      %p181 = por %p179, %p180
      %s183 = sadd.s32 %s182, 1
      %p186 = scmp.eq.s32.totalorder %s24, 1
      %p187 = scmp.ne.s32.totalorder %s182, %s184
      %p188 = scmp.eq.s32.totalorder %s24, 0
      %p189 = por %p187, %p188
      %p190 = scmp.ne.s32.totalorder %s182, %s184
      %p191 = scmp.eq.s32.totalorder %s29, 1
      %p192 = por %p190, %p191
      %p193 = scmp.ne.s32.totalorder %s184, %s185
      %p194 = scmp.eq.s32.totalorder %s29, 0
      %p195 = por %p193, %p194
      %p196 = scmp.ne.s32.totalorder %s184, %s185
      %p197 = scmp.eq.s32.totalorder %s30, 1
      %p198 = por %p196, %p197
      %p200 = scmp.ne.s32.totalorder %s185, %s199
      %p201 = scmp.eq.s32.totalorder %s30, 0
      %p202 = por %p200, %p201
      %s204 = sadd.s32 %s203, 1
      %p207 = scmp.eq.s32.totalorder %s24, 1
      %p208 = scmp.ne.s32.totalorder %s203, %s205
      %p209 = scmp.eq.s32.totalorder %s24, 0
      %p210 = por %p208, %p209
      %p211 = scmp.ne.s32.totalorder %s203, %s205
      %p212 = scmp.eq.s32.totalorder %s29, 1
      %p213 = por %p211, %p212
      %p214 = scmp.ne.s32.totalorder %s205, %s206
      %p215 = scmp.eq.s32.totalorder %s29, 0
      %p216 = por %p214, %p215
      %p217 = scmp.ne.s32.totalorder %s205, %s206
      %p218 = scmp.eq.s32.totalorder %s30, 1
      %p219 = por %p217, %p218
      %p221 = scmp.ne.s32.totalorder %s206, %s220
      %p222 = scmp.eq.s32.totalorder %s30, 0
      %p223 = por %p221, %p222
      %s225 = sadd.s32 %s224, 1
      %p228 = scmp.eq.s32.totalorder %s24, 1
      %p229 = scmp.ne.s32.totalorder %s224, %s226
      %p230 = scmp.eq.s32.totalorder %s24, 0
      %p231 = por %p229, %p230
      %p232 = scmp.ne.s32.totalorder %s224, %s226
      %p233 = scmp.eq.s32.totalorder %s29, 1
      %p234 = por %p232, %p233
      %p235 = scmp.ne.s32.totalorder %s226, %s227
      %p236 = scmp.eq.s32.totalorder %s29, 0
      %p237 = por %p235, %p236
      %p238 = scmp.ne.s32.totalorder %s226, %s227
      %p239 = scmp.eq.s32.totalorder %s30, 1
      %p240 = por %p238, %p239
      %p242 = scmp.ne.s32.totalorder %s227, %s241
      %p243 = scmp.eq.s32.totalorder %s30, 0
      %p244 = por %p242, %p243
      %s246 = sadd.s32 %s245, 1
      %p249 = scmp.eq.s32.totalorder %s24, 1
      %p250 = scmp.ne.s32.totalorder %s245, %s247
      %p251 = scmp.eq.s32.totalorder %s24, 0
      %p252 = por %p250, %p251
      %p253 = scmp.ne.s32.totalorder %s245, %s247
      %p254 = scmp.eq.s32.totalorder %s29, 1
      %p255 = por %p253, %p254
      %p256 = scmp.ne.s32.totalorder %s247, %s248
      %p257 = scmp.eq.s32.totalorder %s29, 0
      %p258 = por %p256, %p257
      %p259 = scmp.ne.s32.totalorder %s247, %s248
      %p260 = scmp.eq.s32.totalorder %s30, 1
      %p261 = por %p259, %p260
      %p263 = scmp.ne.s32.totalorder %s248, %s262
      %p264 = scmp.eq.s32.totalorder %s30, 0
      %p265 = por %p263, %p264
      %s266 = ssub.s32 %s31, %s43
      %s267 = ssub.s32 %s32, %s39
      %s268 = sor.u32 %s266, %s267
      %p269 = scmp.eq.s32.totalorder %s268, 0
      %s271 = sadd.s32 %s270, 1
      %s272 = scalar_select %p269, %s270, %s271
      %p275 = pneg %p269
      %p276 = scmp.eq.s32.totalorder %s24, 1
      %p277 = por %p275, %p276
      %p278 = scmp.ne.s32.totalorder %s270, %s273
      %p279 = scmp.eq.s32.totalorder %s24, 0
      %p280 = por %p278, %p279
      %p281 = scmp.ne.s32.totalorder %s270, %s273
      %p282 = scmp.eq.s32.totalorder %s29, 1
      %p283 = por %p281, %p282
      %p284 = scmp.ne.s32.totalorder %s273, %s274
      %p285 = scmp.eq.s32.totalorder %s29, 0
      %p286 = por %p284, %p285
      %p287 = scmp.ne.s32.totalorder %s273, %s274
      %p288 = scmp.eq.s32.totalorder %s30, 1
      %p289 = por %p287, %p288
      %p291 = scmp.ne.s32.totalorder %s274, %s290
      %p292 = scmp.eq.s32.totalorder %s30, 0
      %p293 = por %p291, %p292
      %p294 = scmp.le.s32.totalorder 1, %s24
      %p295 = scmp.lt.s32.totalorder %s24, 3
      %p296 = pnand %p294, %p295
      %p297 = pneg %p296
      // Predicated region
      $region9: #{tpu_custom_call.1} parent=5 // pred_check
        _
      $region10: #{tpu_custom_call.1} parent=5 // pred_check_branch
        %299 = sbr.rel (%p296) target = $region12
      $region11: #{tpu_custom_call.1} parent=5 // pred_region
        %s300 = ssub.s32 %s24, 1
        // Predicated region
        $region13: #{tpu_custom_call.1} parent=11 // pred_check
          %p301 = pneg %p111
        $region14: #{tpu_custom_call.1} parent=11 // pred_check_branch
          %303 = sbr.rel (%p301) target = $region16
        $region15: #{tpu_custom_call.1} parent=11 // pred_region
          _
        $region16: #{tpu_custom_call.1} parent=11 // pred_fallthru
          _
        // Predicated region
        $region17: #{tpu_custom_call.1} parent=11 // pred_check
          %p304 = pneg %p132
        $region18: #{tpu_custom_call.1} parent=11 // pred_check_branch
          %306 = sbr.rel (%p304) target = $region20
        $region19: #{tpu_custom_call.1} parent=11 // pred_region
          _
        $region20: #{tpu_custom_call.1} parent=11 // pred_fallthru
          _
        // Predicated region
        $region21: #{tpu_custom_call.1} parent=11 // pred_check
          %p307 = pneg %p153
        $region22: #{tpu_custom_call.1} parent=11 // pred_check_branch
          %309 = sbr.rel (%p307) target = $region24
        $region23: #{tpu_custom_call.1} parent=11 // pred_region
          %s311 = ssub.s32 256, 256
          %312 = vsyncadd [#allocation8], %s311
          %s313 = sshll.u32 [#allocation7], 4
          %s314 = int_to_ptr.vmem [resolvable:$true] %s313
          %319 = dma.hbm_to_vmem [thread:$0]  %s4, 256, %s314, [#allocation8], 64, 64, 4
        $region24: #{tpu_custom_call.1} parent=11 // pred_fallthru
          _
        // Predicated region
        $region25: #{tpu_custom_call.1} parent=11 // pred_check
          %p320 = pneg %p174
        $region26: #{tpu_custom_call.1} parent=11 // pred_check_branch
          %322 = sbr.rel (%p320) target = $region28
        $region27: #{tpu_custom_call.1} parent=11 // pred_region
          %s324 = ssub.s32 256, 256
          %325 = vsyncadd [#allocation8], %s324
          %s326 = sshll.u32 [#allocation9], 4
          %s327 = int_to_ptr.vmem [resolvable:$true] %s326
          %332 = dma.hbm_to_vmem [thread:$0]  %s5, 256, %s327, [#allocation8], 64, 64, 4
        $region28: #{tpu_custom_call.1} parent=11 // pred_fallthru
          _
        // Predicated region
        $region29: #{tpu_custom_call.1} parent=11 // pred_check
          %p333 = pneg %p195
        $region30: #{tpu_custom_call.1} parent=11 // pred_check_branch
          %335 = sbr.rel (%p333) target = $region32
        $region31: #{tpu_custom_call.1} parent=11 // pred_region
          %s337 = ssub.s32 256, 256
          %338 = vsyncadd [#allocation11], %s337
          %s339 = sshll.u32 [#allocation10], 4
          %s340 = int_to_ptr.vmem [resolvable:$true] %s339
          %345 = dma.hbm_to_vmem [thread:$0]  %s6, 256, %s340, [#allocation11], 64, 64, 4
        $region32: #{tpu_custom_call.1} parent=11 // pred_fallthru
          _
        // Predicated region
        $region33: #{tpu_custom_call.1} parent=11 // pred_check
          %p346 = pneg %p216
        $region34: #{tpu_custom_call.1} parent=11 // pred_check_branch
          %348 = sbr.rel (%p346) target = $region36
        $region35: #{tpu_custom_call.1} parent=11 // pred_region
          _
        $region36: #{tpu_custom_call.1} parent=11 // pred_fallthru
          _
        // Predicated region
        $region37: #{tpu_custom_call.1} parent=11 // pred_check
          %p349 = pneg %p237
        $region38: #{tpu_custom_call.1} parent=11 // pred_check_branch
          %351 = sbr.rel (%p349) target = $region40
        $region39: #{tpu_custom_call.1} parent=11 // pred_region
          %s353 = ssub.s32 256, 256
          %354 = vsyncadd [#allocation11], %s353
          %s355 = sshll.u32 [#allocation12], 4
          %s356 = int_to_ptr.vmem [resolvable:$true] %s355
          %361 = dma.hbm_to_vmem [thread:$0]  %s8, 256, %s356, [#allocation11], 128, 128, 8
        $region40: #{tpu_custom_call.1} parent=11 // pred_fallthru
          _
        // Predicated region
        $region41: #{tpu_custom_call.1} parent=11 // pred_check
          %p362 = pneg %p258
        $region42: #{tpu_custom_call.1} parent=11 // pred_check_branch
          %364 = sbr.rel (%p362) target = $region44
        $region43: #{tpu_custom_call.1} parent=11 // pred_region
          _
        $region44: #{tpu_custom_call.1} parent=11 // pred_fallthru
          _
      $region12: #{tpu_custom_call.1} parent=5 // pred_fallthru
        _
      %p365 = scmp.lt.s32.totalorder %s24, 2
      // Predicated region
      $region45: #{tpu_custom_call.1} parent=5 // pred_check
        %p366 = pneg %p365
      $region46: #{tpu_custom_call.1} parent=5 // pred_check_branch
        %368 = sbr.rel (%p366) target = $region48
      $region47: #{tpu_custom_call.1} parent=5 // pred_region
        // Predicated region
        $region49: #{tpu_custom_call.1} parent=47 // pred_check
          %p369 = pneg %p58
        $region50: #{tpu_custom_call.1} parent=47 // pred_check_branch
          %371 = sbr.rel (%p369) target = $region52
        $region51: #{tpu_custom_call.1} parent=47 // pred_region
          %p372 = scmp.lt.s32.totalorder %s31, 1
          %s373 = scalar_select %p372, %s31, 1
          %p374 = scmp.lt.s32.totalorder %s32, 0
          %s375 = scalar_select %p374, %s32, 0
          %s376 = sadd.s32 %s375, %s373
          %s377 = smul.addr %s376, 8
          %s378 = scalar_lea.vmem %s0, %s377
        $region52: #{tpu_custom_call.1} parent=47 // pred_fallthru
          _
        // Predicated region
        $region53: #{tpu_custom_call.1} parent=47 // pred_check
          %p379 = pneg %p84
        $region54: #{tpu_custom_call.1} parent=47 // pred_check_branch
          %381 = sbr.rel (%p379) target = $region56
        $region55: #{tpu_custom_call.1} parent=47 // pred_region
          %s382 = sand.u32 %s74, 1
          %s383 = scalar_lea.sflag [#allocation5], %s382
          %s384 = sand.u32 %s74, 1
          %s385 = smul.addr %s384, 4
          %s386 = scalar_lea.vmem [#allocation4], %s385
          %s388 = ssub.s32 64, 64
          %389 = vsyncadd %s383, %s388
          %s390 = smul.addr %s31, 64
          %s391 = scalar_lea.hbm %s1, %s390
          %s393 = sshll.u32 %s386, 4
          %s394 = int_to_ptr.vmem [resolvable:$true] %s393
          %396 = dma.hbm_to_vmem [thread:$0]  %s391, 64, %s394, %s383
        $region56: #{tpu_custom_call.1} parent=47 // pred_fallthru
          _
      $region48: #{tpu_custom_call.1} parent=5 // pred_fallthru
        _
      %p397 = scmp.le.s32.totalorder 1, %s24
      %p398 = scmp.lt.s32.totalorder %s24, 3
      %p399 = pnand %p397, %p398
      %p400 = pneg %p399
      // Predicated region
      $region57: #{tpu_custom_call.1} parent=5 // pred_check
        _
      $region58: #{tpu_custom_call.1} parent=5 // pred_check_branch
        %402 = sbr.rel (%p399) target = $region60
      $region59: #{tpu_custom_call.1} parent=5 // pred_region
        %s403 = ssub.s32 %s24, 1
        %s404 = sand.u32 %s77, 1
        %s405 = scalar_lea.sflag [#allocation5], %s404
        %s406 = sand.u32 %s77, 1
        %s407 = smul.addr %s406, 4
        %s408 = scalar_lea.vmem [#allocation4], %s407
        // Predicated region
        $region61: #{tpu_custom_call.1} parent=59 // pred_check
          %p409 = pneg %p90
        $region62: #{tpu_custom_call.1} parent=59 // pred_check_branch
          %411 = sbr.rel (%p409) target = $region64
        $region63: #{tpu_custom_call.1} parent=59 // pred_region
          %412 = dma.done %s405, 64
        $region64: #{tpu_custom_call.1} parent=59 // pred_fallthru
          _
        // Predicated region
        $region65: #{tpu_custom_call.1} parent=59 // pred_check
          %p413 = pneg %p153
        $region66: #{tpu_custom_call.1} parent=59 // pred_check_branch
          %415 = sbr.rel (%p413) target = $region68
        $region67: #{tpu_custom_call.1} parent=59 // pred_region
          %416 = dma.done [#allocation8], 256
        $region68: #{tpu_custom_call.1} parent=59 // pred_fallthru
          _
        // Predicated region
        $region69: #{tpu_custom_call.1} parent=59 // pred_check
          %p417 = pneg %p174
        $region70: #{tpu_custom_call.1} parent=59 // pred_check_branch
          %419 = sbr.rel (%p417) target = $region72
        $region71: #{tpu_custom_call.1} parent=59 // pred_region
          %420 = dma.done [#allocation8], 256
        $region72: #{tpu_custom_call.1} parent=59 // pred_fallthru
          _
        // Predicated region
        $region73: #{tpu_custom_call.1} parent=59 // pred_check
          %p421 = pneg %p195
        $region74: #{tpu_custom_call.1} parent=59 // pred_check_branch
          %423 = sbr.rel (%p421) target = $region76
        $region75: #{tpu_custom_call.1} parent=59 // pred_region
          %424 = dma.done [#allocation11], 256
        $region76: #{tpu_custom_call.1} parent=59 // pred_fallthru
          _
        // Predicated region
        $region77: #{tpu_custom_call.1} parent=59 // pred_check
          %p425 = pneg %p237
        $region78: #{tpu_custom_call.1} parent=59 // pred_check_branch
          %427 = sbr.rel (%p425) target = $region80
        $region79: #{tpu_custom_call.1} parent=59 // pred_region
          %428 = dma.done [#allocation11], 256
        $region80: #{tpu_custom_call.1} parent=59 // pred_fallthru
          _
        %p429 = scmp.lt.s32.totalorder %s33, 1
        %s430 = scalar_select %p429, %s33, 1
        %p431 = scmp.lt.s32.totalorder %s34, 0
        %s432 = scalar_select %p431, %s34, 0
        %s433 = sadd.s32 %s432, %s430
        %s434 = smul.addr %s433, 8
        %s435 = scalar_lea.vmem %s0, %s434
        %p436 = pneg %p64
        %p437 = pneg %p61
        %s438 = sand.u32 %s77, 1
        %s439 = scalar_lea.sflag [#allocation5], %s438
        %s440 = sand.u32 %s77, 1
        %s441 = smul.addr %s440, 4
        %s442 = scalar_lea.vmem [#allocation4], %s441
        %p443 = pneg %p90
        %p444 = pneg %p87
        %p445 = pneg %p111
        %p446 = pneg %p108
        %p447 = pneg %p132
        %p448 = pneg %p129
        %p449 = pneg %p153
        %p450 = pneg %p150
        %p451 = pneg %p174
        %p452 = pneg %p171
        %p453 = pneg %p195
        %p454 = pneg %p192
        %p455 = pneg %p216
        %p456 = pneg %p213
        %p457 = pneg %p237
        %p458 = pneg %p234
        %p459 = pneg %p258
        %p460 = pneg %p255
        %p461 = pneg %p286
        %p462 = pneg %p283
        %s463 = sand.u32 %s273, 1
        %s464 = scalar_lea.sflag [#allocation6], %s463
        %s465 = sand.u32 %s273, 1
        %s466 = smul.addr %s465, 8
        %s467 = scalar_lea.vmem [#allocation13], %s466
        %p468 = scmp.lt.s32.totalorder %s33, 1
        %s469 = scalar_select %p468, %s33, 1
        %p470 = scmp.lt.s32.totalorder %s34, 0
        %s471 = scalar_select %p470, %s34, 0
        %s472 = sadd.s32 %s471, %s469
        %s473 = smul.addr %s472, 8
        %s474 = scalar_lea.vmem %s0, %s473
        %v476 = vld [vmem:[#allocation12] sm:$0x1]
        %v477 = vld [vmem:[#allocation12 + $0x1] sm:$0x1]
        %v478 = vld [vmem:[#allocation12 + $0x2] sm:$0x1]
        %v479 = vld [vmem:[#allocation12 + $0x3] sm:$0x1]
        %v480 = vld [vmem:[#allocation12 + $0x4] sm:$0x1]
        %v481 = vld [vmem:[#allocation12 + $0x5] sm:$0x1]
        %v482 = vld [vmem:[#allocation12 + $0x6] sm:$0x1]
        %v483 = vld [vmem:[#allocation12 + $0x7] sm:$0x1]
        %v484 = vld [vmem:[#allocation12 + $0x8] sm:$0x1]
        %v485 = vld [vmem:[%s9] sm:$0x1]
        %p486 = scmp.eq.s32.totalorder %s34, 0
        // Predicated region
        $region81: #{tpu_custom_call.1} parent=59 // pred_check
          %p487 = pneg %p486
        $region82: #{tpu_custom_call.1} parent=59 // pred_check_branch
          %489 = sbr.rel (%p487) target = $region84
        $region83: #{tpu_custom_call.1} parent=59 // pred_region
          %v490 = vld [vmem:[%s408] sm:$0xf]
          %v491 = vld [vmem:[%s3] sm:$0xf]
          %v492 = vld [vmem:[%s3 + $0x4] sm:$0xf]
          %v493 = vld [vmem:[%s3 + $0x8] sm:$0xf]
          %v494 = vld [vmem:[%s3 + $0xc] sm:$0xf]
          %v495 = vlaneseq
          %v496 = vshrl.u32 %v495, 7
          %v497 = vsub.s32 0, %v496
          %v498 = vrot.slane %v477, %v497
          %v503 = vunpack.c.l.b16 %v491
          %v504 = vunpack.c.l.b16 %v492
          %v505 = vunpack.c.l.b16 %v493
          %v506 = vunpack.c.l.b16 %v494
          %v507 = vpack.c.b16 %v504, %v503
          %v508 = vpack.c.b16 %v506, %v505
          %vm511 = vcmask 261120
          %v513 = vsel %vm511, %v490, 0
          %515 = vmatprep.subr.bf16.mxu0 0
          %516 = vmatpush1.bf16.msra.mxu0 %v507
          %517 = vmatprep.subr.bf16.mxu0 0
          %518 = vmatpush1.bf16.msra.mxu0 %v508
          %519 = vmatprep.subr.bf16.mxu0 0
          %520 = vmatpush1.bf16.msra.mxu0 0
          %521 = vmatprep.subr.bf16.mxu0 0
          %522 = vmatpush1.bf16.msra.mxu0 0
          %523 = vmatprep.subr.bf16.mxu0 0
          %524 = vmatpush1.bf16.msra.mxu0 0
          %525 = vmatprep.subr.bf16.mxu0 0
          %526 = vmatpush1.bf16.msra.mxu0 0
          %527 = vmatprep.subr.bf16.mxu0 0
          %528 = vmatpush1.bf16.msra.mxu0 0
          %529 = vmatprep.subr.bf16.mxu0 0
          %530 = vmatpush1.bf16.msra.mxu0 0
          %531 = vmatprep.subr.bf16.mxu0 0
          %532 = vmatpush1.bf16.msra.mxu0 0
          %533 = vmatprep.subr.bf16.mxu0 0
          %534 = vmatpush1.bf16.msra.mxu0 0
          %535 = vmatprep.subr.bf16.mxu0 0
          %536 = vmatpush1.bf16.msra.mxu0 0
          %537 = vmatprep.subr.bf16.mxu0 0
          %538 = vmatpush1.bf16.msra.mxu0 0
          %539 = vmatprep.subr.bf16.mxu0 0
          %540 = vmatpush1.bf16.msra.mxu0 0
          %541 = vmatprep.subr.bf16.mxu0 0
          %542 = vmatpush1.bf16.msra.mxu0 0
          %543 = vmatprep.subr.bf16.mxu0 0
          %544 = vmatpush1.bf16.msra.mxu0 0
          %545 = vmatprep.subr.bf16.mxu0 0
          %546 = vmatpush1.bf16.msra.mxu0 0
          %547 = vmatprep.mubr.bf16.mxu0 0
          %548 = vmatmul.mubr.bf16.gmra.mrb[0].mxu0 %v513
          %v549 = vpop.f32.mrb[0].mxu0
          %v550 = vadd.f32 %v498, %v549
          %v551 = vpop.f32.mrb[0].mxu0
          %v552 = vpop.f32.mrb[0].mxu0
          %v553 = vpop.f32.mrb[0].mxu0
          %554 = vdwg.mxu0
          %v555 = vld [vmem:[#allocation7] sm:$0xf]
          %v556 = vld [vmem:[#allocation7 + $0x4] sm:$0xf]
          %v557 = vld [vmem:[#allocation7 + $0x8] sm:$0xf]
          %v558 = vld [vmem:[#allocation7 + $0xc] sm:$0xf]
          %v559 = vlaneseq
          %v560 = vshrl.u32 %v559, 7
          %v561 = vsub.s32 0, %v560
          %v562 = vrot.slane %v478, %v561
          %v567 = vunpack.c.l.b16 %v555
          %v568 = vunpack.c.l.b16 %v556
          %v569 = vunpack.c.l.b16 %v557
          %v570 = vunpack.c.l.b16 %v558
          %v571 = vpack.c.b16 %v568, %v567
          %v572 = vpack.c.b16 %v570, %v569
          %575 = vmatprep.subr.bf16.mxu0 0
          %576 = vmatpush1.bf16.msra.mxu0 %v571
          %577 = vmatprep.subr.bf16.mxu0 0
          %578 = vmatpush1.bf16.msra.mxu0 %v572
          %579 = vmatprep.subr.bf16.mxu0 0
          %580 = vmatpush1.bf16.msra.mxu0 0
          %581 = vmatprep.subr.bf16.mxu0 0
          %582 = vmatpush1.bf16.msra.mxu0 0
          %583 = vmatprep.subr.bf16.mxu0 0
          %584 = vmatpush1.bf16.msra.mxu0 0
          %585 = vmatprep.subr.bf16.mxu0 0
          %586 = vmatpush1.bf16.msra.mxu0 0
          %587 = vmatprep.subr.bf16.mxu0 0
          %588 = vmatpush1.bf16.msra.mxu0 0
          %589 = vmatprep.subr.bf16.mxu0 0
          %590 = vmatpush1.bf16.msra.mxu0 0
          %591 = vmatprep.subr.bf16.mxu0 0
          %592 = vmatpush1.bf16.msra.mxu0 0
          %593 = vmatprep.subr.bf16.mxu0 0
          %594 = vmatpush1.bf16.msra.mxu0 0
          %595 = vmatprep.subr.bf16.mxu0 0
          %596 = vmatpush1.bf16.msra.mxu0 0
          %597 = vmatprep.subr.bf16.mxu0 0
          %598 = vmatpush1.bf16.msra.mxu0 0
          %599 = vmatprep.subr.bf16.mxu0 0
          %600 = vmatpush1.bf16.msra.mxu0 0
          %601 = vmatprep.subr.bf16.mxu0 0
          %602 = vmatpush1.bf16.msra.mxu0 0
          %603 = vmatprep.subr.bf16.mxu0 0
          %604 = vmatpush1.bf16.msra.mxu0 0
          %605 = vmatprep.subr.bf16.mxu0 0
          %606 = vmatpush1.bf16.msra.mxu0 0
          %607 = vmatprep.mubr.bf16.mxu0 0
          %608 = vmatmul.mubr.bf16.gmra.mrb[0].mxu0 %v513
          %v609 = vpop.f32.mrb[0].mxu0
          %v610 = vadd.f32 %v562, %v609
          %v611 = vpop.f32.mrb[0].mxu0
          %v612 = vpop.f32.mrb[0].mxu0
          %v613 = vpop.f32.mrb[0].mxu0
          %614 = vdwg.mxu0
          %v615 = vpack.c.bf16 %v550, %v550
          %617 = vrot.lane.b32.xlu0 %v615, 120
          %v618 = vpop.permute.xlu0 %617
          %620 = vrot.lane.b32.xlu0 %v615, 112
          %v621 = vpop.permute.xlu0 %620
          %623 = vrot.lane.b32.xlu0 %v615, 104
          %v624 = vpop.permute.xlu0 %623
          %vm626 = vcmask 60416
          %627 = vst.msk [vmem:[#allocation2] sm:$0xf] %vm626, %v615
          %628 = vst.msk [vmem:[#allocation2 + $0x4] sm:$0xf] %vm626, %v618
          %629 = vst.msk [vmem:[#allocation2 + $0x8] sm:$0xf] %vm626, %v621
          %630 = vst.msk [vmem:[#allocation2 + $0xc] sm:$0xf] %vm626, %v624
          %v631 = vpack.c.bf16 %v610, %v610
          %633 = vrot.lane.b32.xlu0 %v631, 120
          %v634 = vpop.permute.xlu0 %633
          %636 = vrot.lane.b32.xlu0 %v631, 112
          %v637 = vpop.permute.xlu0 %636
          %639 = vrot.lane.b32.xlu0 %v631, 104
          %v640 = vpop.permute.xlu0 %639
          %642 = vst.msk [vmem:[#allocation3] sm:$0xf] %vm626, %v631
          %643 = vst.msk [vmem:[#allocation3 + $0x4] sm:$0xf] %vm626, %v634
          %644 = vst.msk [vmem:[#allocation3 + $0x8] sm:$0xf] %vm626, %v637
          %645 = vst.msk [vmem:[#allocation3 + $0xc] sm:$0xf] %vm626, %v640
        $region84: #{tpu_custom_call.1} parent=59 // pred_fallthru
          _
        %v646 = vld [vmem:[%s474] sm:$0xff]
        %v647 = vpack.c.bf16 %v646, %v646
        %v648 = vld [vmem:[%s2] sm:$0xf]
        %v649 = vld [vmem:[%s2 + $0x4] sm:$0xf]
        %v650 = vld [vmem:[%s2 + $0x8] sm:$0xf]
        %v651 = vld [vmem:[%s2 + $0xc] sm:$0xf]
        %v652 = vlaneseq
        %v653 = vshrl.u32 %v652, 7
        %v654 = vsub.s32 0, %v653
        %v655 = vrot.slane %v476, %v654
        %v660 = vunpack.c.l.b16 %v648
        %v661 = vunpack.c.l.b16 %v649
        %v662 = vunpack.c.l.b16 %v650
        %v663 = vunpack.c.l.b16 %v651
        %v664 = vpack.c.b16 %v661, %v660
        %v665 = vpack.c.b16 %v663, %v662
        %vm668 = vcmask 261120
        %v670 = vsel %vm668, %v647, 0
        %672 = vmatprep.subr.bf16.mxu0 0
        %673 = vmatpush1.bf16.msra.mxu0 %v664
        %674 = vmatprep.subr.bf16.mxu0 0
        %675 = vmatpush1.bf16.msra.mxu0 %v665
        %676 = vmatprep.subr.bf16.mxu0 0
        %677 = vmatpush1.bf16.msra.mxu0 0
        %678 = vmatprep.subr.bf16.mxu0 0
        %679 = vmatpush1.bf16.msra.mxu0 0
        %680 = vmatprep.subr.bf16.mxu0 0
        %681 = vmatpush1.bf16.msra.mxu0 0
        %682 = vmatprep.subr.bf16.mxu0 0
        %683 = vmatpush1.bf16.msra.mxu0 0
        %684 = vmatprep.subr.bf16.mxu0 0
        %685 = vmatpush1.bf16.msra.mxu0 0
        %686 = vmatprep.subr.bf16.mxu0 0
        %687 = vmatpush1.bf16.msra.mxu0 0
        %688 = vmatprep.subr.bf16.mxu0 0
        %689 = vmatpush1.bf16.msra.mxu0 0
        %690 = vmatprep.subr.bf16.mxu0 0
        %691 = vmatpush1.bf16.msra.mxu0 0
        %692 = vmatprep.subr.bf16.mxu0 0
        %693 = vmatpush1.bf16.msra.mxu0 0
        %694 = vmatprep.subr.bf16.mxu0 0
        %695 = vmatpush1.bf16.msra.mxu0 0
        %696 = vmatprep.subr.bf16.mxu0 0
        %697 = vmatpush1.bf16.msra.mxu0 0
        %698 = vmatprep.subr.bf16.mxu0 0
        %699 = vmatpush1.bf16.msra.mxu0 0
        %700 = vmatprep.subr.bf16.mxu0 0
        %701 = vmatpush1.bf16.msra.mxu0 0
        %702 = vmatprep.subr.bf16.mxu0 0
        %703 = vmatpush1.bf16.msra.mxu0 0
        %704 = vmatprep.mubr.bf16.mxu0 0
        %705 = vmatmul.mubr.bf16.gmra.mrb[0].mxu0 %v670
        %v706 = vpop.f32.mrb[0].mxu0
        %v707 = vadd.f32 %v655, %v706
        %v708 = vpop.f32.mrb[0].mxu0
        %v709 = vpop.f32.mrb[0].mxu0
        %v710 = vpop.f32.mrb[0].mxu0
        %711 = vdwg.mxu0
        %v712 = vmul.f32 %v707, 0.35355338
        %v713 = vpack.c.bf16 %v712, %v712
        %715 = vrot.lane.b32.xlu0 %v713, 120
        %v716 = vpop.permute.xlu0 %715
        %717 = vrot.lane.b32.xlu0 %v713, 112
        %v718 = vpop.permute.xlu0 %717
        %719 = vrot.lane.b32.xlu0 %v713, 104
        %v720 = vpop.permute.xlu0 %719
        %v721 = vld [vmem:[#allocation2] sm:$0xf]
        %v722 = vld [vmem:[#allocation2 + $0x4] sm:$0xf]
        %v723 = vld [vmem:[#allocation2 + $0x8] sm:$0xf]
        %v724 = vld [vmem:[#allocation2 + $0xc] sm:$0xf]
        %vm725 = vcmask 64512
        %v727 = vsel %vm725, %v713, 0
        %v730 = vsel %vm725, %v721, 0
        %732 = vmatprep.subr.bf16.mxu0 0
        %733 = vmatpush1.bf16.xpose.msra.mxu0 %v730
        %734 = vmatprep.subr.bf16.mxu0 0
        %735 = vmatpush1.bf16.xpose.msra.mxu0 0
        %736 = vmatprep.subr.bf16.mxu0 0
        %737 = vmatpush1.bf16.xpose.msra.mxu0 0
        %738 = vmatprep.subr.bf16.mxu0 0
        %739 = vmatpush1.bf16.xpose.msra.mxu0 0
        %740 = vmatprep.subr.bf16.mxu0 0
        %741 = vmatpush1.bf16.xpose.msra.mxu0 0
        %742 = vmatprep.subr.bf16.mxu0 0
        %743 = vmatpush1.bf16.xpose.msra.mxu0 0
        %744 = vmatprep.subr.bf16.mxu0 0
        %745 = vmatpush1.bf16.xpose.msra.mxu0 0
        %746 = vmatprep.subr.bf16.mxu0 0
        %747 = vmatpush1.bf16.xpose.msra.mxu0 0
        %748 = vmatprep.subr.bf16.mxu0 0
        %749 = vmatpush1.bf16.xpose.msra.mxu0 0
        %750 = vmatprep.subr.bf16.mxu0 0
        %751 = vmatpush1.bf16.xpose.msra.mxu0 0
        %752 = vmatprep.subr.bf16.mxu0 0
        %753 = vmatpush1.bf16.xpose.msra.mxu0 0
        %754 = vmatprep.subr.bf16.mxu0 0
        %755 = vmatpush1.bf16.xpose.msra.mxu0 0
        %756 = vmatprep.subr.bf16.mxu0 0
        %757 = vmatpush1.bf16.xpose.msra.mxu0 0
        %758 = vmatprep.subr.bf16.mxu0 0
        %759 = vmatpush1.bf16.xpose.msra.mxu0 0
        %760 = vmatprep.subr.bf16.mxu0 0
        %761 = vmatpush1.bf16.xpose.msra.mxu0 0
        %762 = vmatprep.subr.bf16.mxu0 0
        %763 = vmatpush1.bf16.xpose.msra.mxu0 0
        %764 = vmatprep.mubr.bf16.mxu0 0
        %765 = vmatmul.mubr.bf16.gmra.mrb[0].mxu0 %v727
        %v766 = vpop.f32.mrb[0].mxu0
        %v767 = vadd.f32 0.0, %v766
        %v768 = vpop.f32.mrb[0].mxu0
        %v769 = vpop.f32.mrb[0].mxu0
        %v770 = vpop.f32.mrb[0].mxu0
        %771 = vdwg.mxu0
        %v773 = vsel %vm725, %v716, 0
        %v776 = vsel %vm725, %v722, 0
        %778 = vmatprep.subr.bf16.mxu0 0
        %779 = vmatpush1.bf16.xpose.msra.mxu0 %v776
        %780 = vmatprep.subr.bf16.mxu0 0
        %781 = vmatpush1.bf16.xpose.msra.mxu0 0
        %782 = vmatprep.subr.bf16.mxu0 0
        %783 = vmatpush1.bf16.xpose.msra.mxu0 0
        %784 = vmatprep.subr.bf16.mxu0 0
        %785 = vmatpush1.bf16.xpose.msra.mxu0 0
        %786 = vmatprep.subr.bf16.mxu0 0
        %787 = vmatpush1.bf16.xpose.msra.mxu0 0
        %788 = vmatprep.subr.bf16.mxu0 0
        %789 = vmatpush1.bf16.xpose.msra.mxu0 0
        %790 = vmatprep.subr.bf16.mxu0 0
        %791 = vmatpush1.bf16.xpose.msra.mxu0 0
        %792 = vmatprep.subr.bf16.mxu0 0
        %793 = vmatpush1.bf16.xpose.msra.mxu0 0
        %794 = vmatprep.subr.bf16.mxu0 0
        %795 = vmatpush1.bf16.xpose.msra.mxu0 0
        %796 = vmatprep.subr.bf16.mxu0 0
        %797 = vmatpush1.bf16.xpose.msra.mxu0 0
        %798 = vmatprep.subr.bf16.mxu0 0
        %799 = vmatpush1.bf16.xpose.msra.mxu0 0
        %800 = vmatprep.subr.bf16.mxu0 0
        %801 = vmatpush1.bf16.xpose.msra.mxu0 0
        %802 = vmatprep.subr.bf16.mxu0 0
        %803 = vmatpush1.bf16.xpose.msra.mxu0 0
        %804 = vmatprep.subr.bf16.mxu0 0
        %805 = vmatpush1.bf16.xpose.msra.mxu0 0
        %806 = vmatprep.subr.bf16.mxu0 0
        %807 = vmatpush1.bf16.xpose.msra.mxu0 0
        %808 = vmatprep.subr.bf16.mxu0 0
        %809 = vmatpush1.bf16.xpose.msra.mxu0 0
        %810 = vmatprep.mubr.bf16.mxu0 0
        %811 = vmatmul.mubr.bf16.gmra.mrb[0].mxu0 %v773
        %v812 = vpop.f32.mrb[0].mxu0
        %v813 = vadd.f32 0.0, %v812
        %v814 = vpop.f32.mrb[0].mxu0
        %v815 = vpop.f32.mrb[0].mxu0
        %v816 = vpop.f32.mrb[0].mxu0
        %817 = vdwg.mxu0
        %v819 = vsel %vm725, %v718, 0
        %v822 = vsel %vm725, %v723, 0
        %824 = vmatprep.subr.bf16.mxu0 0
        %825 = vmatpush1.bf16.xpose.msra.mxu0 %v822
        %826 = vmatprep.subr.bf16.mxu0 0
        %827 = vmatpush1.bf16.xpose.msra.mxu0 0
        %828 = vmatprep.subr.bf16.mxu0 0
        %829 = vmatpush1.bf16.xpose.msra.mxu0 0
        %830 = vmatprep.subr.bf16.mxu0 0
        %831 = vmatpush1.bf16.xpose.msra.mxu0 0
        %832 = vmatprep.subr.bf16.mxu0 0
        %833 = vmatpush1.bf16.xpose.msra.mxu0 0
        %834 = vmatprep.subr.bf16.mxu0 0
        %835 = vmatpush1.bf16.xpose.msra.mxu0 0
        %836 = vmatprep.subr.bf16.mxu0 0
        %837 = vmatpush1.bf16.xpose.msra.mxu0 0
        %838 = vmatprep.subr.bf16.mxu0 0
        %839 = vmatpush1.bf16.xpose.msra.mxu0 0
        %840 = vmatprep.subr.bf16.mxu0 0
        %841 = vmatpush1.bf16.xpose.msra.mxu0 0
        %842 = vmatprep.subr.bf16.mxu0 0
        %843 = vmatpush1.bf16.xpose.msra.mxu0 0
        %844 = vmatprep.subr.bf16.mxu0 0
        %845 = vmatpush1.bf16.xpose.msra.mxu0 0
        %846 = vmatprep.subr.bf16.mxu0 0
        %847 = vmatpush1.bf16.xpose.msra.mxu0 0
        %848 = vmatprep.subr.bf16.mxu0 0
        %849 = vmatpush1.bf16.xpose.msra.mxu0 0
        %850 = vmatprep.subr.bf16.mxu0 0
        %851 = vmatpush1.bf16.xpose.msra.mxu0 0
        %852 = vmatprep.subr.bf16.mxu0 0
        %853 = vmatpush1.bf16.xpose.msra.mxu0 0
        %854 = vmatprep.subr.bf16.mxu0 0
        %855 = vmatpush1.bf16.xpose.msra.mxu0 0
        %856 = vmatprep.mubr.bf16.mxu0 0
        %857 = vmatmul.mubr.bf16.gmra.mrb[0].mxu0 %v819
        %v858 = vpop.f32.mrb[0].mxu0
        %v859 = vadd.f32 0.0, %v858
        %v860 = vpop.f32.mrb[0].mxu0
        %v861 = vpop.f32.mrb[0].mxu0
        %v862 = vpop.f32.mrb[0].mxu0
        %863 = vdwg.mxu0
        %v865 = vsel %vm725, %v720, 0
        %v868 = vsel %vm725, %v724, 0
        %870 = vmatprep.subr.bf16.mxu0 0
        %871 = vmatpush1.bf16.xpose.msra.mxu0 %v868
        %872 = vmatprep.subr.bf16.mxu0 0
        %873 = vmatpush1.bf16.xpose.msra.mxu0 0
        %874 = vmatprep.subr.bf16.mxu0 0
        %875 = vmatpush1.bf16.xpose.msra.mxu0 0
        %876 = vmatprep.subr.bf16.mxu0 0
        %877 = vmatpush1.bf16.xpose.msra.mxu0 0
        %878 = vmatprep.subr.bf16.mxu0 0
        %879 = vmatpush1.bf16.xpose.msra.mxu0 0
        %880 = vmatprep.subr.bf16.mxu0 0
        %881 = vmatpush1.bf16.xpose.msra.mxu0 0
        %882 = vmatprep.subr.bf16.mxu0 0
        %883 = vmatpush1.bf16.xpose.msra.mxu0 0
        %884 = vmatprep.subr.bf16.mxu0 0
        %885 = vmatpush1.bf16.xpose.msra.mxu0 0
        %886 = vmatprep.subr.bf16.mxu0 0
        %887 = vmatpush1.bf16.xpose.msra.mxu0 0
        %888 = vmatprep.subr.bf16.mxu0 0
        %889 = vmatpush1.bf16.xpose.msra.mxu0 0
        %890 = vmatprep.subr.bf16.mxu0 0
        %891 = vmatpush1.bf16.xpose.msra.mxu0 0
        %892 = vmatprep.subr.bf16.mxu0 0
        %893 = vmatpush1.bf16.xpose.msra.mxu0 0
        %894 = vmatprep.subr.bf16.mxu0 0
        %895 = vmatpush1.bf16.xpose.msra.mxu0 0
        %896 = vmatprep.subr.bf16.mxu0 0
        %897 = vmatpush1.bf16.xpose.msra.mxu0 0
        %898 = vmatprep.subr.bf16.mxu0 0
        %899 = vmatpush1.bf16.xpose.msra.mxu0 0
        %900 = vmatprep.subr.bf16.mxu0 0
        %901 = vmatpush1.bf16.xpose.msra.mxu0 0
        %902 = vmatprep.mubr.bf16.mxu0 0
        %903 = vmatmul.mubr.bf16.gmra.mrb[0].mxu0 %v865
        %v904 = vpop.f32.mrb[0].mxu0
        %v905 = vadd.f32 0.0, %v904
        %v906 = vpop.f32.mrb[0].mxu0
        %v907 = vpop.f32.mrb[0].mxu0
        %v908 = vpop.f32.mrb[0].mxu0
        %909 = vdwg.mxu0
        %v910 = vsel %vm725, %v767, -inf
        %911 = vmax.xlane.f32.xlu0 %v910
        %v912 = vpop.xlane.xlu0 %911
        %v913 = vsel %vm725, %v813, -inf
        %914 = vmax.xlane.f32.xlu0 %v913
        %v915 = vpop.xlane.xlu0 %914
        %v916 = vsel %vm725, %v859, -inf
        %917 = vmax.xlane.f32.xlu0 %v916
        %v918 = vpop.xlane.xlu0 %917
        %v919 = vsel %vm725, %v905, -inf
        %920 = vmax.xlane.f32.xlu0 %v919
        %v921 = vpop.xlane.xlu0 %920
        %v922 = vsub.f32 %v767, %v912
        %v923 = vsub.f32 %v813, %v915
        %v924 = vsub.f32 %v859, %v918
        %v925 = vsub.f32 %v905, %v921
        %v926 = vpack.c.bf16 %v922, %v922
        %v927 = vpack.c.bf16 %v923, %v923
        %v928 = vpack.c.bf16 %v924, %v924
        %v929 = vpack.c.bf16 %v925, %v925
        %v931 = vmul.bf16 %v926, 1069105081
        %v932 = vpow.bf16.pop %v931
        %v934 = vmul.bf16 %v927, 1069105081
        %v935 = vpow.bf16.pop %v934
        %v937 = vmul.bf16 %v928, 1069105081
        %v938 = vpow.bf16.pop %v937
        %v940 = vmul.bf16 %v929, 1069105081
        %v941 = vpow.bf16.pop %v940
        %v942 = vunpack.c.l.bf16 %v932
        %v943 = vunpack.c.l.bf16 %v935
        %v944 = vunpack.c.l.bf16 %v938
        %v945 = vunpack.c.l.bf16 %v941
        %v946 = vsel %vm725, %v942, 0.0
        %947 = vadd.xlane.f32.xlu0 %v946
        %v948 = vpop.xlane.xlu0 %947
        %v949 = vsel %vm725, %v943, 0.0
        %950 = vadd.xlane.f32.xlu0 %v949
        %v951 = vpop.xlane.xlu0 %950
        %v952 = vsel %vm725, %v944, 0.0
        %953 = vadd.xlane.f32.xlu0 %v952
        %v954 = vpop.xlane.xlu0 %953
        %v955 = vsel %vm725, %v945, 0.0
        %956 = vadd.xlane.f32.xlu0 %v955
        %v957 = vpop.xlane.xlu0 %956
        %v958 = vld [vmem:[#allocation3] sm:$0xf]
        %v959 = vld [vmem:[#allocation3 + $0x4] sm:$0xf]
        %v960 = vld [vmem:[#allocation3 + $0x8] sm:$0xf]
        %v961 = vld [vmem:[#allocation3 + $0xc] sm:$0xf]
        %v963 = vsel %vm725, %v932, 0
        %vm965 = vcmask 1043456
        %v967 = vsel %vm965, %v958, 0
        %969 = vmatprep.subr.bf16.mxu0 0
        %970 = vmatpush1.bf16.msra.mxu0 %v967
        %971 = vmatprep.subr.bf16.mxu0 0
        %972 = vmatpush1.bf16.msra.mxu0 0
        %973 = vmatprep.subr.bf16.mxu0 0
        %974 = vmatpush1.bf16.msra.mxu0 0
        %975 = vmatprep.subr.bf16.mxu0 0
        %976 = vmatpush1.bf16.msra.mxu0 0
        %977 = vmatprep.subr.bf16.mxu0 0
        %978 = vmatpush1.bf16.msra.mxu0 0
        %979 = vmatprep.subr.bf16.mxu0 0
        %980 = vmatpush1.bf16.msra.mxu0 0
        %981 = vmatprep.subr.bf16.mxu0 0
        %982 = vmatpush1.bf16.msra.mxu0 0
        %983 = vmatprep.subr.bf16.mxu0 0
        %984 = vmatpush1.bf16.msra.mxu0 0
        %985 = vmatprep.subr.bf16.mxu0 0
        %986 = vmatpush1.bf16.msra.mxu0 0
        %987 = vmatprep.subr.bf16.mxu0 0
        %988 = vmatpush1.bf16.msra.mxu0 0
        %989 = vmatprep.subr.bf16.mxu0 0
        %990 = vmatpush1.bf16.msra.mxu0 0
        %991 = vmatprep.subr.bf16.mxu0 0
        %992 = vmatpush1.bf16.msra.mxu0 0
        %993 = vmatprep.subr.bf16.mxu0 0
        %994 = vmatpush1.bf16.msra.mxu0 0
        %995 = vmatprep.subr.bf16.mxu0 0
        %996 = vmatpush1.bf16.msra.mxu0 0
        %997 = vmatprep.subr.bf16.mxu0 0
        %998 = vmatpush1.bf16.msra.mxu0 0
        %999 = vmatprep.subr.bf16.mxu0 0
        %1000 = vmatpush1.bf16.msra.mxu0 0
        %1001 = vmatprep.mubr.bf16.mxu0 0
        %1002 = vmatmul.mubr.bf16.gmra.mrb[0].mxu0 %v963
        %v1003 = vpop.f32.mrb[0].mxu0
        %v1004 = vadd.f32 0.0, %v1003
        %v1005 = vpop.f32.mrb[0].mxu0
        %v1006 = vpop.f32.mrb[0].mxu0
        %v1007 = vpop.f32.mrb[0].mxu0
        %1008 = vdwg.mxu0
        %v1010 = vsel %vm725, %v935, 0
        %v1013 = vsel %vm965, %v959, 0
        %1015 = vmatprep.subr.bf16.mxu0 0
        %1016 = vmatpush1.bf16.msra.mxu0 %v1013
        %1017 = vmatprep.subr.bf16.mxu0 0
        %1018 = vmatpush1.bf16.msra.mxu0 0
        %1019 = vmatprep.subr.bf16.mxu0 0
        %1020 = vmatpush1.bf16.msra.mxu0 0
        %1021 = vmatprep.subr.bf16.mxu0 0
        %1022 = vmatpush1.bf16.msra.mxu0 0
        %1023 = vmatprep.subr.bf16.mxu0 0
        %1024 = vmatpush1.bf16.msra.mxu0 0
        %1025 = vmatprep.subr.bf16.mxu0 0
        %1026 = vmatpush1.bf16.msra.mxu0 0
        %1027 = vmatprep.subr.bf16.mxu0 0
        %1028 = vmatpush1.bf16.msra.mxu0 0
        %1029 = vmatprep.subr.bf16.mxu0 0
        %1030 = vmatpush1.bf16.msra.mxu0 0
        %1031 = vmatprep.subr.bf16.mxu0 0
        %1032 = vmatpush1.bf16.msra.mxu0 0
        %1033 = vmatprep.subr.bf16.mxu0 0
        %1034 = vmatpush1.bf16.msra.mxu0 0
        %1035 = vmatprep.subr.bf16.mxu0 0
        %1036 = vmatpush1.bf16.msra.mxu0 0
        %1037 = vmatprep.subr.bf16.mxu0 0
        %1038 = vmatpush1.bf16.msra.mxu0 0
        %1039 = vmatprep.subr.bf16.mxu0 0
        %1040 = vmatpush1.bf16.msra.mxu0 0
        %1041 = vmatprep.subr.bf16.mxu0 0
        %1042 = vmatpush1.bf16.msra.mxu0 0
        %1043 = vmatprep.subr.bf16.mxu0 0
        %1044 = vmatpush1.bf16.msra.mxu0 0
        %1045 = vmatprep.subr.bf16.mxu0 0
        %1046 = vmatpush1.bf16.msra.mxu0 0
        %1047 = vmatprep.mubr.bf16.mxu0 0
        %1048 = vmatmul.mubr.bf16.gmra.mrb[0].mxu0 %v1010
        %v1049 = vpop.f32.mrb[0].mxu0
        %v1050 = vadd.f32 0.0, %v1049
        %v1051 = vpop.f32.mrb[0].mxu0
        %v1052 = vpop.f32.mrb[0].mxu0
        %v1053 = vpop.f32.mrb[0].mxu0
        %1054 = vdwg.mxu0
        %v1056 = vsel %vm725, %v938, 0
        %v1059 = vsel %vm965, %v960, 0
        %1061 = vmatprep.subr.bf16.mxu0 0
        %1062 = vmatpush1.bf16.msra.mxu0 %v1059
        %1063 = vmatprep.subr.bf16.mxu0 0
        %1064 = vmatpush1.bf16.msra.mxu0 0
        %1065 = vmatprep.subr.bf16.mxu0 0
        %1066 = vmatpush1.bf16.msra.mxu0 0
        %1067 = vmatprep.subr.bf16.mxu0 0
        %1068 = vmatpush1.bf16.msra.mxu0 0
        %1069 = vmatprep.subr.bf16.mxu0 0
        %1070 = vmatpush1.bf16.msra.mxu0 0
        %1071 = vmatprep.subr.bf16.mxu0 0
        %1072 = vmatpush1.bf16.msra.mxu0 0
        %1073 = vmatprep.subr.bf16.mxu0 0
        %1074 = vmatpush1.bf16.msra.mxu0 0
        %1075 = vmatprep.subr.bf16.mxu0 0
        %1076 = vmatpush1.bf16.msra.mxu0 0
        %1077 = vmatprep.subr.bf16.mxu0 0
        %1078 = vmatpush1.bf16.msra.mxu0 0
        %1079 = vmatprep.subr.bf16.mxu0 0
        %1080 = vmatpush1.bf16.msra.mxu0 0
        %1081 = vmatprep.subr.bf16.mxu0 0
        %1082 = vmatpush1.bf16.msra.mxu0 0
        %1083 = vmatprep.subr.bf16.mxu0 0
        %1084 = vmatpush1.bf16.msra.mxu0 0
        %1085 = vmatprep.subr.bf16.mxu0 0
        %1086 = vmatpush1.bf16.msra.mxu0 0
        %1087 = vmatprep.subr.bf16.mxu0 0
        %1088 = vmatpush1.bf16.msra.mxu0 0
        %1089 = vmatprep.subr.bf16.mxu0 0
        %1090 = vmatpush1.bf16.msra.mxu0 0
        %1091 = vmatprep.subr.bf16.mxu0 0
        %1092 = vmatpush1.bf16.msra.mxu0 0
        %1093 = vmatprep.mubr.bf16.mxu0 0
        %1094 = vmatmul.mubr.bf16.gmra.mrb[0].mxu0 %v1056
        %v1095 = vpop.f32.mrb[0].mxu0
        %v1096 = vadd.f32 0.0, %v1095
        %v1097 = vpop.f32.mrb[0].mxu0
        %v1098 = vpop.f32.mrb[0].mxu0
        %v1099 = vpop.f32.mrb[0].mxu0
        %1100 = vdwg.mxu0
        %v1102 = vsel %vm725, %v941, 0
        %v1105 = vsel %vm965, %v961, 0
        %1107 = vmatprep.subr.bf16.mxu0 0
        %1108 = vmatpush1.bf16.msra.mxu0 %v1105
        %1109 = vmatprep.subr.bf16.mxu0 0
        %1110 = vmatpush1.bf16.msra.mxu0 0
        %1111 = vmatprep.subr.bf16.mxu0 0
        %1112 = vmatpush1.bf16.msra.mxu0 0
        %1113 = vmatprep.subr.bf16.mxu0 0
        %1114 = vmatpush1.bf16.msra.mxu0 0
        %1115 = vmatprep.subr.bf16.mxu0 0
        %1116 = vmatpush1.bf16.msra.mxu0 0
        %1117 = vmatprep.subr.bf16.mxu0 0
        %1118 = vmatpush1.bf16.msra.mxu0 0
        %1119 = vmatprep.subr.bf16.mxu0 0
        %1120 = vmatpush1.bf16.msra.mxu0 0
        %1121 = vmatprep.subr.bf16.mxu0 0
        %1122 = vmatpush1.bf16.msra.mxu0 0
        %1123 = vmatprep.subr.bf16.mxu0 0
        %1124 = vmatpush1.bf16.msra.mxu0 0
        %1125 = vmatprep.subr.bf16.mxu0 0
        %1126 = vmatpush1.bf16.msra.mxu0 0
        %1127 = vmatprep.subr.bf16.mxu0 0
        %1128 = vmatpush1.bf16.msra.mxu0 0
        %1129 = vmatprep.subr.bf16.mxu0 0
        %1130 = vmatpush1.bf16.msra.mxu0 0
        %1131 = vmatprep.subr.bf16.mxu0 0
        %1132 = vmatpush1.bf16.msra.mxu0 0
        %1133 = vmatprep.subr.bf16.mxu0 0
        %1134 = vmatpush1.bf16.msra.mxu0 0
        %1135 = vmatprep.subr.bf16.mxu0 0
        %1136 = vmatpush1.bf16.msra.mxu0 0
        %1137 = vmatprep.subr.bf16.mxu0 0
        %1138 = vmatpush1.bf16.msra.mxu0 0
        %1139 = vmatprep.mubr.bf16.mxu0 0
        %1140 = vmatmul.mubr.bf16.gmra.mrb[0].mxu0 %v1102
        %v1141 = vpop.f32.mrb[0].mxu0
        %v1142 = vadd.f32 0.0, %v1141
        %v1143 = vpop.f32.mrb[0].mxu0
        %v1144 = vpop.f32.mrb[0].mxu0
        %v1145 = vpop.f32.mrb[0].mxu0
        %1146 = vdwg.mxu0
        %v1147 = vrcp.pop %v948
        %v1148 = vmul.f32 %v1004, %v1147
        %v1149 = vrcp.pop %v951
        %v1150 = vmul.f32 %v1050, %v1149
        %v1151 = vrcp.pop %v954
        %v1152 = vmul.f32 %v1096, %v1151
        %v1153 = vrcp.pop %v957
        %v1154 = vmul.f32 %v1142, %v1153
        %v1155 = vpack.c.bf16 %v1148, %v1148
        %v1156 = vpack.c.bf16 %v1150, %v1150
        %v1157 = vpack.c.bf16 %v1152, %v1152
        %v1158 = vpack.c.bf16 %v1154, %v1154
        %v1159 = vld [vmem:[#allocation9] sm:$0xf]
        %v1160 = vld [vmem:[#allocation9 + $0x4] sm:$0xf]
        %v1161 = vld [vmem:[#allocation9 + $0x8] sm:$0xf]
        %v1162 = vld [vmem:[#allocation9 + $0xc] sm:$0xf]
        %v1164 = vsel %vm725, %v1155, 0
        %v1167 = vsel %vm965, %v1159, 0
        %1169 = vmatprep.subr.bf16.mxu0 0
        %1170 = vmatpush1.bf16.msra.mxu0 %v1167
        %1171 = vmatprep.subr.bf16.mxu0 0
        %1172 = vmatpush1.bf16.msra.mxu0 0
        %1173 = vmatprep.subr.bf16.mxu0 0
        %1174 = vmatpush1.bf16.msra.mxu0 0
        %1175 = vmatprep.subr.bf16.mxu0 0
        %1176 = vmatpush1.bf16.msra.mxu0 0
        %1177 = vmatprep.subr.bf16.mxu0 0
        %1178 = vmatpush1.bf16.msra.mxu0 0
        %1179 = vmatprep.subr.bf16.mxu0 0
        %1180 = vmatpush1.bf16.msra.mxu0 0
        %1181 = vmatprep.subr.bf16.mxu0 0
        %1182 = vmatpush1.bf16.msra.mxu0 0
        %1183 = vmatprep.subr.bf16.mxu0 0
        %1184 = vmatpush1.bf16.msra.mxu0 0
        %1185 = vmatprep.subr.bf16.mxu0 0
        %1186 = vmatpush1.bf16.msra.mxu0 0
        %1187 = vmatprep.subr.bf16.mxu0 0
        %1188 = vmatpush1.bf16.msra.mxu0 0
        %1189 = vmatprep.subr.bf16.mxu0 0
        %1190 = vmatpush1.bf16.msra.mxu0 0
        %1191 = vmatprep.subr.bf16.mxu0 0
        %1192 = vmatpush1.bf16.msra.mxu0 0
        %1193 = vmatprep.subr.bf16.mxu0 0
        %1194 = vmatpush1.bf16.msra.mxu0 0
        %1195 = vmatprep.subr.bf16.mxu0 0
        %1196 = vmatpush1.bf16.msra.mxu0 0
        %1197 = vmatprep.subr.bf16.mxu0 0
        %1198 = vmatpush1.bf16.msra.mxu0 0
        %1199 = vmatprep.subr.bf16.mxu0 0
        %1200 = vmatpush1.bf16.msra.mxu0 0
        %1201 = vmatprep.mubr.bf16.mxu0 0
        %1202 = vmatmul.mubr.bf16.gmra.mrb[0].mxu0 %v1164
        %v1203 = vpop.f32.mrb[0].mxu0
        %v1204 = vadd.f32 0.0, %v1203
        %v1205 = vpop.f32.mrb[0].mxu0
        %v1206 = vpop.f32.mrb[0].mxu0
        %v1207 = vpop.f32.mrb[0].mxu0
        %1208 = vdwg.mxu0
        %v1210 = vsel %vm725, %v1156, 0
        %v1213 = vsel %vm965, %v1160, 0
        %1215 = vmatprep.subr.bf16.mxu0 0
        %1216 = vmatpush1.bf16.msra.mxu0 %v1213
        %1217 = vmatprep.subr.bf16.mxu0 0
        %1218 = vmatpush1.bf16.msra.mxu0 0
        %1219 = vmatprep.subr.bf16.mxu0 0
        %1220 = vmatpush1.bf16.msra.mxu0 0
        %1221 = vmatprep.subr.bf16.mxu0 0
        %1222 = vmatpush1.bf16.msra.mxu0 0
        %1223 = vmatprep.subr.bf16.mxu0 0
        %1224 = vmatpush1.bf16.msra.mxu0 0
        %1225 = vmatprep.subr.bf16.mxu0 0
        %1226 = vmatpush1.bf16.msra.mxu0 0
        %1227 = vmatprep.subr.bf16.mxu0 0
        %1228 = vmatpush1.bf16.msra.mxu0 0
        %1229 = vmatprep.subr.bf16.mxu0 0
        %1230 = vmatpush1.bf16.msra.mxu0 0
        %1231 = vmatprep.subr.bf16.mxu0 0
        %1232 = vmatpush1.bf16.msra.mxu0 0
        %1233 = vmatprep.subr.bf16.mxu0 0
        %1234 = vmatpush1.bf16.msra.mxu0 0
        %1235 = vmatprep.subr.bf16.mxu0 0
        %1236 = vmatpush1.bf16.msra.mxu0 0
        %1237 = vmatprep.subr.bf16.mxu0 0
        %1238 = vmatpush1.bf16.msra.mxu0 0
        %1239 = vmatprep.subr.bf16.mxu0 0
        %1240 = vmatpush1.bf16.msra.mxu0 0
        %1241 = vmatprep.subr.bf16.mxu0 0
        %1242 = vmatpush1.bf16.msra.mxu0 0
        %1243 = vmatprep.subr.bf16.mxu0 0
        %1244 = vmatpush1.bf16.msra.mxu0 0
        %1245 = vmatprep.subr.bf16.mxu0 0
        %1246 = vmatpush1.bf16.msra.mxu0 0
        %1247 = vmatprep.mubr.bf16.mxu0 0
        %1248 = vmatmul.mubr.bf16.gmra.mrb[0].mxu0 %v1210
        %v1249 = vpop.f32.mrb[0].mxu0
        %v1250 = vadd.f32 0.0, %v1249
        %v1251 = vpop.f32.mrb[0].mxu0
        %v1252 = vpop.f32.mrb[0].mxu0
        %v1253 = vpop.f32.mrb[0].mxu0
        %1254 = vdwg.mxu0
        %v1256 = vsel %vm725, %v1157, 0
        %v1259 = vsel %vm965, %v1161, 0
        %1261 = vmatprep.subr.bf16.mxu0 0
        %1262 = vmatpush1.bf16.msra.mxu0 %v1259
        %1263 = vmatprep.subr.bf16.mxu0 0
        %1264 = vmatpush1.bf16.msra.mxu0 0
        %1265 = vmatprep.subr.bf16.mxu0 0
        %1266 = vmatpush1.bf16.msra.mxu0 0
        %1267 = vmatprep.subr.bf16.mxu0 0
        %1268 = vmatpush1.bf16.msra.mxu0 0
        %1269 = vmatprep.subr.bf16.mxu0 0
        %1270 = vmatpush1.bf16.msra.mxu0 0
        %1271 = vmatprep.subr.bf16.mxu0 0
        %1272 = vmatpush1.bf16.msra.mxu0 0
        %1273 = vmatprep.subr.bf16.mxu0 0
        %1274 = vmatpush1.bf16.msra.mxu0 0
        %1275 = vmatprep.subr.bf16.mxu0 0
        %1276 = vmatpush1.bf16.msra.mxu0 0
        %1277 = vmatprep.subr.bf16.mxu0 0
        %1278 = vmatpush1.bf16.msra.mxu0 0
        %1279 = vmatprep.subr.bf16.mxu0 0
        %1280 = vmatpush1.bf16.msra.mxu0 0
        %1281 = vmatprep.subr.bf16.mxu0 0
        %1282 = vmatpush1.bf16.msra.mxu0 0
        %1283 = vmatprep.subr.bf16.mxu0 0
        %1284 = vmatpush1.bf16.msra.mxu0 0
        %1285 = vmatprep.subr.bf16.mxu0 0
        %1286 = vmatpush1.bf16.msra.mxu0 0
        %1287 = vmatprep.subr.bf16.mxu0 0
        %1288 = vmatpush1.bf16.msra.mxu0 0
        %1289 = vmatprep.subr.bf16.mxu0 0
        %1290 = vmatpush1.bf16.msra.mxu0 0
        %1291 = vmatprep.subr.bf16.mxu0 0
        %1292 = vmatpush1.bf16.msra.mxu0 0
        %1293 = vmatprep.mubr.bf16.mxu0 0
        %1294 = vmatmul.mubr.bf16.gmra.mrb[0].mxu0 %v1256
        %v1295 = vpop.f32.mrb[0].mxu0
        %v1296 = vadd.f32 0.0, %v1295
        %v1297 = vpop.f32.mrb[0].mxu0
        %v1298 = vpop.f32.mrb[0].mxu0
        %v1299 = vpop.f32.mrb[0].mxu0
        %1300 = vdwg.mxu0
        %v1302 = vsel %vm725, %v1158, 0
        %v1305 = vsel %vm965, %v1162, 0
        %1307 = vmatprep.subr.bf16.mxu0 0
        %1308 = vmatpush1.bf16.msra.mxu0 %v1305
        %1309 = vmatprep.subr.bf16.mxu0 0
        %1310 = vmatpush1.bf16.msra.mxu0 0
        %1311 = vmatprep.subr.bf16.mxu0 0
        %1312 = vmatpush1.bf16.msra.mxu0 0
        %1313 = vmatprep.subr.bf16.mxu0 0
        %1314 = vmatpush1.bf16.msra.mxu0 0
        %1315 = vmatprep.subr.bf16.mxu0 0
        %1316 = vmatpush1.bf16.msra.mxu0 0
        %1317 = vmatprep.subr.bf16.mxu0 0
        %1318 = vmatpush1.bf16.msra.mxu0 0
        %1319 = vmatprep.subr.bf16.mxu0 0
        %1320 = vmatpush1.bf16.msra.mxu0 0
        %1321 = vmatprep.subr.bf16.mxu0 0
        %1322 = vmatpush1.bf16.msra.mxu0 0
        %1323 = vmatprep.subr.bf16.mxu0 0
        %1324 = vmatpush1.bf16.msra.mxu0 0
        %1325 = vmatprep.subr.bf16.mxu0 0
        %1326 = vmatpush1.bf16.msra.mxu0 0
        %1327 = vmatprep.subr.bf16.mxu0 0
        %1328 = vmatpush1.bf16.msra.mxu0 0
        %1329 = vmatprep.subr.bf16.mxu0 0
        %1330 = vmatpush1.bf16.msra.mxu0 0
        %1331 = vmatprep.subr.bf16.mxu0 0
        %1332 = vmatpush1.bf16.msra.mxu0 0
        %1333 = vmatprep.subr.bf16.mxu0 0
        %1334 = vmatpush1.bf16.msra.mxu0 0
        %1335 = vmatprep.subr.bf16.mxu0 0
        %1336 = vmatpush1.bf16.msra.mxu0 0
        %1337 = vmatprep.subr.bf16.mxu0 0
        %1338 = vmatpush1.bf16.msra.mxu0 0
        %1339 = vmatprep.mubr.bf16.mxu0 0
        %1340 = vmatmul.mubr.bf16.gmra.mrb[0].mxu0 %v1302
        %v1341 = vpop.f32.mrb[0].mxu0
        %v1342 = vadd.f32 0.0, %v1341
        %v1343 = vpop.f32.mrb[0].mxu0
        %v1344 = vpop.f32.mrb[0].mxu0
        %v1345 = vpop.f32.mrb[0].mxu0
        %1346 = vdwg.mxu0
        %v1347 = vsel %vm668, %v1204, 0.0
        %v1348 = vsel %vm668, %v1250, 0.0
        %v1349 = vadd.f32 %v1347, %v1348
        %v1350 = vsel %vm668, %v1296, 0.0
        %v1351 = vadd.f32 %v1349, %v1350
        %v1352 = vsel %vm668, %v1342, 0.0
        %v1353 = vadd.f32 %v1351, %v1352
        %v1354 = vlaneseq
        %v1355 = vshrl.u32 %v1354, 7
        %v1356 = vsub.s32 0, %v1355
        %v1357 = vrot.slane %v479, %v1356
        %v1358 = vadd.f32 %v1353, %v1357
        %v1359 = vadd.f32 %v646, %v1358
        %v1360 = vsel %vm668, %v1359, 0.0
        %1361 = vadd.xlane.f32.xlu0 %v1360
        %v1362 = vpop.xlane.xlu0 %1361
        %v1363 = vrcp.pop 32.0
        %v1364 = vmul.f32 %v1362, %v1363
        %v1365 = vsub.f32 %v1359, %v1364
        %v1366 = vmul.f32 %v1365, %v1365
        %v1367 = vsel %vm668, %v1366, 0.0
        %1368 = vadd.xlane.f32.xlu0 %v1367
        %v1369 = vpop.xlane.xlu0 %1368
        %v1370 = vmul.f32 %v1369, %v1363
        %v1371 = vadd.f32 %v1370, 1e-05
        %v1372 = vrsqrt.pop %v1371
        %v1373 = vmul.f32 %v1365, %v1372
        %v1374 = vlaneseq
        %v1375 = vshrl.u32 %v1374, 7
        %v1376 = vsub.s32 0, %v1375
        %v1377 = vrot.slane %v481, %v1376
        %v1378 = vmul.f32 %v1373, %v1377
        %v1379 = vlaneseq
        %v1380 = vshrl.u32 %v1379, 7
        %v1381 = vsub.s32 0, %v1380
        %v1382 = vrot.slane %v482, %v1381
        %v1383 = vadd.f32 %v1378, %v1382
        %v1384 = vpack.c.bf16 %v1383, %v1383
        %v1385 = vld [vmem:[#allocation10] sm:$0xf]
        %v1386 = vld [vmem:[#allocation10 + $0x4] sm:$0xf]
        %v1387 = vld [vmem:[#allocation10 + $0x8] sm:$0xf]
        %v1388 = vld [vmem:[#allocation10 + $0xc] sm:$0xf]
        %v1390 = vlaneseq
        %v1391 = vshrl.u32 %v1390, 7
        %v1392 = vsub.s32 0, %v1391
        %v1393 = vrot.slane %v485, %v1392
        %v1399 = vunpack.c.l.b16 %v1385
        %v1400 = vunpack.c.l.b16 %v1386
        %v1401 = vunpack.c.l.b16 %v1387
        %v1402 = vunpack.c.l.b16 %v1388
        %v1403 = vpack.c.b16 %v1400, %v1399
        %v1404 = vpack.c.b16 %v1402, %v1401
        %v1408 = vsel %vm668, %v1384, 0
        %1410 = vmatprep.subr.bf16.mxu0 0
        %1411 = vmatpush1.bf16.msra.mxu0 %v1403
        %1412 = vmatprep.subr.bf16.mxu0 0
        %1413 = vmatpush1.bf16.msra.mxu0 %v1404
        %1414 = vmatprep.subr.bf16.mxu0 0
        %1415 = vmatpush1.bf16.msra.mxu0 0
        %1416 = vmatprep.subr.bf16.mxu0 0
        %1417 = vmatpush1.bf16.msra.mxu0 0
        %1418 = vmatprep.subr.bf16.mxu0 0
        %1419 = vmatpush1.bf16.msra.mxu0 0
        %1420 = vmatprep.subr.bf16.mxu0 0
        %1421 = vmatpush1.bf16.msra.mxu0 0
        %1422 = vmatprep.subr.bf16.mxu0 0
        %1423 = vmatpush1.bf16.msra.mxu0 0
        %1424 = vmatprep.subr.bf16.mxu0 0
        %1425 = vmatpush1.bf16.msra.mxu0 0
        %1426 = vmatprep.subr.bf16.mxu0 0
        %1427 = vmatpush1.bf16.msra.mxu0 0
        %1428 = vmatprep.subr.bf16.mxu0 0
        %1429 = vmatpush1.bf16.msra.mxu0 0
        %1430 = vmatprep.subr.bf16.mxu0 0
        %1431 = vmatpush1.bf16.msra.mxu0 0
        %1432 = vmatprep.subr.bf16.mxu0 0
        %1433 = vmatpush1.bf16.msra.mxu0 0
        %1434 = vmatprep.subr.bf16.mxu0 0
        %1435 = vmatpush1.bf16.msra.mxu0 0
        %1436 = vmatprep.subr.bf16.mxu0 0
        %1437 = vmatpush1.bf16.msra.mxu0 0
        %1438 = vmatprep.subr.bf16.mxu0 0
        %1439 = vmatpush1.bf16.msra.mxu0 0
        %1440 = vmatprep.subr.bf16.mxu0 0
        %1441 = vmatpush1.bf16.msra.mxu0 0
        %1442 = vmatprep.mubr.bf16.mxu0 0
        %1443 = vmatmul.mubr.bf16.gmra.mrb[0].mxu0 %v1408
        %v1444 = vpop.f32.mrb[0].mxu0
        %v1445 = vadd.f32 %v1393, %v1444
        %v1446 = vpop.f32.mrb[0].mxu0
        %v1447 = vpop.f32.mrb[0].mxu0
        %v1448 = vpop.f32.mrb[0].mxu0
        %1449 = vdwg.mxu0
        %v1450 = vmax.f32 %v1445, 0.0
        %v1451 = vpack.c.bf16 %v1450, %v1450
        %v1452 = vld [vmem:[%s7] sm:$0xf]
        %v1453 = vld [vmem:[%s7 + $0x4] sm:$0xf]
        %v1454 = vld [vmem:[%s7 + $0x8] sm:$0xf]
        %v1455 = vld [vmem:[%s7 + $0xc] sm:$0xf]
        %v1456 = vld [vmem:[%s7 + $0x10] sm:$0xf]
        %v1457 = vld [vmem:[%s7 + $0x14] sm:$0xf]
        %v1458 = vld [vmem:[%s7 + $0x18] sm:$0xf]
        %v1459 = vld [vmem:[%s7 + $0x1c] sm:$0xf]
        %v1460 = vlaneseq
        %v1461 = vshrl.u32 %v1460, 7
        %v1462 = vsub.s32 0, %v1461
        %v1463 = vrot.slane %v480, %v1462
        %v1472 = vunpack.c.l.b16 %v1452
        %v1473 = vunpack.c.l.b16 %v1453
        %v1474 = vunpack.c.l.b16 %v1454
        %v1475 = vunpack.c.l.b16 %v1455
        %v1476 = vunpack.c.l.b16 %v1456
        %v1477 = vunpack.c.l.b16 %v1457
        %v1478 = vunpack.c.l.b16 %v1458
        %v1479 = vunpack.c.l.b16 %v1459
        %v1480 = vpack.c.b16 %v1473, %v1472
        %v1481 = vpack.c.b16 %v1475, %v1474
        %v1482 = vpack.c.b16 %v1477, %v1476
        %v1483 = vpack.c.b16 %v1479, %v1478
        %vm1488 = vcmask 523264
        %v1490 = vsel %vm1488, %v1451, 0
        %1492 = vmatprep.subr.bf16.mxu0 0
        %1493 = vmatpush1.bf16.msra.mxu0 %v1480
        %1494 = vmatprep.subr.bf16.mxu0 0
        %1495 = vmatpush1.bf16.msra.mxu0 %v1481
        %1496 = vmatprep.subr.bf16.mxu0 0
        %1497 = vmatpush1.bf16.msra.mxu0 %v1482
        %1498 = vmatprep.subr.bf16.mxu0 0
        %1499 = vmatpush1.bf16.msra.mxu0 %v1483
        %1500 = vmatprep.subr.bf16.mxu0 0
        %1501 = vmatpush1.bf16.msra.mxu0 0
        %1502 = vmatprep.subr.bf16.mxu0 0
        %1503 = vmatpush1.bf16.msra.mxu0 0
        %1504 = vmatprep.subr.bf16.mxu0 0
        %1505 = vmatpush1.bf16.msra.mxu0 0
        %1506 = vmatprep.subr.bf16.mxu0 0
        %1507 = vmatpush1.bf16.msra.mxu0 0
        %1508 = vmatprep.subr.bf16.mxu0 0
        %1509 = vmatpush1.bf16.msra.mxu0 0
        %1510 = vmatprep.subr.bf16.mxu0 0
        %1511 = vmatpush1.bf16.msra.mxu0 0
        %1512 = vmatprep.subr.bf16.mxu0 0
        %1513 = vmatpush1.bf16.msra.mxu0 0
        %1514 = vmatprep.subr.bf16.mxu0 0
        %1515 = vmatpush1.bf16.msra.mxu0 0
        %1516 = vmatprep.subr.bf16.mxu0 0
        %1517 = vmatpush1.bf16.msra.mxu0 0
        %1518 = vmatprep.subr.bf16.mxu0 0
        %1519 = vmatpush1.bf16.msra.mxu0 0
        %1520 = vmatprep.subr.bf16.mxu0 0
        %1521 = vmatpush1.bf16.msra.mxu0 0
        %1522 = vmatprep.subr.bf16.mxu0 0
        %1523 = vmatpush1.bf16.msra.mxu0 0
        %1524 = vmatprep.mubr.bf16.mxu0 0
        %1525 = vmatmul.mubr.bf16.gmra.mrb[0].mxu0 %v1490
        %v1526 = vpop.f32.mrb[0].mxu0
        %v1527 = vadd.f32 %v1463, %v1526
        %v1528 = vpop.f32.mrb[0].mxu0
        %v1529 = vpop.f32.mrb[0].mxu0
        %v1530 = vpop.f32.mrb[0].mxu0
        %1531 = vdwg.mxu0
        %v1532 = vadd.f32 %v1383, %v1527
        %v1533 = vsel %vm668, %v1532, 0.0
        %1534 = vadd.xlane.f32.xlu0 %v1533
        %v1535 = vpop.xlane.xlu0 %1534
        %v1536 = vmul.f32 %v1535, %v1363
        %v1537 = vsub.f32 %v1532, %v1536
        %v1538 = vmul.f32 %v1537, %v1537
        %v1539 = vsel %vm668, %v1538, 0.0
        %1540 = vadd.xlane.f32.xlu0 %v1539
        %v1541 = vpop.xlane.xlu0 %1540
        %v1542 = vmul.f32 %v1541, %v1363
        %v1543 = vadd.f32 %v1542, 1e-05
        %v1544 = vrsqrt.pop %v1543
        %v1545 = vmul.f32 %v1537, %v1544
        %v1546 = vlaneseq
        %v1547 = vshrl.u32 %v1546, 7
        %v1548 = vsub.s32 0, %v1547
        %v1549 = vrot.slane %v483, %v1548
        %v1550 = vmul.f32 %v1545, %v1549
        %v1551 = vlaneseq
        %v1552 = vshrl.u32 %v1551, 7
        %v1553 = vsub.s32 0, %v1552
        %v1554 = vrot.slane %v484, %v1553
        %v1555 = vadd.f32 %v1550, %v1554
        %1556 = vst.msk [vmem:[%s467] sm:$0xff] %vm668, %v1555
        %s1557 = sand.u32 %s273, 1
        %s1558 = scalar_lea.sflag [#allocation6], %s1557
        %s1559 = sand.u32 %s273, 1
        %s1560 = smul.addr %s1559, 8
        %s1561 = scalar_lea.vmem [#allocation13], %s1560
        // Predicated region
        $region85: #{tpu_custom_call.1} parent=59 // pred_check
          %p1562 = pneg %p283
        $region86: #{tpu_custom_call.1} parent=59 // pred_check_branch
          %1564 = sbr.rel (%p1562) target = $region88
        $region87: #{tpu_custom_call.1} parent=59 // pred_region
          %s1566 = ssub.s32 128, 128
          %1567 = vsyncadd %s1558, %s1566
          %s1568 = sadd.s32 %s34, %s33
          %s1569 = smul.addr %s1568, 128
          %s1570 = scalar_lea.hbm %s10, %s1569
          %s1572 = sshll.u32 %s1561, 4
          %s1573 = int_to_ptr.vmem [resolvable:$true] %s1572
          %1575 = dma.vmem_to_hbm [thread:$0]  %s1573, 128, %s1570, %s1558
        $region88: #{tpu_custom_call.1} parent=59 // pred_fallthru
          _
      $region60: #{tpu_custom_call.1} parent=5 // pred_fallthru
        _
      %p1576 = scmp.le.s32.totalorder 2, %s24
      // Predicated region
      $region89: #{tpu_custom_call.1} parent=5 // pred_check
        %p1577 = pneg %p1576
      $region90: #{tpu_custom_call.1} parent=5 // pred_check_branch
        %1579 = sbr.rel (%p1577) target = $region92
      $region91: #{tpu_custom_call.1} parent=5 // pred_region
        %s1580 = ssub.s32 %s24, 2
        // Predicated region
        $region93: #{tpu_custom_call.1} parent=91 // pred_check
          %p1581 = pneg %p289
        $region94: #{tpu_custom_call.1} parent=91 // pred_check_branch
          %1583 = sbr.rel (%p1581) target = $region96
        $region95: #{tpu_custom_call.1} parent=91 // pred_region
          %s1584 = sand.u32 %s274, 1
          %s1585 = scalar_lea.sflag [#allocation6], %s1584
          %s1586 = sand.u32 %s274, 1
          %s1587 = smul.addr %s1586, 8
          %s1588 = scalar_lea.vmem [#allocation13], %s1587
          %1589 = dma.done %s1585, 128
        $region96: #{tpu_custom_call.1} parent=91 // pred_fallthru
          _
      $region92: #{tpu_custom_call.1} parent=5 // pred_fallthru
        _
    $region6: #{tpu_custom_call.1} parent=1 // loop_footer
      %s28 = sadd.s32 1, %s24
    $region7: #{tpu_custom_call.1} parent=1 // loop_footer_branch
      %23 = sbr.rel target = $region3
    $region8: #{tpu_custom_call.1} parent=1 // loop_exit
      _
    %1590 = vsyncpa [#allocation5], 1
    %s1591 = scalar_lea.sflag [#allocation5], 1
    %1592 = vsyncpa %s1591, 1
    %1593 = vsyncpa [#allocation8], 1
    %1594 = vsyncpa [#allocation11], 1
    %1595 = vsyncpa [#allocation6], 1
    %s1596 = scalar_lea.sflag [#allocation6], 1
    %1597 = vsyncpa %s1596, 1

</llo_original>
